<compile_context>
chip_gen: v6e
topology: v6e:2x2x1
jax: 0.10.0
libtpu: 0.0.40
codegen_flags: <defaults>
</compile_context>

<pallas_src>
import functools

import numpy as np

import jax
import jax.numpy as jnp
from jax.experimental import pallas as pl
from jax.experimental.pallas import tpu as pltpu

LANE = 128


def _round_up(x, m):
    return (x + m - 1) // m * m


def _elu(x):
    # F.elu, alpha = 1.0 (exp(min(x,0)) guards overflow for large positive x)
    return jnp.where(x > 0, x, jnp.exp(jnp.minimum(x, 0.0)) - 1.0)


def _vmem_limit(blocks):
    """Scoped-VMEM budget from the actual per-call blocks.

    BlockSpec double-buffers every operand; 1.5x + 2 MiB headroom covers
    Mosaic's internal scratch.  Capped at 56 MiB so the same config stays
    legal against v7x's 64 MiB physical VMEM (v5e/v6e have 128 MiB).
    """
    total = 0
    for shape, dtype in blocks:
        total += 2 * int(np.prod(shape)) * np.dtype(dtype).itemsize
    budget = int(total * 1.5) + (2 << 20)
    return min(max(budget, 16 << 20), 56 << 20)


# --------------------------------------------------------------------------- #
# Kernel 1: fused conv1 + ELU + (dropout=id) + conv2 input projection
#   Z2_tile = ELU( A_tile @ (X @ W1) + b1 ) @ W2        (all matmuls bf16 MXU)
# --------------------------------------------------------------------------- #
def _gcn_layer1_kernel(a_ref, x_ref, w1_ref, b1_ref, w2_ref, out_ref):
    # Full-graph input projection recomputed per row tile (resident X; ~free).
    z1 = jnp.dot(
        x_ref[...], w1_ref[...], preferred_element_type=jnp.float32
    ).astype(jnp.bfloat16)
    # Aggregate + bias + ELU in f32.
    h = _elu(
        jnp.dot(a_ref[...], z1, preferred_element_type=jnp.float32) + b1_ref[...]
    )
    # dropout: eval-mode identity.  Fused next-layer projection on the bf16 MXU.
    out_ref[...] = jnp.dot(
        h.astype(jnp.bfloat16), w2_ref[...], preferred_element_type=jnp.float32
    ).astype(out_ref.dtype)


def _gcn_layer1(a_p, x_p, w1_p, b1_p, w2_p, *, tm):
    n_pad, f_pad = x_p.shape
    h_pad = w1_p.shape[1]
    blocks = [
        ((tm, n_pad), a_p.dtype),
        ((n_pad, f_pad), x_p.dtype),
        ((f_pad, h_pad), w1_p.dtype),
        ((1, h_pad), b1_p.dtype),
        ((h_pad, h_pad), w2_p.dtype),
        ((tm, h_pad), jnp.bfloat16),
    ]
    return pl.pallas_call(
        _gcn_layer1_kernel,
        out_shape=jax.ShapeDtypeStruct((n_pad, h_pad), jnp.bfloat16),
        grid_spec=pltpu.PrefetchScalarGridSpec(
            num_scalar_prefetch=0,
            grid=(n_pad // tm,),
            in_specs=[
                pl.BlockSpec((tm, n_pad), lambda i: (i, 0)),    # A row tile (full K)
                pl.BlockSpec((n_pad, f_pad), lambda i: (0, 0)),  # X, VMEM-resident
                pl.BlockSpec((f_pad, h_pad), lambda i: (0, 0)),  # W1
                pl.BlockSpec((1, h_pad), lambda i: (0, 0)),      # b1
                pl.BlockSpec((h_pad, h_pad), lambda i: (0, 0)),  # W2 (fused)
            ],
            out_specs=pl.BlockSpec((tm, h_pad), lambda i: (i, 0)),
        ),
        compiler_params=pltpu.CompilerParams(
            dimension_semantics=("parallel",),
            vmem_limit_bytes=_vmem_limit(blocks),
        ),
    )(a_p, x_p, w1_p, b1_p, w2_p)


# --------------------------------------------------------------------------- #
# Kernel 2: fused conv2 + ELU + (dropout=id) + fc head + sigmoid
#   OUT_tile = sigmoid( ELU( A_tile @ Z2 + b2 ) @ Wfc + bfc )
# --------------------------------------------------------------------------- #
def _gcn_layer2_kernel(a_ref, z_ref, b2_ref, wfc_ref, bfc_ref, out_ref):
    h = _elu(
        jnp.dot(a_ref[...], z_ref[...], preferred_element_type=jnp.float32)
        + b2_ref[...]
    )
    # dropout: eval-mode identity.  fc head fused on the bf16 MXU.
    y = jnp.dot(
        h.astype(jnp.bfloat16), wfc_ref[...], preferred_element_type=jnp.float32
    ) + bfc_ref[...]
    out_ref[...] = jax.nn.sigmoid(y).astype(out_ref.dtype)


def _gcn_layer2(a_p, z2, b2_p, wfc_p, bfc_p, *, tm):
    n_pad, h_pad = z2.shape
    o_pad = wfc_p.shape[1]
    blocks = [
        ((tm, n_pad), a_p.dtype),
        ((n_pad, h_pad), z2.dtype),
        ((1, h_pad), b2_p.dtype),
        ((h_pad, o_pad), wfc_p.dtype),
        ((1, o_pad), bfc_p.dtype),
        ((tm, o_pad), jnp.float32),
    ]
    return pl.pallas_call(
        _gcn_layer2_kernel,
        out_shape=jax.ShapeDtypeStruct((n_pad, o_pad), jnp.float32),
        grid_spec=pltpu.PrefetchScalarGridSpec(
            num_scalar_prefetch=0,
            grid=(n_pad // tm,),
            in_specs=[
                pl.BlockSpec((tm, n_pad), lambda i: (i, 0)),     # A row tile (full K)
                pl.BlockSpec((n_pad, h_pad), lambda i: (0, 0)),  # Z2, VMEM-resident
                pl.BlockSpec((1, h_pad), lambda i: (0, 0)),      # b2
                pl.BlockSpec((h_pad, o_pad), lambda i: (0, 0)),  # Wfc
                pl.BlockSpec((1, o_pad), lambda i: (0, 0)),      # bfc
            ],
            out_specs=pl.BlockSpec((tm, o_pad), lambda i: (i, 0)),
        ),
        compiler_params=pltpu.CompilerParams(
            dimension_semantics=("parallel",),
            vmem_limit_bytes=_vmem_limit(blocks),
        ),
    )(a_p, z2, b2_p, wfc_p, bfc_p)


# --------------------------------------------------------------------------- #
# Padding (done ONCE per static graph, outside the jitted forward) + forward
# --------------------------------------------------------------------------- #
def pad_gcn_inputs(a_hat, x, w1, b1, w2, b2, wfc, bfc):
    """Zero-pad to lane-dense shapes and pre-cast to bf16 where the MXU eats it.

    Padded A rows/cols are zero so they never contaminate real node outputs;
    padded hidden/output lanes stay exactly zero through bias+ELU.
    """
    n, f = x.shape
    hid = w1.shape[1]

    n_pad = _round_up(n, 256)          # 2 row tiles, each a multiple of (8,128)
    f_pad = _round_up(f, LANE)
    h_pad = _round_up(hid, LANE)
    o_pad = LANE                        # fc output padded 1 -> 128 (lane dense)

    bf = jnp.bfloat16
    # TODO(synk): on v7x, fp8 (e4m3) for A_hat (values in [0,1]) would halve the
    # dominant HBM stream; bf16 is the portable choice across v5e/v6e/v7x.
    a_p = jnp.zeros((n_pad, n_pad), bf).at[:n, :n].set(a_hat.astype(bf))
    x_p = jnp.zeros((n_pad, f_pad), bf).at[:n, :f].set(x.astype(bf))
    w1_p = jnp.zeros((f_pad, h_pad), bf).at[:f, :hid].set(w1.astype(bf))
    b1_p = jnp.zeros((1, h_pad), jnp.float32).at[:, :hid].set(b1)
    w2_p = jnp.zeros((h_pad, h_pad), bf).at[:hid, :hid].set(w2.astype(bf))
    b2_p = jnp.zeros((1, h_pad), jnp.float32).at[:, :hid].set(b2)
    wfc_p = jnp.zeros((h_pad, o_pad), bf).at[:hid, :1].set(wfc.astype(bf))
    bfc_p = jnp.zeros((1, o_pad), jnp.float32).at[:, :1].set(bfc)
    return a_p, x_p, w1_p, b1_p, w2_p, b2_p, wfc_p, bfc_p


@functools.partial(jax.jit, static_argnames=("num_nodes",))
def gcn_forward_padded(a_p, x_p, w1_p, b1_p, w2_p, b2_p, wfc_p, bfc_p, *, num_nodes):
    n_pad = a_p.shape[0]
    # Two row tiles: even split across v7x's 2 TensorCores ("parallel" axis);
    # on v5e/v6e this is just 2 sequential, fully-pipelined steps.  For much
    # larger graphs re-derive tm / reintroduce K-tiling against _vmem_limit.
    tm = n_pad // 2

    # conv1 + ELU + dropout(id) + conv2 input projection (fused):
    z2 = _gcn_layer1(a_p, x_p, w1_p, b1_p, w2_p, tm=tm)
    # conv2 + ELU + dropout(id) + fc + sigmoid (fused):
    out = _gcn_layer2(a_p, z2, b2_p, wfc_p, bfc_p, tm=tm)
    return out[:num_nodes, :1]


def gcn_forward(a_hat, x, w1, b1, w2, b2, wfc, bfc):
    padded = pad_gcn_inputs(a_hat, x, w1, b1, w2, b2, wfc, bfc)
    return gcn_forward_padded(*padded, num_nodes=x.shape[0])


# --------------------------------------------------------------------------- #
# Graph / parameter construction + pure-JAX reference (mirrors kernel precision)
# --------------------------------------------------------------------------- #
def normalized_adjacency(edge_index, num_nodes):
    """Dense D^{-1/2}(A+I)D^{-1/2} from a [2, E] edge_index (src, dst)."""
    src, dst = edge_index[0], edge_index[1]
    a = jnp.zeros((num_nodes, num_nodes), jnp.float32)
    a = a.at[dst, src].set(1.0)                                       # src -> dst
    a = a.at[jnp.arange(num_nodes), jnp.arange(num_nodes)].set(1.0)   # self loops
    deg = a.sum(axis=1)
    dinv = jnp.where(deg > 0, 1.0 / jnp.sqrt(deg), 0.0)
    return dinv[:, None] * a * dinv[None, :]


def init_params(key, num_features, hidden_channels):
    k1, k2, k3 = jax.random.split(key, 3)

    def glorot(k, shape):
        lim = jnp.sqrt(6.0 / (shape[0] + shape[1]))
        return jax.random.uniform(k, shape, jnp.float32, -lim, lim)

    w1 = glorot(k1, (num_features, hidden_channels))
    b1 = jnp.zeros((1, hidden_channels), jnp.float32)
    w2 = glorot(k2, (hidden_channels, hidden_channels))
    b2 = jnp.zeros((1, hidden_channels), jnp.float32)
    wfc = glorot(k3, (hidden_channels, 1))
    bfc = jnp.zeros((1, 1), jnp.float32)
    return w1, b1, w2, b2, wfc, bfc


def reference_forward(a_hat, x, w1, b1, w2, b2, wfc, bfc):
    """Pure-JAX reference using the same bf16-matmul / f32-accumulate path."""
    bf = jnp.bfloat16
    a_b = a_hat.astype(bf)
    z1 = jnp.dot(x.astype(bf), w1.astype(bf),
                 preferred_element_type=jnp.float32).astype(bf)
    h1 = _elu(jnp.dot(a_b, z1, preferred_element_type=jnp.float32) + b1)
    z2 = jnp.dot(h1.astype(bf), w2.astype(bf),
                 preferred_element_type=jnp.float32).astype(bf)
    h2 = _elu(jnp.dot(a_b, z2, preferred_element_type=jnp.float32) + b2)
    y = jnp.dot(h2.astype(bf), wfc.astype(bf),
                preferred_element_type=jnp.float32) + bfc
    return jax.nn.sigmoid(y)


if __name__ == "__main__":
    num_nodes = 600          # pads to 768 -> 2 row tiles of 384, single K pass
    num_features = 4
    hidden_channels = 32
    num_edges = 3000

    key = jax.random.PRNGKey(0)
    k_feat, k_edge, k_param = jax.random.split(key, 3)

    x = jax.random.normal(k_feat, (num_nodes, num_features), jnp.float32)
    edge_index = jax.random.randint(k_edge, (2, num_edges), 0, num_nodes,
                                    dtype=jnp.int32)

    a_hat = normalized_adjacency(edge_index, num_nodes)
    params = init_params(k_param, num_features, hidden_channels)

    # Pad/cast once (static graph), then run the jitted padded forward.
    padded = pad_gcn_inputs(a_hat, x, *params)
    out = jax.block_until_ready(
        gcn_forward_padded(*padded, num_nodes=num_nodes))

    ref = reference_forward(a_hat, x, *params)
    assert out.shape == (num_nodes, 1), out.shape
    max_err = float(jnp.max(jnp.abs(out - ref)))
    assert jnp.allclose(out, ref, atol=1e-2, rtol=0.0), max_err  # bf16 MXU path

    print("KERNEL_OK")
</pallas_src>

<mosaic_0001>
module attributes {stable_mosaic.version = 11 : i64} {
  func.func @_gcn_layer2_kernel(%arg0: i32, %arg1: memref<384x768xbf16, #tpu.memory_space<vmem>>, %arg2: memref<768x128xbf16, #tpu.memory_space<vmem>>, %arg3: memref<1x128xf32, #tpu.memory_space<vmem>>, %arg4: memref<128x128xbf16, #tpu.memory_space<vmem>>, %arg5: memref<1x128xf32, #tpu.memory_space<vmem>>, %arg6: memref<384x128xf32, #tpu.memory_space<vmem>>) attributes {dimension_semantics = [#tpu.dimension_semantics<parallel>], iteration_bounds = array<i64: 2>, scalar_prefetch = 0 : i64, scratch_operands = 0 : i64, tpu.core_type = #tpu.core_type<tc>, window_params = [{transform_indices = @transform_0, window_bounds = array<i64: 384, 768>}, {pipeline_mode = #tpu.pipeline_mode<synchronous>, transform_indices = @transform_1, window_bounds = array<i64: 768, 128>}, {pipeline_mode = #tpu.pipeline_mode<synchronous>, transform_indices = @transform_2, window_bounds = array<i64: 1, 128>}, {pipeline_mode = #tpu.pipeline_mode<synchronous>, transform_indices = @transform_3, window_bounds = array<i64: 128, 128>}, {pipeline_mode = #tpu.pipeline_mode<synchronous>, transform_indices = @transform_4, window_bounds = array<i64: 1, 128>}, {transform_indices = @transform_5, window_bounds = array<i64: 384, 128>}]} {
    %c0 = arith.constant 0 : index
    %c0_0 = arith.constant 0 : index
    %0 = vector.load %arg1[%c0, %c0_0] : memref<384x768xbf16, #tpu.memory_space<vmem>>, vector<384x768xbf16>
    %c0_1 = arith.constant 0 : index
    %c0_2 = arith.constant 0 : index
    %1 = vector.load %arg2[%c0_1, %c0_2] : memref<768x128xbf16, #tpu.memory_space<vmem>>, vector<768x128xbf16>
    %cst = arith.constant dense<0.000000e+00> : vector<384x128xf32>
    %2 = tpu.matmul %0, %1, %cst {dimension_numbers = #tpu.dot_dimension_numbers<[1], [0], [0], [1], [0, 0, 1, 1], [], []>} : vector<384x768xbf16>, vector<768x128xbf16>, vector<384x128xf32> -> vector<384x128xf32>
    %c0_3 = arith.constant 0 : index
    %c0_4 = arith.constant 0 : index
    %3 = vector.load %arg3[%c0_3, %c0_4] : memref<1x128xf32, #tpu.memory_space<vmem>>, vector<1x128xf32>
    %4 = vector.broadcast %3 : vector<1x128xf32> to vector<384x128xf32>
    %5 = arith.addf %2, %4 : vector<384x128xf32>
    %cst_5 = arith.constant 0.000000e+00 : f32
    %6 = vector.broadcast %cst_5 : f32 to vector<384x128xf32>
    %7 = arith.cmpf ogt, %5, %6 : vector<384x128xf32>
    %cst_6 = arith.constant 0.000000e+00 : f32
    %8 = vector.broadcast %cst_6 : f32 to vector<384x128xf32>
    %9 = arith.minimumf %5, %8 : vector<384x128xf32>
    %10 = math.exp %9 : vector<384x128xf32>
    %cst_7 = arith.constant 1.000000e+00 : f32
    %11 = vector.broadcast %cst_7 : f32 to vector<384x128xf32>
    %12 = arith.subf %10, %11 : vector<384x128xf32>
    %13 = arith.select %7, %5, %12 : vector<384x128xi1>, vector<384x128xf32>
    %14 = arith.truncf %13 : vector<384x128xf32> to vector<384x128xbf16>
    %c0_8 = arith.constant 0 : index
    %c0_9 = arith.constant 0 : index
    %15 = vector.load %arg4[%c0_8, %c0_9] : memref<128x128xbf16, #tpu.memory_space<vmem>>, vector<128x128xbf16>
    %cst_10 = arith.constant dense<0.000000e+00> : vector<384x128xf32>
    %16 = tpu.matmul %14, %15, %cst_10 {dimension_numbers = #tpu.dot_dimension_numbers<[1], [0], [0], [1], [0, 0, 1, 1], [], []>} : vector<384x128xbf16>, vector<128x128xbf16>, vector<384x128xf32> -> vector<384x128xf32>
    %c0_11 = arith.constant 0 : index
    %c0_12 = arith.constant 0 : index
    %17 = vector.load %arg5[%c0_11, %c0_12] : memref<1x128xf32, #tpu.memory_space<vmem>>, vector<1x128xf32>
    %18 = vector.broadcast %17 : vector<1x128xf32> to vector<384x128xf32>
    %19 = arith.addf %16, %18 : vector<384x128xf32>
    %20 = arith.negf %19 : vector<384x128xf32>
    %21 = math.exp %20 : vector<384x128xf32>
    %cst_13 = arith.constant 1.000000e+00 : f32
    %22 = vector.broadcast %cst_13 : f32 to vector<384x128xf32>
    %23 = arith.addf %22, %21 : vector<384x128xf32>
    %24 = arith.divf %22, %23 : vector<384x128xf32>
    %c0_14 = arith.constant 0 : index
    %c0_15 = arith.constant 0 : index
    %25 = vector.load %arg6[%c0_14, %c0_15] : memref<384x128xf32, #tpu.memory_space<vmem>>, vector<384x128xf32>
    tpu.vector_store %arg6[%c0_14, %c0_15], %24 {strides = array<i32>} : memref<384x128xf32, #tpu.memory_space<vmem>>, vector<384x128xf32>,
    return
  }
  func.func @transform_0(%arg0: i32) -> (i32, i32) {
    %c0_i32 = arith.constant 0 : i32
    %c0_i32_0 = arith.constant 0 : i32
    return %arg0, %c0_i32 : i32, i32
  }
  func.func @transform_1(%arg0: i32) -> (i32, i32) {
    %c0_i32 = arith.constant 0 : i32
    %c0_i32_0 = arith.constant 0 : i32
    %c0_i32_1 = arith.constant 0 : i32
    return %c0_i32, %c0_i32_0 : i32, i32
  }
  func.func @transform_2(%arg0: i32) -> (i32, i32) {
    %c0_i32 = arith.constant 0 : i32
    %c0_i32_0 = arith.constant 0 : i32
    %c0_i32_1 = arith.constant 0 : i32
    return %c0_i32, %c0_i32_0 : i32, i32
  }
  func.func @transform_3(%arg0: i32) -> (i32, i32) {
    %c0_i32 = arith.constant 0 : i32
    %c0_i32_0 = arith.constant 0 : i32
    %c0_i32_1 = arith.constant 0 : i32
    return %c0_i32, %c0_i32_0 : i32, i32
  }
  func.func @transform_4(%arg0: i32) -> (i32, i32) {
    %c0_i32 = arith.constant 0 : i32
    %c0_i32_0 = arith.constant 0 : i32
    %c0_i32_1 = arith.constant 0 : i32
    return %c0_i32, %c0_i32_0 : i32, i32
  }
  func.func @transform_5(%arg0: i32) -> (i32, i32) {
    %c0_i32 = arith.constant 0 : i32
    %c0_i32_0 = arith.constant 0 : i32
    return %arg0, %c0_i32 : i32, i32
  }
}

module attributes {stable_mosaic.version = 11 : i64} {
  func.func @_gcn_layer1_kernel(%arg0: i32, %arg1: memref<384x768xbf16, #tpu.memory_space<vmem>>, %arg2: memref<768x128xbf16, #tpu.memory_space<vmem>>, %arg3: memref<128x128xbf16, #tpu.memory_space<vmem>>, %arg4: memref<1x128xf32, #tpu.memory_space<vmem>>, %arg5: memref<128x128xbf16, #tpu.memory_space<vmem>>, %arg6: memref<384x128xbf16, #tpu.memory_space<vmem>>) attributes {dimension_semantics = [#tpu.dimension_semantics<parallel>], iteration_bounds = array<i64: 2>, scalar_prefetch = 0 : i64, scratch_operands = 0 : i64, tpu.core_type = #tpu.core_type<tc>, window_params = [{transform_indices = @transform_0, window_bounds = array<i64: 384, 768>}, {pipeline_mode = #tpu.pipeline_mode<synchronous>, transform_indices = @transform_1, window_bounds = array<i64: 768, 128>}, {pipeline_mode = #tpu.pipeline_mode<synchronous>, transform_indices = @transform_2, window_bounds = array<i64: 128, 128>}, {pipeline_mode = #tpu.pipeline_mode<synchronous>, transform_indices = @transform_3, window_bounds = array<i64: 1, 128>}, {pipeline_mode = #tpu.pipeline_mode<synchronous>, transform_indices = @transform_4, window_bounds = array<i64: 128, 128>}, {transform_indices = @transform_5, window_bounds = array<i64: 384, 128>}]} {
    %c0 = arith.constant 0 : index
    %c0_0 = arith.constant 0 : index
    %0 = vector.load %arg2[%c0, %c0_0] : memref<768x128xbf16, #tpu.memory_space<vmem>>, vector<768x128xbf16>
    %c0_1 = arith.constant 0 : index
    %c0_2 = arith.constant 0 : index
    %1 = vector.load %arg3[%c0_1, %c0_2] : memref<128x128xbf16, #tpu.memory_space<vmem>>, vector<128x128xbf16>
    %cst = arith.constant dense<0.000000e+00> : vector<768x128xf32>
    %2 = tpu.matmul %0, %1, %cst {dimension_numbers = #tpu.dot_dimension_numbers<[1], [0], [0], [1], [0, 0, 1, 1], [], []>} : vector<768x128xbf16>, vector<128x128xbf16>, vector<768x128xf32> -> vector<768x128xf32>
    %3 = arith.truncf %2 : vector<768x128xf32> to vector<768x128xbf16>
    %c0_3 = arith.constant 0 : index
    %c0_4 = arith.constant 0 : index
    %4 = vector.load %arg1[%c0_3, %c0_4] : memref<384x768xbf16, #tpu.memory_space<vmem>>, vector<384x768xbf16>
    %cst_5 = arith.constant dense<0.000000e+00> : vector<384x128xf32>
    %5 = tpu.matmul %4, %3, %cst_5 {dimension_numbers = #tpu.dot_dimension_numbers<[1], [0], [0], [1], [0, 0, 1, 1], [], []>} : vector<384x768xbf16>, vector<768x128xbf16>, vector<384x128xf32> -> vector<384x128xf32>
    %c0_6 = arith.constant 0 : index
    %c0_7 = arith.constant 0 : index
    %6 = vector.load %arg4[%c0_6, %c0_7] : memref<1x128xf32, #tpu.memory_space<vmem>>, vector<1x128xf32>
    %7 = vector.broadcast %6 : vector<1x128xf32> to vector<384x128xf32>
    %8 = arith.addf %5, %7 : vector<384x128xf32>
    %cst_8 = arith.constant 0.000000e+00 : f32
    %9 = vector.broadcast %cst_8 : f32 to vector<384x128xf32>
    %10 = arith.cmpf ogt, %8, %9 : vector<384x128xf32>
    %cst_9 = arith.constant 0.000000e+00 : f32
    %11 = vector.broadcast %cst_9 : f32 to vector<384x128xf32>
    %12 = arith.minimumf %8, %11 : vector<384x128xf32>
    %13 = math.exp %12 : vector<384x128xf32>
    %cst_10 = arith.constant 1.000000e+00 : f32
    %14 = vector.broadcast %cst_10 : f32 to vector<384x128xf32>
    %15 = arith.subf %13, %14 : vector<384x128xf32>
    %16 = arith.select %10, %8, %15 : vector<384x128xi1>, vector<384x128xf32>
    %17 = arith.truncf %16 : vector<384x128xf32> to vector<384x128xbf16>
    %c0_11 = arith.constant 0 : index
    %c0_12 = arith.constant 0 : index
    %18 = vector.load %arg5[%c0_11, %c0_12] : memref<128x128xbf16, #tpu.memory_space<vmem>>, vector<128x128xbf16>
    %cst_13 = arith.constant dense<0.000000e+00> : vector<384x128xf32>
    %19 = tpu.matmul %17, %18, %cst_13 {dimension_numbers = #tpu.dot_dimension_numbers<[1], [0], [0], [1], [0, 0, 1, 1], [], []>} : vector<384x128xbf16>, vector<128x128xbf16>, vector<384x128xf32> -> vector<384x128xf32>
    %20 = arith.truncf %19 : vector<384x128xf32> to vector<384x128xbf16>
    %c0_14 = arith.constant 0 : index
    %c0_15 = arith.constant 0 : index
    %21 = vector.load %arg6[%c0_14, %c0_15] : memref<384x128xbf16, #tpu.memory_space<vmem>>, vector<384x128xbf16>
    tpu.vector_store %arg6[%c0_14, %c0_15], %20 {strides = array<i32>} : memref<384x128xbf16, #tpu.memory_space<vmem>>, vector<384x128xbf16>,
    return
  }
  func.func @transform_0(%arg0: i32) -> (i32, i32) {
    %c0_i32 = arith.constant 0 : i32
    %c0_i32_0 = arith.constant 0 : i32
    return %arg0, %c0_i32 : i32, i32
  }
  func.func @transform_1(%arg0: i32) -> (i32, i32) {
    %c0_i32 = arith.constant 0 : i32
    %c0_i32_0 = arith.constant 0 : i32
    %c0_i32_1 = arith.constant 0 : i32
    return %c0_i32, %c0_i32_0 : i32, i32
  }
  func.func @transform_2(%arg0: i32) -> (i32, i32) {
    %c0_i32 = arith.constant 0 : i32
    %c0_i32_0 = arith.constant 0 : i32
    %c0_i32_1 = arith.constant 0 : i32
    return %c0_i32, %c0_i32_0 : i32, i32
  }
  func.func @transform_3(%arg0: i32) -> (i32, i32) {
    %c0_i32 = arith.constant 0 : i32
    %c0_i32_0 = arith.constant 0 : i32
    %c0_i32_1 = arith.constant 0 : i32
    return %c0_i32, %c0_i32_0 : i32, i32
  }
  func.func @transform_4(%arg0: i32) -> (i32, i32) {
    %c0_i32 = arith.constant 0 : i32
    %c0_i32_0 = arith.constant 0 : i32
    %c0_i32_1 = arith.constant 0 : i32
    return %c0_i32, %c0_i32_0 : i32, i32
  }
  func.func @transform_5(%arg0: i32) -> (i32, i32) {
    %c0_i32 = arith.constant 0 : i32
    %c0_i32_0 = arith.constant 0 : i32
    return %arg0, %c0_i32 : i32, i32
  }
}

</mosaic_0001>

<llo_original>
// kernel: gcn_forward_padded.3
$region0: #{gcn_forward_padded.3}
  #allocation0 [shape = 'u32[]', space=smem, size = 0x4, offset = 0x4, fixed_abs, tag = 'smem constant byte address 0x4 - core index']
  #allocation1 [shape = 'u32[144,128]{1,0:T(1,128)}', space=vmem, size = 0x12000, scoped, tag = 'internal scratch']
  %s0 = inlined_call_operand.vmem [shape: bf16[768,768], index: 0, kind: input, shape index: {}]
  %s1 = inlined_call_operand.vmem [shape: bf16[768,128], index: 1, kind: input, shape index: {}]
  %s2 = inlined_call_operand.vmem [shape: f32[1,128], index: 2, kind: input, shape index: {}]
  %s3 = inlined_call_operand.vmem [shape: bf16[128,128], index: 3, kind: input, shape index: {}]
  %s4 = inlined_call_operand.vmem [shape: f32[1,128], index: 4, kind: input, shape index: {}]
  %s5 = inlined_call_operand.vmem [shape: f32[768,128], index: 5, kind: output, shape index: {}]
  %s6 = sld [smem:[#allocation0]]
  $region53: #{gcn_forward_padded.3} parent=0
    _
  %s8 = ssub.s32 1, %s6
  %s9 = scalar_select 0, %s8, %s6
  loop: start=0, step=1, limit=4
  $region2: #{gcn_forward_padded.3} parent=0 // loop_pre_header
    _
  $region3: #{gcn_forward_padded.3} parent=0 // loop_header
    %s11 = sphi 0, %s15
    %p12 = scmp.ge.s32.totalorder %s11, 4
    %s21 = sphi 0, %s23
    %s24 = sphi 0, %s21
    %s25 = sphi 0, %s24
    %s41 = sphi 0, %s25
    %s45 = sphi 0, %s45
    %s47 = sphi 0, %s45
    %s48 = sphi 0, %s47
    %s62 = sphi 0, %s48
    %s66 = sphi 0, %s66
    %s68 = sphi 0, %s66
    %s69 = sphi 0, %s68
    %s83 = sphi 0, %s69
    %s87 = sphi 0, %s87
    %s89 = sphi 0, %s87
    %s90 = sphi 0, %s89
    %s104 = sphi 0, %s90
    %s108 = sphi 0, %s108
    %s110 = sphi 0, %s108
    %s111 = sphi 0, %s110
    %s125 = sphi 0, %s111
    %s131 = sphi 0, %s133
    %s134 = sphi 0, %s131
    %s135 = sphi 0, %s134
    %s151 = sphi 0, %s135
  $region4: #{gcn_forward_padded.3} parent=0 // loop_header_branch
    %14 = sbr.rel (%p12) target = $region8
  $region5: #{gcn_forward_padded.3} parent=0 // loop_body
    %s16 = ssub.s32 %s11, 1
    %s17 = ssub.s32 %s11, 2
    %s18 = sadd.s32 %s11, 1
    %s19 = ssub.s32 %s11, %s18
    %p20 = scmp.eq.s32.totalorder %s19, 0
    %s22 = sadd.s32 %s21, 1
    %s23 = scalar_select %p20, %s21, %s22
    %p26 = pneg %p20
    %p27 = scmp.eq.s32.totalorder %s11, 1
    %p28 = por %p26, %p27
    %p29 = scmp.ne.s32.totalorder %s21, %s24
    %p30 = scmp.eq.s32.totalorder %s11, 0
    %p31 = por %p29, %p30
    %p32 = scmp.ne.s32.totalorder %s21, %s24
    %p33 = scmp.eq.s32.totalorder %s16, 1
    %p34 = por %p32, %p33
    %p35 = scmp.ne.s32.totalorder %s24, %s25
    %p36 = scmp.eq.s32.totalorder %s16, 0
    %p37 = por %p35, %p36
    %p38 = scmp.ne.s32.totalorder %s24, %s25
    %p39 = scmp.eq.s32.totalorder %s17, 1
    %p40 = por %p38, %p39
    %p42 = scmp.ne.s32.totalorder %s25, %s41
    %p43 = scmp.eq.s32.totalorder %s17, 0
    %p44 = por %p42, %p43
    %s46 = sadd.s32 %s45, 1
    %p49 = scmp.eq.s32.totalorder %s11, 1
    %p50 = scmp.ne.s32.totalorder %s45, %s47
    %p51 = scmp.eq.s32.totalorder %s11, 0
    %p52 = por %p50, %p51
    %p53 = scmp.ne.s32.totalorder %s45, %s47
    %p54 = scmp.eq.s32.totalorder %s16, 1
    %p55 = por %p53, %p54
    %p56 = scmp.ne.s32.totalorder %s47, %s48
    %p57 = scmp.eq.s32.totalorder %s16, 0
    %p58 = por %p56, %p57
    %p59 = scmp.ne.s32.totalorder %s47, %s48
    %p60 = scmp.eq.s32.totalorder %s17, 1
    %p61 = por %p59, %p60
    %p63 = scmp.ne.s32.totalorder %s48, %s62
    %p64 = scmp.eq.s32.totalorder %s17, 0
    %p65 = por %p63, %p64
    %s67 = sadd.s32 %s66, 1
    %p70 = scmp.eq.s32.totalorder %s11, 1
    %p71 = scmp.ne.s32.totalorder %s66, %s68
    %p72 = scmp.eq.s32.totalorder %s11, 0
    %p73 = por %p71, %p72
    %p74 = scmp.ne.s32.totalorder %s66, %s68
    %p75 = scmp.eq.s32.totalorder %s16, 1
    %p76 = por %p74, %p75
    %p77 = scmp.ne.s32.totalorder %s68, %s69
    %p78 = scmp.eq.s32.totalorder %s16, 0
    %p79 = por %p77, %p78
    %p80 = scmp.ne.s32.totalorder %s68, %s69
    %p81 = scmp.eq.s32.totalorder %s17, 1
    %p82 = por %p80, %p81
    %p84 = scmp.ne.s32.totalorder %s69, %s83
    %p85 = scmp.eq.s32.totalorder %s17, 0
    %p86 = por %p84, %p85
    %s88 = sadd.s32 %s87, 1
    %p91 = scmp.eq.s32.totalorder %s11, 1
    %p92 = scmp.ne.s32.totalorder %s87, %s89
    %p93 = scmp.eq.s32.totalorder %s11, 0
    %p94 = por %p92, %p93
    %p95 = scmp.ne.s32.totalorder %s87, %s89
    %p96 = scmp.eq.s32.totalorder %s16, 1
    %p97 = por %p95, %p96
    %p98 = scmp.ne.s32.totalorder %s89, %s90
    %p99 = scmp.eq.s32.totalorder %s16, 0
    %p100 = por %p98, %p99
    %p101 = scmp.ne.s32.totalorder %s89, %s90
    %p102 = scmp.eq.s32.totalorder %s17, 1
    %p103 = por %p101, %p102
    %p105 = scmp.ne.s32.totalorder %s90, %s104
    %p106 = scmp.eq.s32.totalorder %s17, 0
    %p107 = por %p105, %p106
    %s109 = sadd.s32 %s108, 1
    %p112 = scmp.eq.s32.totalorder %s11, 1
    %p113 = scmp.ne.s32.totalorder %s108, %s110
    %p114 = scmp.eq.s32.totalorder %s11, 0
    %p115 = por %p113, %p114
    %p116 = scmp.ne.s32.totalorder %s108, %s110
    %p117 = scmp.eq.s32.totalorder %s16, 1
    %p118 = por %p116, %p117
    %p119 = scmp.ne.s32.totalorder %s110, %s111
    %p120 = scmp.eq.s32.totalorder %s16, 0
    %p121 = por %p119, %p120
    %p122 = scmp.ne.s32.totalorder %s110, %s111
    %p123 = scmp.eq.s32.totalorder %s17, 1
    %p124 = por %p122, %p123
    %p126 = scmp.ne.s32.totalorder %s111, %s125
    %p127 = scmp.eq.s32.totalorder %s17, 0
    %p128 = por %p126, %p127
    %s129 = ssub.s32 %s11, %s18
    %p130 = scmp.eq.s32.totalorder %s129, 0
    %s132 = sadd.s32 %s131, 1
    %s133 = scalar_select %p130, %s131, %s132
    %p136 = pneg %p130
    %p137 = scmp.eq.s32.totalorder %s11, 1
    %p138 = por %p136, %p137
    %p139 = scmp.ne.s32.totalorder %s131, %s134
    %p140 = scmp.eq.s32.totalorder %s11, 0
    %p141 = por %p139, %p140
    %p142 = scmp.ne.s32.totalorder %s131, %s134
    %p143 = scmp.eq.s32.totalorder %s16, 1
    %p144 = por %p142, %p143
    %p145 = scmp.ne.s32.totalorder %s134, %s135
    %p146 = scmp.eq.s32.totalorder %s16, 0
    %p147 = por %p145, %p146
    %p148 = scmp.ne.s32.totalorder %s134, %s135
    %p149 = scmp.eq.s32.totalorder %s17, 1
    %p150 = por %p148, %p149
    %p152 = scmp.ne.s32.totalorder %s135, %s151
    %p153 = scmp.eq.s32.totalorder %s17, 0
    %p154 = por %p152, %p153
    %p155 = scmp.le.s32.totalorder 1, %s11
    %p156 = scmp.lt.s32.totalorder %s11, 3
    %p157 = pnand %p155, %p156
    %p158 = pneg %p157
    // Predicated region
    $region9: #{gcn_forward_padded.3} parent=5 // pred_check
      _
    $region10: #{gcn_forward_padded.3} parent=5 // pred_check_branch
      %160 = sbr.rel (%p157) target = $region12
    $region11: #{gcn_forward_padded.3} parent=5 // pred_region
      %s161 = ssub.s32 %s11, 1
      // Predicated region
      $region13: #{gcn_forward_padded.3} parent=11 // pred_check
        %p162 = pneg %p58
      $region14: #{gcn_forward_padded.3} parent=11 // pred_check_branch
        %164 = sbr.rel (%p162) target = $region16
      $region15: #{gcn_forward_padded.3} parent=11 // pred_region
        _
      $region16: #{gcn_forward_padded.3} parent=11 // pred_fallthru
        _
      // Predicated region
      $region17: #{gcn_forward_padded.3} parent=11 // pred_check
        %p165 = pneg %p79
      $region18: #{gcn_forward_padded.3} parent=11 // pred_check_branch
        %167 = sbr.rel (%p165) target = $region20
      $region19: #{gcn_forward_padded.3} parent=11 // pred_region
        _
      $region20: #{gcn_forward_padded.3} parent=11 // pred_fallthru
        _
      // Predicated region
      $region21: #{gcn_forward_padded.3} parent=11 // pred_check
        %p168 = pneg %p100
      $region22: #{gcn_forward_padded.3} parent=11 // pred_check_branch
        %170 = sbr.rel (%p168) target = $region24
      $region23: #{gcn_forward_padded.3} parent=11 // pred_region
        _
      $region24: #{gcn_forward_padded.3} parent=11 // pred_fallthru
        _
      // Predicated region
      $region25: #{gcn_forward_padded.3} parent=11 // pred_check
        %p171 = pneg %p121
      $region26: #{gcn_forward_padded.3} parent=11 // pred_check_branch
        %173 = sbr.rel (%p171) target = $region28
      $region27: #{gcn_forward_padded.3} parent=11 // pred_region
        _
      $region28: #{gcn_forward_padded.3} parent=11 // pred_fallthru
        _
    $region12: #{gcn_forward_padded.3} parent=5 // pred_fallthru
      _
    %p174 = scmp.lt.s32.totalorder %s11, 2
    // Predicated region
    $region29: #{gcn_forward_padded.3} parent=5 // pred_check
      %p175 = pneg %p174
    $region30: #{gcn_forward_padded.3} parent=5 // pred_check_branch
      %177 = sbr.rel (%p175) target = $region32
    $region31: #{gcn_forward_padded.3} parent=5 // pred_region
      // Predicated region
      $region33: #{gcn_forward_padded.3} parent=31 // pred_check
        %p178 = pneg %p31
      $region34: #{gcn_forward_padded.3} parent=31 // pred_check_branch
        %180 = sbr.rel (%p178) target = $region36
      $region35: #{gcn_forward_padded.3} parent=31 // pred_region
        %s181 = smul.u32 48, %s11
        %p182 = scmp.lt.s32.totalorder %s181, 95
        %s183 = scalar_select %p182, %s181, 95
        %s184 = smul.addr %s183, 6
        %s185 = smul.addr %s184, 4
        %s186 = scalar_lea.vmem %s0, %s185
        %s187 = smul.u32 48, %s11
      $region36: #{gcn_forward_padded.3} parent=31 // pred_fallthru
        _
    $region32: #{gcn_forward_padded.3} parent=5 // pred_fallthru
      _
    %p188 = scmp.le.s32.totalorder 1, %s11
    %p189 = scmp.lt.s32.totalorder %s11, 3
    %p190 = pnand %p188, %p189
    %p191 = pneg %p190
    // Predicated region
    $region37: #{gcn_forward_padded.3} parent=5 // pred_check
      _
    $region38: #{gcn_forward_padded.3} parent=5 // pred_check_branch
      %193 = sbr.rel (%p190) target = $region40
    $region39: #{gcn_forward_padded.3} parent=5 // pred_region
      %s194 = ssub.s32 %s11, 1
      %s195 = smul.u32 48, %s16
      %p196 = scmp.lt.s32.totalorder %s195, 95
      %s197 = scalar_select %p196, %s195, 95
      %s198 = smul.addr %s197, 6
      %s199 = smul.addr %s198, 4
      %s200 = scalar_lea.vmem %s0, %s199
      %p201 = pneg %p37
      %p202 = pneg %p34
      %p203 = pneg %p58
      %p204 = pneg %p55
      %p205 = pneg %p79
      %p206 = pneg %p76
      %p207 = pneg %p100
      %p208 = pneg %p97
      %p209 = pneg %p121
      %p210 = pneg %p118
      %p211 = pneg %p147
      %p212 = pneg %p144
      %s213 = smul.u32 48, %s16
      %p214 = scmp.lt.s32.totalorder %s213, 95
      %s215 = scalar_select %p214, %s213, 95
      %s216 = smul.addr %s215, 8
      %s217 = scalar_lea.vmem %s5, %s216
      %s218 = smul.u32 48, %s16
      %p219 = scmp.lt.s32.totalorder %s218, 95
      %s220 = scalar_select %p219, %s218, 95
      %s221 = smul.addr %s220, 6
      %s222 = smul.addr %s221, 4
      %s223 = scalar_lea.vmem %s0, %s222
      %s224 = smul.u32 48, %s16
      %s225 = smul.u32 48, %s16
      %p226 = scmp.lt.s32.totalorder %s225, 95
      %s227 = scalar_select %p226, %s225, 95
      %s228 = smul.addr %s227, 8
      %s229 = scalar_lea.vmem %s5, %s228
      %s230 = smul.u32 48, %s16
      %v232 = vld [vmem:[%s223] sm:$0xff]
      %v233 = vld [vmem:[%s223 + $0x8] sm:$0xff]
      %v234 = vld [vmem:[%s223 + $0x10] sm:$0xff]
      %v235 = vld [vmem:[%s223 + $0x18] sm:$0xff]
      %v236 = vld [vmem:[%s223 + $0x20] sm:$0xff]
      %v237 = vld [vmem:[%s223 + $0x28] sm:$0xff]
      %v238 = vld [vmem:[%s223 + $0x30] sm:$0xff]
      %v239 = vld [vmem:[%s223 + $0x38] sm:$0xff]
      %v240 = vld [vmem:[%s223 + $0x40] sm:$0xff]
      %v241 = vld [vmem:[%s223 + $0x48] sm:$0xff]
      %v242 = vld [vmem:[%s223 + $0x50] sm:$0xff]
      %v243 = vld [vmem:[%s223 + $0x58] sm:$0xff]
      %v244 = vld [vmem:[%s223 + $0x60] sm:$0xff]
      %v245 = vld [vmem:[%s223 + $0x68] sm:$0xff]
      %v246 = vld [vmem:[%s223 + $0x70] sm:$0xff]
      %v247 = vld [vmem:[%s223 + $0x78] sm:$0xff]
      %v248 = vld [vmem:[%s223 + $0x80] sm:$0xff]
      %v249 = vld [vmem:[%s223 + $0x88] sm:$0xff]
      %v250 = vld [vmem:[%s223 + $0x90] sm:$0xff]
      %v251 = vld [vmem:[%s223 + $0x98] sm:$0xff]
      %v252 = vld [vmem:[%s223 + $0xa0] sm:$0xff]
      %v253 = vld [vmem:[%s223 + $0xa8] sm:$0xff]
      %v254 = vld [vmem:[%s223 + $0xb0] sm:$0xff]
      %v255 = vld [vmem:[%s223 + $0xb8] sm:$0xff]
      %v256 = vld [vmem:[%s223 + $0xc0] sm:$0xff]
      %v257 = vld [vmem:[%s223 + $0xc8] sm:$0xff]
      %v258 = vld [vmem:[%s223 + $0xd0] sm:$0xff]
      %v259 = vld [vmem:[%s223 + $0xd8] sm:$0xff]
      %v260 = vld [vmem:[%s223 + $0xe0] sm:$0xff]
      %v261 = vld [vmem:[%s223 + $0xe8] sm:$0xff]
      %v262 = vld [vmem:[%s223 + $0xf0] sm:$0xff]
      %v263 = vld [vmem:[%s223 + $0xf8] sm:$0xff]
      %v264 = vld [vmem:[%s223 + $0x100] sm:$0xff]
      %v265 = vld [vmem:[%s223 + $0x108] sm:$0xff]
      %v266 = vld [vmem:[%s223 + $0x110] sm:$0xff]
      %v267 = vld [vmem:[%s223 + $0x118] sm:$0xff]
      %v268 = vld [vmem:[%s223 + $0x120] sm:$0xff]
      %v269 = vld [vmem:[%s223 + $0x128] sm:$0xff]
      %v270 = vld [vmem:[%s223 + $0x130] sm:$0xff]
      %v271 = vld [vmem:[%s223 + $0x138] sm:$0xff]
      %v272 = vld [vmem:[%s223 + $0x140] sm:$0xff]
      %v273 = vld [vmem:[%s223 + $0x148] sm:$0xff]
      %v274 = vld [vmem:[%s223 + $0x150] sm:$0xff]
      %v275 = vld [vmem:[%s223 + $0x158] sm:$0xff]
      %v276 = vld [vmem:[%s223 + $0x160] sm:$0xff]
      %v277 = vld [vmem:[%s223 + $0x168] sm:$0xff]
      %v278 = vld [vmem:[%s223 + $0x170] sm:$0xff]
      %v279 = vld [vmem:[%s223 + $0x178] sm:$0xff]
      %v280 = vld [vmem:[%s223 + $0x180] sm:$0xff]
      %v281 = vld [vmem:[%s223 + $0x188] sm:$0xff]
      %v282 = vld [vmem:[%s223 + $0x190] sm:$0xff]
      %v283 = vld [vmem:[%s223 + $0x198] sm:$0xff]
      %v284 = vld [vmem:[%s223 + $0x1a0] sm:$0xff]
      %v285 = vld [vmem:[%s223 + $0x1a8] sm:$0xff]
      %v286 = vld [vmem:[%s223 + $0x1b0] sm:$0xff]
      %v287 = vld [vmem:[%s223 + $0x1b8] sm:$0xff]
      %v288 = vld [vmem:[%s223 + $0x1c0] sm:$0xff]
      %v289 = vld [vmem:[%s223 + $0x1c8] sm:$0xff]
      %v290 = vld [vmem:[%s223 + $0x1d0] sm:$0xff]
      %v291 = vld [vmem:[%s223 + $0x1d8] sm:$0xff]
      %v292 = vld [vmem:[%s223 + $0x1e0] sm:$0xff]
      %v293 = vld [vmem:[%s223 + $0x1e8] sm:$0xff]
      %v294 = vld [vmem:[%s223 + $0x1f0] sm:$0xff]
      %v295 = vld [vmem:[%s223 + $0x1f8] sm:$0xff]
      %v296 = vld [vmem:[%s223 + $0x200] sm:$0xff]
      %v297 = vld [vmem:[%s223 + $0x208] sm:$0xff]
      %v298 = vld [vmem:[%s223 + $0x210] sm:$0xff]
      %v299 = vld [vmem:[%s223 + $0x218] sm:$0xff]
      %v300 = vld [vmem:[%s223 + $0x220] sm:$0xff]
      %v301 = vld [vmem:[%s223 + $0x228] sm:$0xff]
      %v302 = vld [vmem:[%s223 + $0x230] sm:$0xff]
      %v303 = vld [vmem:[%s223 + $0x238] sm:$0xff]
      %v304 = vld [vmem:[%s223 + $0x240] sm:$0xff]
      %v305 = vld [vmem:[%s223 + $0x248] sm:$0xff]
      %v306 = vld [vmem:[%s223 + $0x250] sm:$0xff]
      %v307 = vld [vmem:[%s223 + $0x258] sm:$0xff]
      %v308 = vld [vmem:[%s223 + $0x260] sm:$0xff]
      %v309 = vld [vmem:[%s223 + $0x268] sm:$0xff]
      %v310 = vld [vmem:[%s223 + $0x270] sm:$0xff]
      %v311 = vld [vmem:[%s223 + $0x278] sm:$0xff]
      %v312 = vld [vmem:[%s223 + $0x280] sm:$0xff]
      %v313 = vld [vmem:[%s223 + $0x288] sm:$0xff]
      %v314 = vld [vmem:[%s223 + $0x290] sm:$0xff]
      %v315 = vld [vmem:[%s223 + $0x298] sm:$0xff]
      %v316 = vld [vmem:[%s223 + $0x2a0] sm:$0xff]
      %v317 = vld [vmem:[%s223 + $0x2a8] sm:$0xff]
      %v318 = vld [vmem:[%s223 + $0x2b0] sm:$0xff]
      %v319 = vld [vmem:[%s223 + $0x2b8] sm:$0xff]
      %v320 = vld [vmem:[%s223 + $0x2c0] sm:$0xff]
      %v321 = vld [vmem:[%s223 + $0x2c8] sm:$0xff]
      %v322 = vld [vmem:[%s223 + $0x2d0] sm:$0xff]
      %v323 = vld [vmem:[%s223 + $0x2d8] sm:$0xff]
      %v324 = vld [vmem:[%s223 + $0x2e0] sm:$0xff]
      %v325 = vld [vmem:[%s223 + $0x2e8] sm:$0xff]
      %v326 = vld [vmem:[%s223 + $0x2f0] sm:$0xff]
      %v327 = vld [vmem:[%s223 + $0x2f8] sm:$0xff]
      %v328 = vld [vmem:[%s223 + $0x300] sm:$0xff]
      %v329 = vld [vmem:[%s223 + $0x308] sm:$0xff]
      %v330 = vld [vmem:[%s223 + $0x310] sm:$0xff]
      %v331 = vld [vmem:[%s223 + $0x318] sm:$0xff]
      %v332 = vld [vmem:[%s223 + $0x320] sm:$0xff]
      %v333 = vld [vmem:[%s223 + $0x328] sm:$0xff]
      %v334 = vld [vmem:[%s223 + $0x330] sm:$0xff]
      %v335 = vld [vmem:[%s223 + $0x338] sm:$0xff]
      %v336 = vld [vmem:[%s223 + $0x340] sm:$0xff]
      %v337 = vld [vmem:[%s223 + $0x348] sm:$0xff]
      %v338 = vld [vmem:[%s223 + $0x350] sm:$0xff]
      %v339 = vld [vmem:[%s223 + $0x358] sm:$0xff]
      %v340 = vld [vmem:[%s223 + $0x360] sm:$0xff]
      %v341 = vld [vmem:[%s223 + $0x368] sm:$0xff]
      %v342 = vld [vmem:[%s223 + $0x370] sm:$0xff]
      %v343 = vld [vmem:[%s223 + $0x378] sm:$0xff]
      %v344 = vld [vmem:[%s223 + $0x380] sm:$0xff]
      %v345 = vld [vmem:[%s223 + $0x388] sm:$0xff]
      %v346 = vld [vmem:[%s223 + $0x390] sm:$0xff]
      %v347 = vld [vmem:[%s223 + $0x398] sm:$0xff]
      %v348 = vld [vmem:[%s223 + $0x3a0] sm:$0xff]
      %v349 = vld [vmem:[%s223 + $0x3a8] sm:$0xff]
      %v350 = vld [vmem:[%s223 + $0x3b0] sm:$0xff]
      %v351 = vld [vmem:[%s223 + $0x3b8] sm:$0xff]
      %v352 = vld [vmem:[%s223 + $0x3c0] sm:$0xff]
      %v353 = vld [vmem:[%s223 + $0x3c8] sm:$0xff]
      %v354 = vld [vmem:[%s223 + $0x3d0] sm:$0xff]
      %v355 = vld [vmem:[%s223 + $0x3d8] sm:$0xff]
      %v356 = vld [vmem:[%s223 + $0x3e0] sm:$0xff]
      %v357 = vld [vmem:[%s223 + $0x3e8] sm:$0xff]
      %v358 = vld [vmem:[%s223 + $0x3f0] sm:$0xff]
      %v359 = vld [vmem:[%s223 + $0x3f8] sm:$0xff]
      %v360 = vld [vmem:[%s223 + $0x400] sm:$0xff]
      %v361 = vld [vmem:[%s223 + $0x408] sm:$0xff]
      %v362 = vld [vmem:[%s223 + $0x410] sm:$0xff]
      %v363 = vld [vmem:[%s223 + $0x418] sm:$0xff]
      %v364 = vld [vmem:[%s223 + $0x420] sm:$0xff]
      %v365 = vld [vmem:[%s223 + $0x428] sm:$0xff]
      %v366 = vld [vmem:[%s223 + $0x430] sm:$0xff]
      %v367 = vld [vmem:[%s223 + $0x438] sm:$0xff]
      %v368 = vld [vmem:[%s223 + $0x440] sm:$0xff]
      %v369 = vld [vmem:[%s223 + $0x448] sm:$0xff]
      %v370 = vld [vmem:[%s223 + $0x450] sm:$0xff]
      %v371 = vld [vmem:[%s223 + $0x458] sm:$0xff]
      %v372 = vld [vmem:[%s223 + $0x460] sm:$0xff]
      %v373 = vld [vmem:[%s223 + $0x468] sm:$0xff]
      %v374 = vld [vmem:[%s223 + $0x470] sm:$0xff]
      %v375 = vld [vmem:[%s223 + $0x478] sm:$0xff]
      %v376 = vld [vmem:[%s1] sm:$0xf]
      %v377 = vld [vmem:[%s1 + $0x4] sm:$0xf]
      %v378 = vld [vmem:[%s1 + $0x8] sm:$0xf]
      %v379 = vld [vmem:[%s1 + $0xc] sm:$0xf]
      %v380 = vld [vmem:[%s1 + $0x10] sm:$0xf]
      %v381 = vld [vmem:[%s1 + $0x14] sm:$0xf]
      %v382 = vld [vmem:[%s1 + $0x18] sm:$0xf]
      %v383 = vld [vmem:[%s1 + $0x1c] sm:$0xf]
      %v384 = vld [vmem:[%s1 + $0x20] sm:$0xf]
      %v385 = vld [vmem:[%s1 + $0x24] sm:$0xf]
      %v386 = vld [vmem:[%s1 + $0x28] sm:$0xf]
      %v387 = vld [vmem:[%s1 + $0x2c] sm:$0xf]
      %v388 = vld [vmem:[%s1 + $0x30] sm:$0xf]
      %v389 = vld [vmem:[%s1 + $0x34] sm:$0xf]
      %v390 = vld [vmem:[%s1 + $0x38] sm:$0xf]
      %v391 = vld [vmem:[%s1 + $0x3c] sm:$0xf]
      %v392 = vld [vmem:[%s1 + $0x40] sm:$0xf]
      %v393 = vld [vmem:[%s1 + $0x44] sm:$0xf]
      %v394 = vld [vmem:[%s1 + $0x48] sm:$0xf]
      %v395 = vld [vmem:[%s1 + $0x4c] sm:$0xf]
      %v396 = vld [vmem:[%s1 + $0x50] sm:$0xf]
      %v397 = vld [vmem:[%s1 + $0x54] sm:$0xf]
      %v398 = vld [vmem:[%s1 + $0x58] sm:$0xf]
      %v399 = vld [vmem:[%s1 + $0x5c] sm:$0xf]
      %v400 = vld [vmem:[%s1 + $0x60] sm:$0xf]
      %v401 = vld [vmem:[%s1 + $0x64] sm:$0xf]
      %v402 = vld [vmem:[%s1 + $0x68] sm:$0xf]
      %v403 = vld [vmem:[%s1 + $0x6c] sm:$0xf]
      %v404 = vld [vmem:[%s1 + $0x70] sm:$0xf]
      %v405 = vld [vmem:[%s1 + $0x74] sm:$0xf]
      %v406 = vld [vmem:[%s1 + $0x78] sm:$0xf]
      %v407 = vld [vmem:[%s1 + $0x7c] sm:$0xf]
      %v408 = vld [vmem:[%s1 + $0x80] sm:$0xf]
      %v409 = vld [vmem:[%s1 + $0x84] sm:$0xf]
      %v410 = vld [vmem:[%s1 + $0x88] sm:$0xf]
      %v411 = vld [vmem:[%s1 + $0x8c] sm:$0xf]
      %v412 = vld [vmem:[%s1 + $0x90] sm:$0xf]
      %v413 = vld [vmem:[%s1 + $0x94] sm:$0xf]
      %v414 = vld [vmem:[%s1 + $0x98] sm:$0xf]
      %v415 = vld [vmem:[%s1 + $0x9c] sm:$0xf]
      %v416 = vld [vmem:[%s1 + $0xa0] sm:$0xf]
      %v417 = vld [vmem:[%s1 + $0xa4] sm:$0xf]
      %v418 = vld [vmem:[%s1 + $0xa8] sm:$0xf]
      %v419 = vld [vmem:[%s1 + $0xac] sm:$0xf]
      %v420 = vld [vmem:[%s1 + $0xb0] sm:$0xf]
      %v421 = vld [vmem:[%s1 + $0xb4] sm:$0xf]
      %v422 = vld [vmem:[%s1 + $0xb8] sm:$0xf]
      %v423 = vld [vmem:[%s1 + $0xbc] sm:$0xf]
      %v424 = vld [vmem:[%s1 + $0xc0] sm:$0xf]
      %v425 = vld [vmem:[%s1 + $0xc4] sm:$0xf]
      %v426 = vld [vmem:[%s1 + $0xc8] sm:$0xf]
      %v427 = vld [vmem:[%s1 + $0xcc] sm:$0xf]
      %v428 = vld [vmem:[%s1 + $0xd0] sm:$0xf]
      %v429 = vld [vmem:[%s1 + $0xd4] sm:$0xf]
      %v430 = vld [vmem:[%s1 + $0xd8] sm:$0xf]
      %v431 = vld [vmem:[%s1 + $0xdc] sm:$0xf]
      %v432 = vld [vmem:[%s1 + $0xe0] sm:$0xf]
      %v433 = vld [vmem:[%s1 + $0xe4] sm:$0xf]
      %v434 = vld [vmem:[%s1 + $0xe8] sm:$0xf]
      %v435 = vld [vmem:[%s1 + $0xec] sm:$0xf]
      %v436 = vld [vmem:[%s1 + $0xf0] sm:$0xf]
      %v437 = vld [vmem:[%s1 + $0xf4] sm:$0xf]
      %v438 = vld [vmem:[%s1 + $0xf8] sm:$0xf]
      %v439 = vld [vmem:[%s1 + $0xfc] sm:$0xf]
      %v440 = vld [vmem:[%s1 + $0x100] sm:$0xf]
      %v441 = vld [vmem:[%s1 + $0x104] sm:$0xf]
      %v442 = vld [vmem:[%s1 + $0x108] sm:$0xf]
      %v443 = vld [vmem:[%s1 + $0x10c] sm:$0xf]
      %v444 = vld [vmem:[%s1 + $0x110] sm:$0xf]
      %v445 = vld [vmem:[%s1 + $0x114] sm:$0xf]
      %v446 = vld [vmem:[%s1 + $0x118] sm:$0xf]
      %v447 = vld [vmem:[%s1 + $0x11c] sm:$0xf]
      %v448 = vld [vmem:[%s1 + $0x120] sm:$0xf]
      %v449 = vld [vmem:[%s1 + $0x124] sm:$0xf]
      %v450 = vld [vmem:[%s1 + $0x128] sm:$0xf]
      %v451 = vld [vmem:[%s1 + $0x12c] sm:$0xf]
      %v452 = vld [vmem:[%s1 + $0x130] sm:$0xf]
      %v453 = vld [vmem:[%s1 + $0x134] sm:$0xf]
      %v454 = vld [vmem:[%s1 + $0x138] sm:$0xf]
      %v455 = vld [vmem:[%s1 + $0x13c] sm:$0xf]
      %v456 = vld [vmem:[%s1 + $0x140] sm:$0xf]
      %v457 = vld [vmem:[%s1 + $0x144] sm:$0xf]
      %v458 = vld [vmem:[%s1 + $0x148] sm:$0xf]
      %v459 = vld [vmem:[%s1 + $0x14c] sm:$0xf]
      %v460 = vld [vmem:[%s1 + $0x150] sm:$0xf]
      %v461 = vld [vmem:[%s1 + $0x154] sm:$0xf]
      %v462 = vld [vmem:[%s1 + $0x158] sm:$0xf]
      %v463 = vld [vmem:[%s1 + $0x15c] sm:$0xf]
      %v464 = vld [vmem:[%s1 + $0x160] sm:$0xf]
      %v465 = vld [vmem:[%s1 + $0x164] sm:$0xf]
      %v466 = vld [vmem:[%s1 + $0x168] sm:$0xf]
      %v467 = vld [vmem:[%s1 + $0x16c] sm:$0xf]
      %v468 = vld [vmem:[%s1 + $0x170] sm:$0xf]
      %v469 = vld [vmem:[%s1 + $0x174] sm:$0xf]
      %v470 = vld [vmem:[%s1 + $0x178] sm:$0xf]
      %v471 = vld [vmem:[%s1 + $0x17c] sm:$0xf]
      %v472 = vld [vmem:[%s2] sm:$0x1]
      %v474 = vlaneseq
      %v475 = vshrl.u32 %v474, 7
      %v476 = vsub.s32 0, %v475
      %v477 = vrot.slane %v472, %v476
      %v623 = vunpack.c.l.b16 %v232
      %v624 = vunpack.c.h.b16 %v232
      %v625 = vunpack.c.l.b16 %v233
      %v626 = vunpack.c.h.b16 %v233
      %v627 = vunpack.c.l.b16 %v234
      %v628 = vunpack.c.h.b16 %v234
      %v629 = vunpack.c.l.b16 %v235
      %v630 = vunpack.c.h.b16 %v235
      %v631 = vunpack.c.l.b16 %v236
      %v632 = vunpack.c.h.b16 %v236
      %v633 = vunpack.c.l.b16 %v237
      %v634 = vunpack.c.h.b16 %v237
      %v635 = vunpack.c.l.b16 %v238
      %v636 = vunpack.c.h.b16 %v238
      %v637 = vunpack.c.l.b16 %v239
      %v638 = vunpack.c.h.b16 %v239
      %v639 = vunpack.c.l.b16 %v240
      %v640 = vunpack.c.h.b16 %v240
      %v641 = vunpack.c.l.b16 %v241
      %v642 = vunpack.c.h.b16 %v241
      %v643 = vunpack.c.l.b16 %v242
      %v644 = vunpack.c.h.b16 %v242
      %v645 = vunpack.c.l.b16 %v243
      %v646 = vunpack.c.h.b16 %v243
      %v647 = vunpack.c.l.b16 %v244
      %v648 = vunpack.c.h.b16 %v244
      %v649 = vunpack.c.l.b16 %v245
      %v650 = vunpack.c.h.b16 %v245
      %v651 = vunpack.c.l.b16 %v246
      %v652 = vunpack.c.h.b16 %v246
      %v653 = vunpack.c.l.b16 %v247
      %v654 = vunpack.c.h.b16 %v247
      %v655 = vunpack.c.l.b16 %v248
      %v656 = vunpack.c.h.b16 %v248
      %v657 = vunpack.c.l.b16 %v249
      %v658 = vunpack.c.h.b16 %v249
      %v659 = vunpack.c.l.b16 %v250
      %v660 = vunpack.c.h.b16 %v250
      %v661 = vunpack.c.l.b16 %v251
      %v662 = vunpack.c.h.b16 %v251
      %v663 = vunpack.c.l.b16 %v252
      %v664 = vunpack.c.h.b16 %v252
      %v665 = vunpack.c.l.b16 %v253
      %v666 = vunpack.c.h.b16 %v253
      %v667 = vunpack.c.l.b16 %v254
      %v668 = vunpack.c.h.b16 %v254
      %v669 = vunpack.c.l.b16 %v255
      %v670 = vunpack.c.h.b16 %v255
      %v671 = vunpack.c.l.b16 %v256
      %v672 = vunpack.c.h.b16 %v256
      %v673 = vunpack.c.l.b16 %v257
      %v674 = vunpack.c.h.b16 %v257
      %v675 = vunpack.c.l.b16 %v258
      %v676 = vunpack.c.h.b16 %v258
      %v677 = vunpack.c.l.b16 %v259
      %v678 = vunpack.c.h.b16 %v259
      %v679 = vunpack.c.l.b16 %v260
      %v680 = vunpack.c.h.b16 %v260
      %v681 = vunpack.c.l.b16 %v261
      %v682 = vunpack.c.h.b16 %v261
      %v683 = vunpack.c.l.b16 %v262
      %v684 = vunpack.c.h.b16 %v262
      %v685 = vunpack.c.l.b16 %v263
      %v686 = vunpack.c.h.b16 %v263
      %v687 = vunpack.c.l.b16 %v264
      %v688 = vunpack.c.h.b16 %v264
      %v689 = vunpack.c.l.b16 %v265
      %v690 = vunpack.c.h.b16 %v265
      %v691 = vunpack.c.l.b16 %v266
      %v692 = vunpack.c.h.b16 %v266
      %v693 = vunpack.c.l.b16 %v267
      %v694 = vunpack.c.h.b16 %v267
      %v695 = vunpack.c.l.b16 %v268
      %v696 = vunpack.c.h.b16 %v268
      %v697 = vunpack.c.l.b16 %v269
      %v698 = vunpack.c.h.b16 %v269
      %v699 = vunpack.c.l.b16 %v270
      %v700 = vunpack.c.h.b16 %v270
      %v701 = vunpack.c.l.b16 %v271
      %v702 = vunpack.c.h.b16 %v271
      %v703 = vunpack.c.l.b16 %v272
      %v704 = vunpack.c.h.b16 %v272
      %v705 = vunpack.c.l.b16 %v273
      %v706 = vunpack.c.h.b16 %v273
      %v707 = vunpack.c.l.b16 %v274
      %v708 = vunpack.c.h.b16 %v274
      %v709 = vunpack.c.l.b16 %v275
      %v710 = vunpack.c.h.b16 %v275
      %v711 = vunpack.c.l.b16 %v276
      %v712 = vunpack.c.h.b16 %v276
      %v713 = vunpack.c.l.b16 %v277
      %v714 = vunpack.c.h.b16 %v277
      %v715 = vunpack.c.l.b16 %v278
      %v716 = vunpack.c.h.b16 %v278
      %v717 = vunpack.c.l.b16 %v279
      %v718 = vunpack.c.h.b16 %v279
      %v719 = vunpack.c.l.b16 %v280
      %v720 = vunpack.c.h.b16 %v280
      %v721 = vunpack.c.l.b16 %v281
      %v722 = vunpack.c.h.b16 %v281
      %v723 = vunpack.c.l.b16 %v282
      %v724 = vunpack.c.h.b16 %v282
      %v725 = vunpack.c.l.b16 %v283
      %v726 = vunpack.c.h.b16 %v283
      %v727 = vunpack.c.l.b16 %v284
      %v728 = vunpack.c.h.b16 %v284
      %v729 = vunpack.c.l.b16 %v285
      %v730 = vunpack.c.h.b16 %v285
      %v731 = vunpack.c.l.b16 %v286
      %v732 = vunpack.c.h.b16 %v286
      %v733 = vunpack.c.l.b16 %v287
      %v734 = vunpack.c.h.b16 %v287
      %v735 = vunpack.c.l.b16 %v288
      %v736 = vunpack.c.h.b16 %v288
      %v737 = vunpack.c.l.b16 %v289
      %v738 = vunpack.c.h.b16 %v289
      %v739 = vunpack.c.l.b16 %v290
      %v740 = vunpack.c.h.b16 %v290
      %v741 = vunpack.c.l.b16 %v291
      %v742 = vunpack.c.h.b16 %v291
      %v743 = vunpack.c.l.b16 %v292
      %v744 = vunpack.c.h.b16 %v292
      %v745 = vunpack.c.l.b16 %v293
      %v746 = vunpack.c.h.b16 %v293
      %v747 = vunpack.c.l.b16 %v294
      %v748 = vunpack.c.h.b16 %v294
      %v749 = vunpack.c.l.b16 %v295
      %v750 = vunpack.c.h.b16 %v295
      %v751 = vunpack.c.l.b16 %v296
      %v752 = vunpack.c.h.b16 %v296
      %v753 = vunpack.c.l.b16 %v297
      %v754 = vunpack.c.h.b16 %v297
      %v755 = vunpack.c.l.b16 %v298
      %v756 = vunpack.c.h.b16 %v298
      %v757 = vunpack.c.l.b16 %v299
      %v758 = vunpack.c.h.b16 %v299
      %v759 = vunpack.c.l.b16 %v300
      %v760 = vunpack.c.h.b16 %v300
      %v761 = vunpack.c.l.b16 %v301
      %v762 = vunpack.c.h.b16 %v301
      %v763 = vunpack.c.l.b16 %v302
      %v764 = vunpack.c.h.b16 %v302
      %v765 = vunpack.c.l.b16 %v303
      %v766 = vunpack.c.h.b16 %v303
      %v767 = vunpack.c.l.b16 %v304
      %v768 = vunpack.c.h.b16 %v304
      %v769 = vunpack.c.l.b16 %v305
      %v770 = vunpack.c.h.b16 %v305
      %v771 = vunpack.c.l.b16 %v306
      %v772 = vunpack.c.h.b16 %v306
      %v773 = vunpack.c.l.b16 %v307
      %v774 = vunpack.c.h.b16 %v307
      %v775 = vunpack.c.l.b16 %v308
      %v776 = vunpack.c.h.b16 %v308
      %v777 = vunpack.c.l.b16 %v309
      %v778 = vunpack.c.h.b16 %v309
      %v779 = vunpack.c.l.b16 %v310
      %v780 = vunpack.c.h.b16 %v310
      %v781 = vunpack.c.l.b16 %v311
      %v782 = vunpack.c.h.b16 %v311
      %v783 = vunpack.c.l.b16 %v312
      %v784 = vunpack.c.h.b16 %v312
      %v785 = vunpack.c.l.b16 %v313
      %v786 = vunpack.c.h.b16 %v313
      %v787 = vunpack.c.l.b16 %v314
      %v788 = vunpack.c.h.b16 %v314
      %v789 = vunpack.c.l.b16 %v315
      %v790 = vunpack.c.h.b16 %v315
      %v791 = vunpack.c.l.b16 %v316
      %v792 = vunpack.c.h.b16 %v316
      %v793 = vunpack.c.l.b16 %v317
      %v794 = vunpack.c.h.b16 %v317
      %v795 = vunpack.c.l.b16 %v318
      %v796 = vunpack.c.h.b16 %v318
      %v797 = vunpack.c.l.b16 %v319
      %v798 = vunpack.c.h.b16 %v319
      %v799 = vunpack.c.l.b16 %v320
      %v800 = vunpack.c.h.b16 %v320
      %v801 = vunpack.c.l.b16 %v321
      %v802 = vunpack.c.h.b16 %v321
      %v803 = vunpack.c.l.b16 %v322
      %v804 = vunpack.c.h.b16 %v322
      %v805 = vunpack.c.l.b16 %v323
      %v806 = vunpack.c.h.b16 %v323
      %v807 = vunpack.c.l.b16 %v324
      %v808 = vunpack.c.h.b16 %v324
      %v809 = vunpack.c.l.b16 %v325
      %v810 = vunpack.c.h.b16 %v325
      %v811 = vunpack.c.l.b16 %v326
      %v812 = vunpack.c.h.b16 %v326
      %v813 = vunpack.c.l.b16 %v327
      %v814 = vunpack.c.h.b16 %v327
      %v815 = vunpack.c.l.b16 %v328
      %v816 = vunpack.c.h.b16 %v328
      %v817 = vunpack.c.l.b16 %v329
      %v818 = vunpack.c.h.b16 %v329
      %v819 = vunpack.c.l.b16 %v330
      %v820 = vunpack.c.h.b16 %v330
      %v821 = vunpack.c.l.b16 %v331
      %v822 = vunpack.c.h.b16 %v331
      %v823 = vunpack.c.l.b16 %v332
      %v824 = vunpack.c.h.b16 %v332
      %v825 = vunpack.c.l.b16 %v333
      %v826 = vunpack.c.h.b16 %v333
      %v827 = vunpack.c.l.b16 %v334
      %v828 = vunpack.c.h.b16 %v334
      %v829 = vunpack.c.l.b16 %v335
      %v830 = vunpack.c.h.b16 %v335
      %v831 = vunpack.c.l.b16 %v336
      %v832 = vunpack.c.h.b16 %v336
      %v833 = vunpack.c.l.b16 %v337
      %v834 = vunpack.c.h.b16 %v337
      %v835 = vunpack.c.l.b16 %v338
      %v836 = vunpack.c.h.b16 %v338
      %v837 = vunpack.c.l.b16 %v339
      %v838 = vunpack.c.h.b16 %v339
      %v839 = vunpack.c.l.b16 %v340
      %v840 = vunpack.c.h.b16 %v340
      %v841 = vunpack.c.l.b16 %v341
      %v842 = vunpack.c.h.b16 %v341
      %v843 = vunpack.c.l.b16 %v342
      %v844 = vunpack.c.h.b16 %v342
      %v845 = vunpack.c.l.b16 %v343
      %v846 = vunpack.c.h.b16 %v343
      %v847 = vunpack.c.l.b16 %v344
      %v848 = vunpack.c.h.b16 %v344
      %v849 = vunpack.c.l.b16 %v345
      %v850 = vunpack.c.h.b16 %v345
      %v851 = vunpack.c.l.b16 %v346
      %v852 = vunpack.c.h.b16 %v346
      %v853 = vunpack.c.l.b16 %v347
      %v854 = vunpack.c.h.b16 %v347
      %v855 = vunpack.c.l.b16 %v348
      %v856 = vunpack.c.h.b16 %v348
      %v857 = vunpack.c.l.b16 %v349
      %v858 = vunpack.c.h.b16 %v349
      %v859 = vunpack.c.l.b16 %v350
      %v860 = vunpack.c.h.b16 %v350
      %v861 = vunpack.c.l.b16 %v351
      %v862 = vunpack.c.h.b16 %v351
      %v863 = vunpack.c.l.b16 %v352
      %v864 = vunpack.c.h.b16 %v352
      %v865 = vunpack.c.l.b16 %v353
      %v866 = vunpack.c.h.b16 %v353
      %v867 = vunpack.c.l.b16 %v354
      %v868 = vunpack.c.h.b16 %v354
      %v869 = vunpack.c.l.b16 %v355
      %v870 = vunpack.c.h.b16 %v355
      %v871 = vunpack.c.l.b16 %v356
      %v872 = vunpack.c.h.b16 %v356
      %v873 = vunpack.c.l.b16 %v357
      %v874 = vunpack.c.h.b16 %v357
      %v875 = vunpack.c.l.b16 %v358
      %v876 = vunpack.c.h.b16 %v358
      %v877 = vunpack.c.l.b16 %v359
      %v878 = vunpack.c.h.b16 %v359
      %v879 = vunpack.c.l.b16 %v360
      %v880 = vunpack.c.h.b16 %v360
      %v881 = vunpack.c.l.b16 %v361
      %v882 = vunpack.c.h.b16 %v361
      %v883 = vunpack.c.l.b16 %v362
      %v884 = vunpack.c.h.b16 %v362
      %v885 = vunpack.c.l.b16 %v363
      %v886 = vunpack.c.h.b16 %v363
      %v887 = vunpack.c.l.b16 %v364
      %v888 = vunpack.c.h.b16 %v364
      %v889 = vunpack.c.l.b16 %v365
      %v890 = vunpack.c.h.b16 %v365
      %v891 = vunpack.c.l.b16 %v366
      %v892 = vunpack.c.h.b16 %v366
      %v893 = vunpack.c.l.b16 %v367
      %v894 = vunpack.c.h.b16 %v367
      %v895 = vunpack.c.l.b16 %v368
      %v896 = vunpack.c.h.b16 %v368
      %v897 = vunpack.c.l.b16 %v369
      %v898 = vunpack.c.h.b16 %v369
      %v899 = vunpack.c.l.b16 %v370
      %v900 = vunpack.c.h.b16 %v370
      %v901 = vunpack.c.l.b16 %v371
      %v902 = vunpack.c.h.b16 %v371
      %v903 = vunpack.c.l.b16 %v372
      %v904 = vunpack.c.h.b16 %v372
      %v905 = vunpack.c.l.b16 %v373
      %v906 = vunpack.c.h.b16 %v373
      %v907 = vunpack.c.l.b16 %v374
      %v908 = vunpack.c.h.b16 %v374
      %v909 = vunpack.c.l.b16 %v375
      %v910 = vunpack.c.h.b16 %v375
      %v911 = vpack.c.b16 %v629, %v623
      %v912 = vpack.c.b16 %v630, %v624
      %v913 = vpack.c.b16 %v631, %v625
      %v914 = vpack.c.b16 %v632, %v626
      %v915 = vpack.c.b16 %v633, %v627
      %v916 = vpack.c.b16 %v634, %v628
      %v917 = vpack.c.b16 %v641, %v635
      %v918 = vpack.c.b16 %v642, %v636
      %v919 = vpack.c.b16 %v643, %v637
      %v920 = vpack.c.b16 %v644, %v638
      %v921 = vpack.c.b16 %v645, %v639
      %v922 = vpack.c.b16 %v646, %v640
      %v923 = vpack.c.b16 %v653, %v647
      %v924 = vpack.c.b16 %v654, %v648
      %v925 = vpack.c.b16 %v655, %v649
      %v926 = vpack.c.b16 %v656, %v650
      %v927 = vpack.c.b16 %v657, %v651
      %v928 = vpack.c.b16 %v658, %v652
      %v929 = vpack.c.b16 %v665, %v659
      %v930 = vpack.c.b16 %v666, %v660
      %v931 = vpack.c.b16 %v667, %v661
      %v932 = vpack.c.b16 %v668, %v662
      %v933 = vpack.c.b16 %v669, %v663
      %v934 = vpack.c.b16 %v670, %v664
      %v935 = vpack.c.b16 %v677, %v671
      %v936 = vpack.c.b16 %v678, %v672
      %v937 = vpack.c.b16 %v679, %v673
      %v938 = vpack.c.b16 %v680, %v674
      %v939 = vpack.c.b16 %v681, %v675
      %v940 = vpack.c.b16 %v682, %v676
      %v941 = vpack.c.b16 %v689, %v683
      %v942 = vpack.c.b16 %v690, %v684
      %v943 = vpack.c.b16 %v691, %v685
      %v944 = vpack.c.b16 %v692, %v686
      %v945 = vpack.c.b16 %v693, %v687
      %v946 = vpack.c.b16 %v694, %v688
      %v947 = vpack.c.b16 %v701, %v695
      %v948 = vpack.c.b16 %v702, %v696
      %v949 = vpack.c.b16 %v703, %v697
      %v950 = vpack.c.b16 %v704, %v698
      %v951 = vpack.c.b16 %v705, %v699
      %v952 = vpack.c.b16 %v706, %v700
      %v953 = vpack.c.b16 %v713, %v707
      %v954 = vpack.c.b16 %v714, %v708
      %v955 = vpack.c.b16 %v715, %v709
      %v956 = vpack.c.b16 %v716, %v710
      %v957 = vpack.c.b16 %v717, %v711
      %v958 = vpack.c.b16 %v718, %v712
      %v959 = vpack.c.b16 %v725, %v719
      %v960 = vpack.c.b16 %v726, %v720
      %v961 = vpack.c.b16 %v727, %v721
      %v962 = vpack.c.b16 %v728, %v722
      %v963 = vpack.c.b16 %v729, %v723
      %v964 = vpack.c.b16 %v730, %v724
      %v965 = vpack.c.b16 %v737, %v731
      %v966 = vpack.c.b16 %v738, %v732
      %v967 = vpack.c.b16 %v739, %v733
      %v968 = vpack.c.b16 %v740, %v734
      %v969 = vpack.c.b16 %v741, %v735
      %v970 = vpack.c.b16 %v742, %v736
      %v971 = vpack.c.b16 %v749, %v743
      %v972 = vpack.c.b16 %v750, %v744
      %v973 = vpack.c.b16 %v751, %v745
      %v974 = vpack.c.b16 %v752, %v746
      %v975 = vpack.c.b16 %v753, %v747
      %v976 = vpack.c.b16 %v754, %v748
      %v977 = vpack.c.b16 %v761, %v755
      %v978 = vpack.c.b16 %v762, %v756
      %v979 = vpack.c.b16 %v763, %v757
      %v980 = vpack.c.b16 %v764, %v758
      %v981 = vpack.c.b16 %v765, %v759
      %v982 = vpack.c.b16 %v766, %v760
      %v983 = vpack.c.b16 %v773, %v767
      %v984 = vpack.c.b16 %v774, %v768
      %v985 = vpack.c.b16 %v775, %v769
      %v986 = vpack.c.b16 %v776, %v770
      %v987 = vpack.c.b16 %v777, %v771
      %v988 = vpack.c.b16 %v778, %v772
      %v989 = vpack.c.b16 %v785, %v779
      %v990 = vpack.c.b16 %v786, %v780
      %v991 = vpack.c.b16 %v787, %v781
      %v992 = vpack.c.b16 %v788, %v782
      %v993 = vpack.c.b16 %v789, %v783
      %v994 = vpack.c.b16 %v790, %v784
      %v995 = vpack.c.b16 %v797, %v791
      %v996 = vpack.c.b16 %v798, %v792
      %v997 = vpack.c.b16 %v799, %v793
      %v998 = vpack.c.b16 %v800, %v794
      %v999 = vpack.c.b16 %v801, %v795
      %v1000 = vpack.c.b16 %v802, %v796
      %v1001 = vpack.c.b16 %v809, %v803
      %v1002 = vpack.c.b16 %v810, %v804
      %v1003 = vpack.c.b16 %v811, %v805
      %v1004 = vpack.c.b16 %v812, %v806
      %v1005 = vpack.c.b16 %v813, %v807
      %v1006 = vpack.c.b16 %v814, %v808
      %v1007 = vpack.c.b16 %v821, %v815
      %v1008 = vpack.c.b16 %v822, %v816
      %v1009 = vpack.c.b16 %v823, %v817
      %v1010 = vpack.c.b16 %v824, %v818
      %v1011 = vpack.c.b16 %v825, %v819
      %v1012 = vpack.c.b16 %v826, %v820
      %v1013 = vpack.c.b16 %v833, %v827
      %v1014 = vpack.c.b16 %v834, %v828
      %v1015 = vpack.c.b16 %v835, %v829
      %v1016 = vpack.c.b16 %v836, %v830
      %v1017 = vpack.c.b16 %v837, %v831
      %v1018 = vpack.c.b16 %v838, %v832
      %v1019 = vpack.c.b16 %v845, %v839
      %v1020 = vpack.c.b16 %v846, %v840
      %v1021 = vpack.c.b16 %v847, %v841
      %v1022 = vpack.c.b16 %v848, %v842
      %v1023 = vpack.c.b16 %v849, %v843
      %v1024 = vpack.c.b16 %v850, %v844
      %v1025 = vpack.c.b16 %v857, %v851
      %v1026 = vpack.c.b16 %v858, %v852
      %v1027 = vpack.c.b16 %v859, %v853
      %v1028 = vpack.c.b16 %v860, %v854
      %v1029 = vpack.c.b16 %v861, %v855
      %v1030 = vpack.c.b16 %v862, %v856
      %v1031 = vpack.c.b16 %v869, %v863
      %v1032 = vpack.c.b16 %v870, %v864
      %v1033 = vpack.c.b16 %v871, %v865
      %v1034 = vpack.c.b16 %v872, %v866
      %v1035 = vpack.c.b16 %v873, %v867
      %v1036 = vpack.c.b16 %v874, %v868
      %v1037 = vpack.c.b16 %v881, %v875
      %v1038 = vpack.c.b16 %v882, %v876
      %v1039 = vpack.c.b16 %v883, %v877
      %v1040 = vpack.c.b16 %v884, %v878
      %v1041 = vpack.c.b16 %v885, %v879
      %v1042 = vpack.c.b16 %v886, %v880
      %v1043 = vpack.c.b16 %v893, %v887
      %v1044 = vpack.c.b16 %v894, %v888
      %v1045 = vpack.c.b16 %v895, %v889
      %v1046 = vpack.c.b16 %v896, %v890
      %v1047 = vpack.c.b16 %v897, %v891
      %v1048 = vpack.c.b16 %v898, %v892
      %v1049 = vpack.c.b16 %v905, %v899
      %v1050 = vpack.c.b16 %v906, %v900
      %v1051 = vpack.c.b16 %v907, %v901
      %v1052 = vpack.c.b16 %v908, %v902
      %v1053 = vpack.c.b16 %v909, %v903
      %v1054 = vpack.c.b16 %v910, %v904
      %v1295 = vunpack.c.l.b16 %v376
      %v1296 = vunpack.c.l.b16 %v377
      %v1297 = vunpack.c.l.b16 %v378
      %v1298 = vunpack.c.l.b16 %v379
      %v1299 = vunpack.c.l.b16 %v380
      %v1300 = vunpack.c.l.b16 %v381
      %v1301 = vunpack.c.l.b16 %v382
      %v1302 = vunpack.c.l.b16 %v383
      %v1303 = vunpack.c.l.b16 %v384
      %v1304 = vunpack.c.l.b16 %v385
      %v1305 = vunpack.c.l.b16 %v386
      %v1306 = vunpack.c.l.b16 %v387
      %v1307 = vunpack.c.l.b16 %v388
      %v1308 = vunpack.c.l.b16 %v389
      %v1309 = vunpack.c.l.b16 %v390
      %v1310 = vunpack.c.l.b16 %v391
      %v1311 = vunpack.c.l.b16 %v392
      %v1312 = vunpack.c.l.b16 %v393
      %v1313 = vunpack.c.l.b16 %v394
      %v1314 = vunpack.c.l.b16 %v395
      %v1315 = vunpack.c.l.b16 %v396
      %v1316 = vunpack.c.l.b16 %v397
      %v1317 = vunpack.c.l.b16 %v398
      %v1318 = vunpack.c.l.b16 %v399
      %v1319 = vunpack.c.l.b16 %v400
      %v1320 = vunpack.c.l.b16 %v401
      %v1321 = vunpack.c.l.b16 %v402
      %v1322 = vunpack.c.l.b16 %v403
      %v1323 = vunpack.c.l.b16 %v404
      %v1324 = vunpack.c.l.b16 %v405
      %v1325 = vunpack.c.l.b16 %v406
      %v1326 = vunpack.c.l.b16 %v407
      %v1327 = vunpack.c.l.b16 %v408
      %v1328 = vunpack.c.l.b16 %v409
      %v1329 = vunpack.c.l.b16 %v410
      %v1330 = vunpack.c.l.b16 %v411
      %v1331 = vunpack.c.l.b16 %v412
      %v1332 = vunpack.c.l.b16 %v413
      %v1333 = vunpack.c.l.b16 %v414
      %v1334 = vunpack.c.l.b16 %v415
      %v1335 = vunpack.c.l.b16 %v416
      %v1336 = vunpack.c.l.b16 %v417
      %v1337 = vunpack.c.l.b16 %v418
      %v1338 = vunpack.c.l.b16 %v419
      %v1339 = vunpack.c.l.b16 %v420
      %v1340 = vunpack.c.l.b16 %v421
      %v1341 = vunpack.c.l.b16 %v422
      %v1342 = vunpack.c.l.b16 %v423
      %v1343 = vunpack.c.l.b16 %v424
      %v1344 = vunpack.c.l.b16 %v425
      %v1345 = vunpack.c.l.b16 %v426
      %v1346 = vunpack.c.l.b16 %v427
      %v1347 = vunpack.c.l.b16 %v428
      %v1348 = vunpack.c.l.b16 %v429
      %v1349 = vunpack.c.l.b16 %v430
      %v1350 = vunpack.c.l.b16 %v431
      %v1351 = vunpack.c.l.b16 %v432
      %v1352 = vunpack.c.l.b16 %v433
      %v1353 = vunpack.c.l.b16 %v434
      %v1354 = vunpack.c.l.b16 %v435
      %v1355 = vunpack.c.l.b16 %v436
      %v1356 = vunpack.c.l.b16 %v437
      %v1357 = vunpack.c.l.b16 %v438
      %v1358 = vunpack.c.l.b16 %v439
      %v1359 = vunpack.c.l.b16 %v440
      %v1360 = vunpack.c.l.b16 %v441
      %v1361 = vunpack.c.l.b16 %v442
      %v1362 = vunpack.c.l.b16 %v443
      %v1363 = vunpack.c.l.b16 %v444
      %v1364 = vunpack.c.l.b16 %v445
      %v1365 = vunpack.c.l.b16 %v446
      %v1366 = vunpack.c.l.b16 %v447
      %v1367 = vunpack.c.l.b16 %v448
      %v1368 = vunpack.c.l.b16 %v449
      %v1369 = vunpack.c.l.b16 %v450
      %v1370 = vunpack.c.l.b16 %v451
      %v1371 = vunpack.c.l.b16 %v452
      %v1372 = vunpack.c.l.b16 %v453
      %v1373 = vunpack.c.l.b16 %v454
      %v1374 = vunpack.c.l.b16 %v455
      %v1375 = vunpack.c.l.b16 %v456
      %v1376 = vunpack.c.l.b16 %v457
      %v1377 = vunpack.c.l.b16 %v458
      %v1378 = vunpack.c.l.b16 %v459
      %v1379 = vunpack.c.l.b16 %v460
      %v1380 = vunpack.c.l.b16 %v461
      %v1381 = vunpack.c.l.b16 %v462
      %v1382 = vunpack.c.l.b16 %v463
      %v1383 = vunpack.c.l.b16 %v464
      %v1384 = vunpack.c.l.b16 %v465
      %v1385 = vunpack.c.l.b16 %v466
      %v1386 = vunpack.c.l.b16 %v467
      %v1387 = vunpack.c.l.b16 %v468
      %v1388 = vunpack.c.l.b16 %v469
      %v1389 = vunpack.c.l.b16 %v470
      %v1390 = vunpack.c.l.b16 %v471
      %v1391 = vpack.c.b16 %v1296, %v1295
      %v1392 = vpack.c.b16 %v1298, %v1297
      %v1393 = vpack.c.b16 %v1300, %v1299
      %v1394 = vpack.c.b16 %v1302, %v1301
      %v1395 = vpack.c.b16 %v1304, %v1303
      %v1396 = vpack.c.b16 %v1306, %v1305
      %v1397 = vpack.c.b16 %v1308, %v1307
      %v1398 = vpack.c.b16 %v1310, %v1309
      %v1399 = vpack.c.b16 %v1312, %v1311
      %v1400 = vpack.c.b16 %v1314, %v1313
      %v1401 = vpack.c.b16 %v1316, %v1315
      %v1402 = vpack.c.b16 %v1318, %v1317
      %v1403 = vpack.c.b16 %v1320, %v1319
      %v1404 = vpack.c.b16 %v1322, %v1321
      %v1405 = vpack.c.b16 %v1324, %v1323
      %v1406 = vpack.c.b16 %v1326, %v1325
      %v1407 = vpack.c.b16 %v1328, %v1327
      %v1408 = vpack.c.b16 %v1330, %v1329
      %v1409 = vpack.c.b16 %v1332, %v1331
      %v1410 = vpack.c.b16 %v1334, %v1333
      %v1411 = vpack.c.b16 %v1336, %v1335
      %v1412 = vpack.c.b16 %v1338, %v1337
      %v1413 = vpack.c.b16 %v1340, %v1339
      %v1414 = vpack.c.b16 %v1342, %v1341
      %v1415 = vpack.c.b16 %v1344, %v1343
      %v1416 = vpack.c.b16 %v1346, %v1345
      %v1417 = vpack.c.b16 %v1348, %v1347
      %v1418 = vpack.c.b16 %v1350, %v1349
      %v1419 = vpack.c.b16 %v1352, %v1351
      %v1420 = vpack.c.b16 %v1354, %v1353
      %v1421 = vpack.c.b16 %v1356, %v1355
      %v1422 = vpack.c.b16 %v1358, %v1357
      %v1423 = vpack.c.b16 %v1360, %v1359
      %v1424 = vpack.c.b16 %v1362, %v1361
      %v1425 = vpack.c.b16 %v1364, %v1363
      %v1426 = vpack.c.b16 %v1366, %v1365
      %v1427 = vpack.c.b16 %v1368, %v1367
      %v1428 = vpack.c.b16 %v1370, %v1369
      %v1429 = vpack.c.b16 %v1372, %v1371
      %v1430 = vpack.c.b16 %v1374, %v1373
      %v1431 = vpack.c.b16 %v1376, %v1375
      %v1432 = vpack.c.b16 %v1378, %v1377
      %v1433 = vpack.c.b16 %v1380, %v1379
      %v1434 = vpack.c.b16 %v1382, %v1381
      %v1435 = vpack.c.b16 %v1384, %v1383
      %v1436 = vpack.c.b16 %v1386, %v1385
      %v1437 = vpack.c.b16 %v1388, %v1387
      %v1438 = vpack.c.b16 %v1390, %v1389
      %1487 = vmatprep.subr.bf16.mxu0 0
      %1488 = vmatpush1.bf16.msra.mxu0 %v1398
      %1489 = vmatprep.subr.bf16.mxu0 0
      %1490 = vmatpush1.bf16.msra.mxu0 %v1397
      %1491 = vmatprep.subr.bf16.mxu0 0
      %1492 = vmatpush1.bf16.msra.mxu0 %v1396
      %1493 = vmatprep.subr.bf16.mxu0 0
      %1494 = vmatpush1.bf16.msra.mxu0 %v1395
      %1495 = vmatprep.subr.bf16.mxu0 0
      %1496 = vmatpush1.bf16.msra.mxu0 %v1394
      %1497 = vmatprep.subr.bf16.mxu0 0
      %1498 = vmatpush1.bf16.msra.mxu0 %v1393
      %1499 = vmatprep.subr.bf16.mxu0 0
      %1500 = vmatpush1.bf16.msra.mxu0 %v1392
      %1501 = vmatprep.subr.bf16.mxu0 0
      %1502 = vmatpush1.bf16.msra.mxu0 %v1391
      %1503 = vmatprep.subr.bf16.mxu0 0
      %1504 = vmatpush2.bf16.msra.mxu0 %v1406
      %1505 = vmatprep.subr.bf16.mxu0 0
      %1506 = vmatpush2.bf16.msra.mxu0 %v1405
      %1507 = vmatprep.subr.bf16.mxu0 0
      %1508 = vmatpush2.bf16.msra.mxu0 %v1404
      %1509 = vmatprep.subr.bf16.mxu0 0
      %1510 = vmatpush2.bf16.msra.mxu0 %v1403
      %1511 = vmatprep.subr.bf16.mxu0 0
      %1512 = vmatpush2.bf16.msra.mxu0 %v1402
      %1513 = vmatprep.subr.bf16.mxu0 0
      %1514 = vmatpush2.bf16.msra.mxu0 %v1401
      %1515 = vmatprep.subr.bf16.mxu0 0
      %1516 = vmatpush2.bf16.msra.mxu0 %v1400
      %1517 = vmatprep.subr.bf16.mxu0 0
      %1518 = vmatpush2.bf16.msra.mxu0 %v1399
      %1519 = vmatprep.mubr.bf16.mxu0 %v912
      %1520 = vmatmul.mubr.bf16.gmra.mxu0 %v911
      %v1521 = vpop.f32.mrf.mxu0
      %v1522 = vadd.f32 %v477, %v1521
      %v1523 = vpop.f32.mrf.mxu0
      %v1524 = vpop.f32.mrf.mxu0
      %v1525 = vadd.f32 %v477, %v1524
      %v1526 = vpop.f32.mrf.mxu0
      %1527 = vmatprep.mubr.bf16.mxu0 %v918
      %1528 = vmatmul.mubr.bf16.gmra.mxu0 %v917
      %v1529 = vpop.f32.mrf.mxu0
      %v1530 = vadd.f32 %v477, %v1529
      %v1531 = vpop.f32.mrf.mxu0
      %v1532 = vpop.f32.mrf.mxu0
      %v1533 = vadd.f32 %v477, %v1532
      %v1534 = vpop.f32.mrf.mxu0
      %1535 = vmatprep.mubr.bf16.mxu0 %v924
      %1536 = vmatmul.mubr.bf16.gmra.mxu0 %v923
      %v1537 = vpop.f32.mrf.mxu0
      %v1538 = vadd.f32 %v477, %v1537
      %v1539 = vpop.f32.mrf.mxu0
      %v1540 = vpop.f32.mrf.mxu0
      %v1541 = vadd.f32 %v477, %v1540
      %v1542 = vpop.f32.mrf.mxu0
      %1543 = vmatprep.mubr.bf16.mxu0 %v930
      %1544 = vmatmul.mubr.bf16.gmra.mxu0 %v929
      %v1545 = vpop.f32.mrf.mxu0
      %v1546 = vadd.f32 %v477, %v1545
      %v1547 = vpop.f32.mrf.mxu0
      %v1548 = vpop.f32.mrf.mxu0
      %v1549 = vadd.f32 %v477, %v1548
      %v1550 = vpop.f32.mrf.mxu0
      %1551 = vmatprep.mubr.bf16.mxu0 %v936
      %1552 = vmatmul.mubr.bf16.gmra.mxu0 %v935
      %v1553 = vpop.f32.mrf.mxu0
      %v1554 = vadd.f32 %v477, %v1553
      %v1555 = vpop.f32.mrf.mxu0
      %v1556 = vpop.f32.mrf.mxu0
      %v1557 = vadd.f32 %v477, %v1556
      %v1558 = vpop.f32.mrf.mxu0
      %1559 = vmatprep.mubr.bf16.mxu0 %v942
      %1560 = vmatmul.mubr.bf16.gmra.mxu0 %v941
      %v1561 = vpop.f32.mrf.mxu0
      %v1562 = vadd.f32 %v477, %v1561
      %v1563 = vpop.f32.mrf.mxu0
      %v1564 = vpop.f32.mrf.mxu0
      %v1565 = vadd.f32 %v477, %v1564
      %v1566 = vpop.f32.mrf.mxu0
      %1567 = vmatprep.mubr.bf16.mxu0 %v948
      %1568 = vmatmul.mubr.bf16.gmra.mxu0 %v947
      %v1569 = vpop.f32.mrf.mxu0
      %v1570 = vadd.f32 %v477, %v1569
      %v1571 = vpop.f32.mrf.mxu0
      %v1572 = vpop.f32.mrf.mxu0
      %v1573 = vadd.f32 %v477, %v1572
      %v1574 = vpop.f32.mrf.mxu0
      %1575 = vmatprep.mubr.bf16.mxu0 %v954
      %1576 = vmatmul.mubr.bf16.gmra.mxu0 %v953
      %v1577 = vpop.f32.mrf.mxu0
      %v1578 = vadd.f32 %v477, %v1577
      %v1579 = vpop.f32.mrf.mxu0
      %v1580 = vpop.f32.mrf.mxu0
      %v1581 = vadd.f32 %v477, %v1580
      %v1582 = vpop.f32.mrf.mxu0
      %1583 = vmatprep.mubr.bf16.mxu0 %v960
      %1584 = vmatmul.mubr.bf16.gmra.mxu0 %v959
      %v1585 = vpop.f32.mrf.mxu0
      %v1586 = vadd.f32 %v477, %v1585
      %v1587 = vpop.f32.mrf.mxu0
      %v1588 = vpop.f32.mrf.mxu0
      %v1589 = vadd.f32 %v477, %v1588
      %v1590 = vpop.f32.mrf.mxu0
      %1591 = vmatprep.mubr.bf16.mxu0 %v966
      %1592 = vmatmul.mubr.bf16.gmra.mxu0 %v965
      %v1593 = vpop.f32.mrf.mxu0
      %v1594 = vadd.f32 %v477, %v1593
      %v1595 = vpop.f32.mrf.mxu0
      %v1596 = vpop.f32.mrf.mxu0
      %v1597 = vadd.f32 %v477, %v1596
      %v1598 = vpop.f32.mrf.mxu0
      %1599 = vmatprep.mubr.bf16.mxu0 %v972
      %1600 = vmatmul.mubr.bf16.gmra.mxu0 %v971
      %v1601 = vpop.f32.mrf.mxu0
      %v1602 = vadd.f32 %v477, %v1601
      %v1603 = vpop.f32.mrf.mxu0
      %v1604 = vpop.f32.mrf.mxu0
      %v1605 = vadd.f32 %v477, %v1604
      %v1606 = vpop.f32.mrf.mxu0
      %1607 = vmatprep.mubr.bf16.mxu0 %v978
      %1608 = vmatmul.mubr.bf16.gmra.mxu0 %v977
      %v1609 = vpop.f32.mrf.mxu0
      %v1610 = vadd.f32 %v477, %v1609
      %v1611 = vpop.f32.mrf.mxu0
      %v1612 = vpop.f32.mrf.mxu0
      %v1613 = vadd.f32 %v477, %v1612
      %v1614 = vpop.f32.mrf.mxu0
      %1615 = vmatprep.mubr.bf16.mxu0 %v984
      %1616 = vmatmul.mubr.bf16.gmra.mxu0 %v983
      %v1617 = vpop.f32.mrf.mxu0
      %v1618 = vadd.f32 %v477, %v1617
      %v1619 = vpop.f32.mrf.mxu0
      %v1620 = vpop.f32.mrf.mxu0
      %v1621 = vadd.f32 %v477, %v1620
      %v1622 = vpop.f32.mrf.mxu0
      %1623 = vmatprep.mubr.bf16.mxu0 %v990
      %1624 = vmatmul.mubr.bf16.gmra.mxu0 %v989
      %v1625 = vpop.f32.mrf.mxu0
      %v1626 = vadd.f32 %v477, %v1625
      %v1627 = vpop.f32.mrf.mxu0
      %v1628 = vpop.f32.mrf.mxu0
      %v1629 = vadd.f32 %v477, %v1628
      %v1630 = vpop.f32.mrf.mxu0
      %1631 = vmatprep.mubr.bf16.mxu0 %v996
      %1632 = vmatmul.mubr.bf16.gmra.mxu0 %v995
      %v1633 = vpop.f32.mrf.mxu0
      %v1634 = vadd.f32 %v477, %v1633
      %v1635 = vpop.f32.mrf.mxu0
      %v1636 = vpop.f32.mrf.mxu0
      %v1637 = vadd.f32 %v477, %v1636
      %v1638 = vpop.f32.mrf.mxu0
      %1639 = vmatprep.mubr.bf16.mxu0 %v1002
      %1640 = vmatmul.mubr.bf16.gmra.mxu0 %v1001
      %v1641 = vpop.f32.mrf.mxu0
      %v1642 = vadd.f32 %v477, %v1641
      %v1643 = vpop.f32.mrf.mxu0
      %v1644 = vpop.f32.mrf.mxu0
      %v1645 = vadd.f32 %v477, %v1644
      %v1646 = vpop.f32.mrf.mxu0
      %1647 = vmatprep.mubr.bf16.mxu0 %v1008
      %1648 = vmatmul.mubr.bf16.gmra.mxu0 %v1007
      %v1649 = vpop.f32.mrf.mxu0
      %v1650 = vadd.f32 %v477, %v1649
      %v1651 = vpop.f32.mrf.mxu0
      %v1652 = vpop.f32.mrf.mxu0
      %v1653 = vadd.f32 %v477, %v1652
      %v1654 = vpop.f32.mrf.mxu0
      %1655 = vmatprep.mubr.bf16.mxu0 %v1014
      %1656 = vmatmul.mubr.bf16.gmra.mxu0 %v1013
      %v1657 = vpop.f32.mrf.mxu0
      %v1658 = vadd.f32 %v477, %v1657
      %v1659 = vpop.f32.mrf.mxu0
      %v1660 = vpop.f32.mrf.mxu0
      %v1661 = vadd.f32 %v477, %v1660
      %v1662 = vpop.f32.mrf.mxu0
      %1663 = vmatprep.mubr.bf16.mxu0 %v1020
      %1664 = vmatmul.mubr.bf16.gmra.mxu0 %v1019
      %v1665 = vpop.f32.mrf.mxu0
      %v1666 = vadd.f32 %v477, %v1665
      %v1667 = vpop.f32.mrf.mxu0
      %v1668 = vpop.f32.mrf.mxu0
      %v1669 = vadd.f32 %v477, %v1668
      %v1670 = vpop.f32.mrf.mxu0
      %1671 = vmatprep.mubr.bf16.mxu0 %v1026
      %1672 = vmatmul.mubr.bf16.gmra.mxu0 %v1025
      %v1673 = vpop.f32.mrf.mxu0
      %v1674 = vadd.f32 %v477, %v1673
      %v1675 = vpop.f32.mrf.mxu0
      %v1676 = vpop.f32.mrf.mxu0
      %v1677 = vadd.f32 %v477, %v1676
      %v1678 = vpop.f32.mrf.mxu0
      %1679 = vmatprep.mubr.bf16.mxu0 %v1032
      %1680 = vmatmul.mubr.bf16.gmra.mxu0 %v1031
      %v1681 = vpop.f32.mrf.mxu0
      %v1682 = vadd.f32 %v477, %v1681
      %v1683 = vpop.f32.mrf.mxu0
      %v1684 = vpop.f32.mrf.mxu0
      %v1685 = vadd.f32 %v477, %v1684
      %v1686 = vpop.f32.mrf.mxu0
      %1687 = vmatprep.mubr.bf16.mxu0 %v1038
      %1688 = vmatmul.mubr.bf16.gmra.mxu0 %v1037
      %v1689 = vpop.f32.mrf.mxu0
      %v1690 = vadd.f32 %v477, %v1689
      %v1691 = vpop.f32.mrf.mxu0
      %v1692 = vpop.f32.mrf.mxu0
      %v1693 = vadd.f32 %v477, %v1692
      %v1694 = vpop.f32.mrf.mxu0
      %1695 = vmatprep.mubr.bf16.mxu0 %v1044
      %1696 = vmatmul.mubr.bf16.gmra.mxu0 %v1043
      %v1697 = vpop.f32.mrf.mxu0
      %v1698 = vadd.f32 %v477, %v1697
      %v1699 = vpop.f32.mrf.mxu0
      %v1700 = vpop.f32.mrf.mxu0
      %v1701 = vadd.f32 %v477, %v1700
      %v1702 = vpop.f32.mrf.mxu0
      %1703 = vmatprep.mubr.bf16.mxu0 %v1050
      %1704 = vmatmul.mubr.bf16.gmra.mxu0 %v1049
      %v1705 = vpop.f32.mrf.mxu0
      %v1706 = vadd.f32 %v477, %v1705
      %v1707 = vpop.f32.mrf.mxu0
      %v1708 = vpop.f32.mrf.mxu0
      %v1709 = vadd.f32 %v477, %v1708
      %v1710 = vpop.f32.mrf.mxu0
      %1711 = vdwg.mxu0
      %1712 = vmatprep.subr.bf16.mxu0 0
      %1713 = vmatpush1.bf16.msra.mxu0 %v1414
      %1714 = vmatprep.subr.bf16.mxu0 0
      %1715 = vmatpush1.bf16.msra.mxu0 %v1413
      %1716 = vmatprep.subr.bf16.mxu0 0
      %1717 = vmatpush1.bf16.msra.mxu0 %v1412
      %1718 = vmatprep.subr.bf16.mxu0 0
      %1719 = vmatpush1.bf16.msra.mxu0 %v1411
      %1720 = vmatprep.subr.bf16.mxu0 0
      %1721 = vmatpush1.bf16.msra.mxu0 %v1410
      %1722 = vmatprep.subr.bf16.mxu0 0
      %1723 = vmatpush1.bf16.msra.mxu0 %v1409
      %1724 = vmatprep.subr.bf16.mxu0 0
      %1725 = vmatpush1.bf16.msra.mxu0 %v1408
      %1726 = vmatprep.subr.bf16.mxu0 0
      %1727 = vmatpush1.bf16.msra.mxu0 %v1407
      %1728 = vmatprep.subr.bf16.mxu0 0
      %1729 = vmatpush2.bf16.msra.mxu0 %v1422
      %1730 = vmatprep.subr.bf16.mxu0 0
      %1731 = vmatpush2.bf16.msra.mxu0 %v1421
      %1732 = vmatprep.subr.bf16.mxu0 0
      %1733 = vmatpush2.bf16.msra.mxu0 %v1420
      %1734 = vmatprep.subr.bf16.mxu0 0
      %1735 = vmatpush2.bf16.msra.mxu0 %v1419
      %1736 = vmatprep.subr.bf16.mxu0 0
      %1737 = vmatpush2.bf16.msra.mxu0 %v1418
      %1738 = vmatprep.subr.bf16.mxu0 0
      %1739 = vmatpush2.bf16.msra.mxu0 %v1417
      %1740 = vmatprep.subr.bf16.mxu0 0
      %1741 = vmatpush2.bf16.msra.mxu0 %v1416
      %1742 = vmatprep.subr.bf16.mxu0 0
      %1743 = vmatpush2.bf16.msra.mxu0 %v1415
      %1744 = vmatprep.mubr.bf16.mxu0 %v914
      %1745 = vmatmul.mubr.bf16.gmra.mxu0 %v913
      %v1746 = vpop.f32.mrf.mxu0
      %v1747 = vadd.f32 %v1522, %v1746
      %v1748 = vpop.f32.mrf.mxu0
      %v1749 = vpop.f32.mrf.mxu0
      %v1750 = vadd.f32 %v1525, %v1749
      %v1751 = vpop.f32.mrf.mxu0
      %1752 = vmatprep.mubr.bf16.mxu0 %v920
      %1753 = vmatmul.mubr.bf16.gmra.mxu0 %v919
      %v1754 = vpop.f32.mrf.mxu0
      %v1755 = vadd.f32 %v1530, %v1754
      %v1756 = vpop.f32.mrf.mxu0
      %v1757 = vpop.f32.mrf.mxu0
      %v1758 = vadd.f32 %v1533, %v1757
      %v1759 = vpop.f32.mrf.mxu0
      %1760 = vmatprep.mubr.bf16.mxu0 %v926
      %1761 = vmatmul.mubr.bf16.gmra.mxu0 %v925
      %v1762 = vpop.f32.mrf.mxu0
      %v1763 = vadd.f32 %v1538, %v1762
      %v1764 = vpop.f32.mrf.mxu0
      %v1765 = vpop.f32.mrf.mxu0
      %v1766 = vadd.f32 %v1541, %v1765
      %v1767 = vpop.f32.mrf.mxu0
      %1768 = vmatprep.mubr.bf16.mxu0 %v932
      %1769 = vmatmul.mubr.bf16.gmra.mxu0 %v931
      %v1770 = vpop.f32.mrf.mxu0
      %v1771 = vadd.f32 %v1546, %v1770
      %v1772 = vpop.f32.mrf.mxu0
      %v1773 = vpop.f32.mrf.mxu0
      %v1774 = vadd.f32 %v1549, %v1773
      %v1775 = vpop.f32.mrf.mxu0
      %1776 = vmatprep.mubr.bf16.mxu0 %v938
      %1777 = vmatmul.mubr.bf16.gmra.mxu0 %v937
      %v1778 = vpop.f32.mrf.mxu0
      %v1779 = vadd.f32 %v1554, %v1778
      %v1780 = vpop.f32.mrf.mxu0
      %v1781 = vpop.f32.mrf.mxu0
      %v1782 = vadd.f32 %v1557, %v1781
      %v1783 = vpop.f32.mrf.mxu0
      %1784 = vmatprep.mubr.bf16.mxu0 %v944
      %1785 = vmatmul.mubr.bf16.gmra.mxu0 %v943
      %v1786 = vpop.f32.mrf.mxu0
      %v1787 = vadd.f32 %v1562, %v1786
      %v1788 = vpop.f32.mrf.mxu0
      %v1789 = vpop.f32.mrf.mxu0
      %v1790 = vadd.f32 %v1565, %v1789
      %v1791 = vpop.f32.mrf.mxu0
      %1792 = vmatprep.mubr.bf16.mxu0 %v950
      %1793 = vmatmul.mubr.bf16.gmra.mxu0 %v949
      %v1794 = vpop.f32.mrf.mxu0
      %v1795 = vadd.f32 %v1570, %v1794
      %v1796 = vpop.f32.mrf.mxu0
      %v1797 = vpop.f32.mrf.mxu0
      %v1798 = vadd.f32 %v1573, %v1797
      %v1799 = vpop.f32.mrf.mxu0
      %1800 = vmatprep.mubr.bf16.mxu0 %v956
      %1801 = vmatmul.mubr.bf16.gmra.mxu0 %v955
      %v1802 = vpop.f32.mrf.mxu0
      %v1803 = vadd.f32 %v1578, %v1802
      %v1804 = vpop.f32.mrf.mxu0
      %v1805 = vpop.f32.mrf.mxu0
      %v1806 = vadd.f32 %v1581, %v1805
      %v1807 = vpop.f32.mrf.mxu0
      %1808 = vmatprep.mubr.bf16.mxu0 %v962
      %1809 = vmatmul.mubr.bf16.gmra.mxu0 %v961
      %v1810 = vpop.f32.mrf.mxu0
      %v1811 = vadd.f32 %v1586, %v1810
      %v1812 = vpop.f32.mrf.mxu0
      %v1813 = vpop.f32.mrf.mxu0
      %v1814 = vadd.f32 %v1589, %v1813
      %v1815 = vpop.f32.mrf.mxu0
      %1816 = vmatprep.mubr.bf16.mxu0 %v968
      %1817 = vmatmul.mubr.bf16.gmra.mxu0 %v967
      %v1818 = vpop.f32.mrf.mxu0
      %v1819 = vadd.f32 %v1594, %v1818
      %v1820 = vpop.f32.mrf.mxu0
      %v1821 = vpop.f32.mrf.mxu0
      %v1822 = vadd.f32 %v1597, %v1821
      %v1823 = vpop.f32.mrf.mxu0
      %1824 = vmatprep.mubr.bf16.mxu0 %v974
      %1825 = vmatmul.mubr.bf16.gmra.mxu0 %v973
      %v1826 = vpop.f32.mrf.mxu0
      %v1827 = vadd.f32 %v1602, %v1826
      %v1828 = vpop.f32.mrf.mxu0
      %v1829 = vpop.f32.mrf.mxu0
      %v1830 = vadd.f32 %v1605, %v1829
      %v1831 = vpop.f32.mrf.mxu0
      %1832 = vmatprep.mubr.bf16.mxu0 %v980
      %1833 = vmatmul.mubr.bf16.gmra.mxu0 %v979
      %v1834 = vpop.f32.mrf.mxu0
      %v1835 = vadd.f32 %v1610, %v1834
      %v1836 = vpop.f32.mrf.mxu0
      %v1837 = vpop.f32.mrf.mxu0
      %v1838 = vadd.f32 %v1613, %v1837
      %v1839 = vpop.f32.mrf.mxu0
      %1840 = vmatprep.mubr.bf16.mxu0 %v986
      %1841 = vmatmul.mubr.bf16.gmra.mxu0 %v985
      %v1842 = vpop.f32.mrf.mxu0
      %v1843 = vadd.f32 %v1618, %v1842
      %v1844 = vpop.f32.mrf.mxu0
      %v1845 = vpop.f32.mrf.mxu0
      %v1846 = vadd.f32 %v1621, %v1845
      %v1847 = vpop.f32.mrf.mxu0
      %1848 = vmatprep.mubr.bf16.mxu0 %v992
      %1849 = vmatmul.mubr.bf16.gmra.mxu0 %v991
      %v1850 = vpop.f32.mrf.mxu0
      %v1851 = vadd.f32 %v1626, %v1850
      %v1852 = vpop.f32.mrf.mxu0
      %v1853 = vpop.f32.mrf.mxu0
      %v1854 = vadd.f32 %v1629, %v1853
      %v1855 = vpop.f32.mrf.mxu0
      %1856 = vmatprep.mubr.bf16.mxu0 %v998
      %1857 = vmatmul.mubr.bf16.gmra.mxu0 %v997
      %v1858 = vpop.f32.mrf.mxu0
      %v1859 = vadd.f32 %v1634, %v1858
      %v1860 = vpop.f32.mrf.mxu0
      %v1861 = vpop.f32.mrf.mxu0
      %v1862 = vadd.f32 %v1637, %v1861
      %v1863 = vpop.f32.mrf.mxu0
      %1864 = vmatprep.mubr.bf16.mxu0 %v1004
      %1865 = vmatmul.mubr.bf16.gmra.mxu0 %v1003
      %v1866 = vpop.f32.mrf.mxu0
      %v1867 = vadd.f32 %v1642, %v1866
      %v1868 = vpop.f32.mrf.mxu0
      %v1869 = vpop.f32.mrf.mxu0
      %v1870 = vadd.f32 %v1645, %v1869
      %v1871 = vpop.f32.mrf.mxu0
      %1872 = vmatprep.mubr.bf16.mxu0 %v1010
      %1873 = vmatmul.mubr.bf16.gmra.mxu0 %v1009
      %v1874 = vpop.f32.mrf.mxu0
      %v1875 = vadd.f32 %v1650, %v1874
      %v1876 = vpop.f32.mrf.mxu0
      %v1877 = vpop.f32.mrf.mxu0
      %v1878 = vadd.f32 %v1653, %v1877
      %v1879 = vpop.f32.mrf.mxu0
      %1880 = vmatprep.mubr.bf16.mxu0 %v1016
      %1881 = vmatmul.mubr.bf16.gmra.mxu0 %v1015
      %v1882 = vpop.f32.mrf.mxu0
      %v1883 = vadd.f32 %v1658, %v1882
      %v1884 = vpop.f32.mrf.mxu0
      %v1885 = vpop.f32.mrf.mxu0
      %v1886 = vadd.f32 %v1661, %v1885
      %v1887 = vpop.f32.mrf.mxu0
      %1888 = vmatprep.mubr.bf16.mxu0 %v1022
      %1889 = vmatmul.mubr.bf16.gmra.mxu0 %v1021
      %v1890 = vpop.f32.mrf.mxu0
      %v1891 = vadd.f32 %v1666, %v1890
      %v1892 = vpop.f32.mrf.mxu0
      %v1893 = vpop.f32.mrf.mxu0
      %v1894 = vadd.f32 %v1669, %v1893
      %v1895 = vpop.f32.mrf.mxu0
      %1896 = vmatprep.mubr.bf16.mxu0 %v1028
      %1897 = vmatmul.mubr.bf16.gmra.mxu0 %v1027
      %v1898 = vpop.f32.mrf.mxu0
      %v1899 = vadd.f32 %v1674, %v1898
      %v1900 = vpop.f32.mrf.mxu0
      %v1901 = vpop.f32.mrf.mxu0
      %v1902 = vadd.f32 %v1677, %v1901
      %v1903 = vpop.f32.mrf.mxu0
      %1904 = vmatprep.mubr.bf16.mxu0 %v1034
      %1905 = vmatmul.mubr.bf16.gmra.mxu0 %v1033
      %v1906 = vpop.f32.mrf.mxu0
      %v1907 = vadd.f32 %v1682, %v1906
      %v1908 = vpop.f32.mrf.mxu0
      %v1909 = vpop.f32.mrf.mxu0
      %v1910 = vadd.f32 %v1685, %v1909
      %v1911 = vpop.f32.mrf.mxu0
      %1912 = vmatprep.mubr.bf16.mxu0 %v1040
      %1913 = vmatmul.mubr.bf16.gmra.mxu0 %v1039
      %v1914 = vpop.f32.mrf.mxu0
      %v1915 = vadd.f32 %v1690, %v1914
      %v1916 = vpop.f32.mrf.mxu0
      %v1917 = vpop.f32.mrf.mxu0
      %v1918 = vadd.f32 %v1693, %v1917
      %v1919 = vpop.f32.mrf.mxu0
      %1920 = vmatprep.mubr.bf16.mxu0 %v1046
      %1921 = vmatmul.mubr.bf16.gmra.mxu0 %v1045
      %v1922 = vpop.f32.mrf.mxu0
      %v1923 = vadd.f32 %v1698, %v1922
      %v1924 = vpop.f32.mrf.mxu0
      %v1925 = vpop.f32.mrf.mxu0
      %v1926 = vadd.f32 %v1701, %v1925
      %v1927 = vpop.f32.mrf.mxu0
      %1928 = vmatprep.mubr.bf16.mxu0 %v1052
      %1929 = vmatmul.mubr.bf16.gmra.mxu0 %v1051
      %v1930 = vpop.f32.mrf.mxu0
      %v1931 = vadd.f32 %v1706, %v1930
      %v1932 = vpop.f32.mrf.mxu0
      %v1933 = vpop.f32.mrf.mxu0
      %v1934 = vadd.f32 %v1709, %v1933
      %v1935 = vpop.f32.mrf.mxu0
      %1936 = vdwg.mxu0
      %1937 = vmatprep.subr.bf16.mxu0 0
      %1938 = vmatpush1.bf16.msra.mxu0 %v1430
      %1939 = vmatprep.subr.bf16.mxu0 0
      %1940 = vmatpush1.bf16.msra.mxu0 %v1429
      %1941 = vmatprep.subr.bf16.mxu0 0
      %1942 = vmatpush1.bf16.msra.mxu0 %v1428
      %1943 = vmatprep.subr.bf16.mxu0 0
      %1944 = vmatpush1.bf16.msra.mxu0 %v1427
      %1945 = vmatprep.subr.bf16.mxu0 0
      %1946 = vmatpush1.bf16.msra.mxu0 %v1426
      %1947 = vmatprep.subr.bf16.mxu0 0
      %1948 = vmatpush1.bf16.msra.mxu0 %v1425
      %1949 = vmatprep.subr.bf16.mxu0 0
      %1950 = vmatpush1.bf16.msra.mxu0 %v1424
      %1951 = vmatprep.subr.bf16.mxu0 0
      %1952 = vmatpush1.bf16.msra.mxu0 %v1423
      %1953 = vmatprep.subr.bf16.mxu0 0
      %1954 = vmatpush2.bf16.msra.mxu0 %v1438
      %1955 = vmatprep.subr.bf16.mxu0 0
      %1956 = vmatpush2.bf16.msra.mxu0 %v1437
      %1957 = vmatprep.subr.bf16.mxu0 0
      %1958 = vmatpush2.bf16.msra.mxu0 %v1436
      %1959 = vmatprep.subr.bf16.mxu0 0
      %1960 = vmatpush2.bf16.msra.mxu0 %v1435
      %1961 = vmatprep.subr.bf16.mxu0 0
      %1962 = vmatpush2.bf16.msra.mxu0 %v1434
      %1963 = vmatprep.subr.bf16.mxu0 0
      %1964 = vmatpush2.bf16.msra.mxu0 %v1433
      %1965 = vmatprep.subr.bf16.mxu0 0
      %1966 = vmatpush2.bf16.msra.mxu0 %v1432
      %1967 = vmatprep.subr.bf16.mxu0 0
      %1968 = vmatpush2.bf16.msra.mxu0 %v1431
      %1969 = vmatprep.mubr.bf16.mxu0 %v916
      %1970 = vmatmul.mubr.bf16.gmra.mxu0 %v915
      %v1971 = vpop.f32.mrf.mxu0
      %v1972 = vadd.f32 %v1747, %v1971
      %v1973 = vpop.f32.mrf.mxu0
      %v1974 = vpop.f32.mrf.mxu0
      %v1975 = vadd.f32 %v1750, %v1974
      %v1976 = vpop.f32.mrf.mxu0
      %1977 = vmatprep.mubr.bf16.mxu0 %v922
      %1978 = vmatmul.mubr.bf16.gmra.mxu0 %v921
      %v1979 = vpop.f32.mrf.mxu0
      %v1980 = vadd.f32 %v1755, %v1979
      %v1981 = vpop.f32.mrf.mxu0
      %v1982 = vpop.f32.mrf.mxu0
      %v1983 = vadd.f32 %v1758, %v1982
      %v1984 = vpop.f32.mrf.mxu0
      %1985 = vmatprep.mubr.bf16.mxu0 %v928
      %1986 = vmatmul.mubr.bf16.gmra.mxu0 %v927
      %v1987 = vpop.f32.mrf.mxu0
      %v1988 = vadd.f32 %v1763, %v1987
      %v1989 = vpop.f32.mrf.mxu0
      %v1990 = vpop.f32.mrf.mxu0
      %v1991 = vadd.f32 %v1766, %v1990
      %v1992 = vpop.f32.mrf.mxu0
      %1993 = vmatprep.mubr.bf16.mxu0 %v934
      %1994 = vmatmul.mubr.bf16.gmra.mxu0 %v933
      %v1995 = vpop.f32.mrf.mxu0
      %v1996 = vadd.f32 %v1771, %v1995
      %v1997 = vpop.f32.mrf.mxu0
      %v1998 = vpop.f32.mrf.mxu0
      %v1999 = vadd.f32 %v1774, %v1998
      %v2000 = vpop.f32.mrf.mxu0
      %2001 = vmatprep.mubr.bf16.mxu0 %v940
      %2002 = vmatmul.mubr.bf16.gmra.mxu0 %v939
      %v2003 = vpop.f32.mrf.mxu0
      %v2004 = vadd.f32 %v1779, %v2003
      %v2005 = vpop.f32.mrf.mxu0
      %v2006 = vpop.f32.mrf.mxu0
      %v2007 = vadd.f32 %v1782, %v2006
      %v2008 = vpop.f32.mrf.mxu0
      %2009 = vmatprep.mubr.bf16.mxu0 %v946
      %2010 = vmatmul.mubr.bf16.gmra.mxu0 %v945
      %v2011 = vpop.f32.mrf.mxu0
      %v2012 = vadd.f32 %v1787, %v2011
      %v2013 = vpop.f32.mrf.mxu0
      %v2014 = vpop.f32.mrf.mxu0
      %v2015 = vadd.f32 %v1790, %v2014
      %v2016 = vpop.f32.mrf.mxu0
      %2017 = vmatprep.mubr.bf16.mxu0 %v952
      %2018 = vmatmul.mubr.bf16.gmra.mxu0 %v951
      %v2019 = vpop.f32.mrf.mxu0
      %v2020 = vadd.f32 %v1795, %v2019
      %v2021 = vpop.f32.mrf.mxu0
      %v2022 = vpop.f32.mrf.mxu0
      %v2023 = vadd.f32 %v1798, %v2022
      %v2024 = vpop.f32.mrf.mxu0
      %2025 = vmatprep.mubr.bf16.mxu0 %v958
      %2026 = vmatmul.mubr.bf16.gmra.mxu0 %v957
      %v2027 = vpop.f32.mrf.mxu0
      %v2028 = vadd.f32 %v1803, %v2027
      %v2029 = vpop.f32.mrf.mxu0
      %v2030 = vpop.f32.mrf.mxu0
      %v2031 = vadd.f32 %v1806, %v2030
      %v2032 = vpop.f32.mrf.mxu0
      %2033 = vmatprep.mubr.bf16.mxu0 %v964
      %2034 = vmatmul.mubr.bf16.gmra.mxu0 %v963
      %v2035 = vpop.f32.mrf.mxu0
      %v2036 = vadd.f32 %v1811, %v2035
      %v2037 = vpop.f32.mrf.mxu0
      %v2038 = vpop.f32.mrf.mxu0
      %v2039 = vadd.f32 %v1814, %v2038
      %v2040 = vpop.f32.mrf.mxu0
      %2041 = vmatprep.mubr.bf16.mxu0 %v970
      %2042 = vmatmul.mubr.bf16.gmra.mxu0 %v969
      %v2043 = vpop.f32.mrf.mxu0
      %v2044 = vadd.f32 %v1819, %v2043
      %v2045 = vpop.f32.mrf.mxu0
      %v2046 = vpop.f32.mrf.mxu0
      %v2047 = vadd.f32 %v1822, %v2046
      %v2048 = vpop.f32.mrf.mxu0
      %2049 = vmatprep.mubr.bf16.mxu0 %v976
      %2050 = vmatmul.mubr.bf16.gmra.mxu0 %v975
      %v2051 = vpop.f32.mrf.mxu0
      %v2052 = vadd.f32 %v1827, %v2051
      %v2053 = vpop.f32.mrf.mxu0
      %v2054 = vpop.f32.mrf.mxu0
      %v2055 = vadd.f32 %v1830, %v2054
      %v2056 = vpop.f32.mrf.mxu0
      %2057 = vmatprep.mubr.bf16.mxu0 %v982
      %2058 = vmatmul.mubr.bf16.gmra.mxu0 %v981
      %v2059 = vpop.f32.mrf.mxu0
      %v2060 = vadd.f32 %v1835, %v2059
      %v2061 = vpop.f32.mrf.mxu0
      %v2062 = vpop.f32.mrf.mxu0
      %v2063 = vadd.f32 %v1838, %v2062
      %v2064 = vpop.f32.mrf.mxu0
      %2065 = vmatprep.mubr.bf16.mxu0 %v988
      %2066 = vmatmul.mubr.bf16.gmra.mxu0 %v987
      %v2067 = vpop.f32.mrf.mxu0
      %v2068 = vadd.f32 %v1843, %v2067
      %v2069 = vpop.f32.mrf.mxu0
      %v2070 = vpop.f32.mrf.mxu0
      %v2071 = vadd.f32 %v1846, %v2070
      %v2072 = vpop.f32.mrf.mxu0
      %2073 = vmatprep.mubr.bf16.mxu0 %v994
      %2074 = vmatmul.mubr.bf16.gmra.mxu0 %v993
      %v2075 = vpop.f32.mrf.mxu0
      %v2076 = vadd.f32 %v1851, %v2075
      %v2077 = vpop.f32.mrf.mxu0
      %v2078 = vpop.f32.mrf.mxu0
      %v2079 = vadd.f32 %v1854, %v2078
      %v2080 = vpop.f32.mrf.mxu0
      %2081 = vmatprep.mubr.bf16.mxu0 %v1000
      %2082 = vmatmul.mubr.bf16.gmra.mxu0 %v999
      %v2083 = vpop.f32.mrf.mxu0
      %v2084 = vadd.f32 %v1859, %v2083
      %v2085 = vpop.f32.mrf.mxu0
      %v2086 = vpop.f32.mrf.mxu0
      %v2087 = vadd.f32 %v1862, %v2086
      %v2088 = vpop.f32.mrf.mxu0
      %2089 = vmatprep.mubr.bf16.mxu0 %v1006
      %2090 = vmatmul.mubr.bf16.gmra.mxu0 %v1005
      %v2091 = vpop.f32.mrf.mxu0
      %v2092 = vadd.f32 %v1867, %v2091
      %v2093 = vpop.f32.mrf.mxu0
      %v2094 = vpop.f32.mrf.mxu0
      %v2095 = vadd.f32 %v1870, %v2094
      %v2096 = vpop.f32.mrf.mxu0
      %2097 = vmatprep.mubr.bf16.mxu0 %v1012
      %2098 = vmatmul.mubr.bf16.gmra.mxu0 %v1011
      %v2099 = vpop.f32.mrf.mxu0
      %v2100 = vadd.f32 %v1875, %v2099
      %v2101 = vpop.f32.mrf.mxu0
      %v2102 = vpop.f32.mrf.mxu0
      %v2103 = vadd.f32 %v1878, %v2102
      %v2104 = vpop.f32.mrf.mxu0
      %2105 = vmatprep.mubr.bf16.mxu0 %v1018
      %2106 = vmatmul.mubr.bf16.gmra.mxu0 %v1017
      %v2107 = vpop.f32.mrf.mxu0
      %v2108 = vadd.f32 %v1883, %v2107
      %v2109 = vpop.f32.mrf.mxu0
      %v2110 = vpop.f32.mrf.mxu0
      %v2111 = vadd.f32 %v1886, %v2110
      %v2112 = vpop.f32.mrf.mxu0
      %2113 = vmatprep.mubr.bf16.mxu0 %v1024
      %2114 = vmatmul.mubr.bf16.gmra.mxu0 %v1023
      %v2115 = vpop.f32.mrf.mxu0
      %v2116 = vadd.f32 %v1891, %v2115
      %v2117 = vpop.f32.mrf.mxu0
      %v2118 = vpop.f32.mrf.mxu0
      %v2119 = vadd.f32 %v1894, %v2118
      %v2120 = vpop.f32.mrf.mxu0
      %2121 = vmatprep.mubr.bf16.mxu0 %v1030
      %2122 = vmatmul.mubr.bf16.gmra.mxu0 %v1029
      %v2123 = vpop.f32.mrf.mxu0
      %v2124 = vadd.f32 %v1899, %v2123
      %v2125 = vpop.f32.mrf.mxu0
      %v2126 = vpop.f32.mrf.mxu0
      %v2127 = vadd.f32 %v1902, %v2126
      %v2128 = vpop.f32.mrf.mxu0
      %2129 = vmatprep.mubr.bf16.mxu0 %v1036
      %2130 = vmatmul.mubr.bf16.gmra.mxu0 %v1035
      %v2131 = vpop.f32.mrf.mxu0
      %v2132 = vadd.f32 %v1907, %v2131
      %v2133 = vpop.f32.mrf.mxu0
      %v2134 = vpop.f32.mrf.mxu0
      %v2135 = vadd.f32 %v1910, %v2134
      %v2136 = vpop.f32.mrf.mxu0
      %2137 = vmatprep.mubr.bf16.mxu0 %v1042
      %2138 = vmatmul.mubr.bf16.gmra.mxu0 %v1041
      %v2139 = vpop.f32.mrf.mxu0
      %v2140 = vadd.f32 %v1915, %v2139
      %v2141 = vpop.f32.mrf.mxu0
      %v2142 = vpop.f32.mrf.mxu0
      %v2143 = vadd.f32 %v1918, %v2142
      %v2144 = vpop.f32.mrf.mxu0
      %2145 = vmatprep.mubr.bf16.mxu0 %v1048
      %2146 = vmatmul.mubr.bf16.gmra.mxu0 %v1047
      %v2147 = vpop.f32.mrf.mxu0
      %v2148 = vadd.f32 %v1923, %v2147
      %v2149 = vpop.f32.mrf.mxu0
      %v2150 = vpop.f32.mrf.mxu0
      %v2151 = vadd.f32 %v1926, %v2150
      %v2152 = vpop.f32.mrf.mxu0
      %2153 = vmatprep.mubr.bf16.mxu0 %v1054
      %2154 = vmatmul.mubr.bf16.gmra.mxu0 %v1053
      %v2155 = vpop.f32.mrf.mxu0
      %v2156 = vadd.f32 %v1931, %v2155
      %v2157 = vpop.f32.mrf.mxu0
      %v2158 = vpop.f32.mrf.mxu0
      %v2159 = vadd.f32 %v1934, %v2158
      %v2160 = vpop.f32.mrf.mxu0
      %2161 = vdwg.mxu0
      %vm2162 = vcmp.gt.f32.partialorder %v1972, 0.0
      %vm2163 = vcmp.gt.f32.partialorder %v1975, 0.0
      %vm2164 = vcmp.gt.f32.partialorder %v1980, 0.0
      %vm2165 = vcmp.gt.f32.partialorder %v1983, 0.0
      %vm2166 = vcmp.gt.f32.partialorder %v1988, 0.0
      %vm2167 = vcmp.gt.f32.partialorder %v1991, 0.0
      %vm2168 = vcmp.gt.f32.partialorder %v1996, 0.0
      %vm2169 = vcmp.gt.f32.partialorder %v1999, 0.0
      %vm2170 = vcmp.gt.f32.partialorder %v2004, 0.0
      %vm2171 = vcmp.gt.f32.partialorder %v2007, 0.0
      %vm2172 = vcmp.gt.f32.partialorder %v2012, 0.0
      %vm2173 = vcmp.gt.f32.partialorder %v2015, 0.0
      %vm2174 = vcmp.gt.f32.partialorder %v2020, 0.0
      %vm2175 = vcmp.gt.f32.partialorder %v2023, 0.0
      %vm2176 = vcmp.gt.f32.partialorder %v2028, 0.0
      %vm2177 = vcmp.gt.f32.partialorder %v2031, 0.0
      %vm2178 = vcmp.gt.f32.partialorder %v2036, 0.0
      %vm2179 = vcmp.gt.f32.partialorder %v2039, 0.0
      %vm2180 = vcmp.gt.f32.partialorder %v2044, 0.0
      %vm2181 = vcmp.gt.f32.partialorder %v2047, 0.0
      %vm2182 = vcmp.gt.f32.partialorder %v2052, 0.0
      %vm2183 = vcmp.gt.f32.partialorder %v2055, 0.0
      %vm2184 = vcmp.gt.f32.partialorder %v2060, 0.0
      %vm2185 = vcmp.gt.f32.partialorder %v2063, 0.0
      %vm2186 = vcmp.gt.f32.partialorder %v2068, 0.0
      %vm2187 = vcmp.gt.f32.partialorder %v2071, 0.0
      %vm2188 = vcmp.gt.f32.partialorder %v2076, 0.0
      %vm2189 = vcmp.gt.f32.partialorder %v2079, 0.0
      %vm2190 = vcmp.gt.f32.partialorder %v2084, 0.0
      %vm2191 = vcmp.gt.f32.partialorder %v2087, 0.0
      %vm2192 = vcmp.gt.f32.partialorder %v2092, 0.0
      %vm2193 = vcmp.gt.f32.partialorder %v2095, 0.0
      %vm2194 = vcmp.gt.f32.partialorder %v2100, 0.0
      %vm2195 = vcmp.gt.f32.partialorder %v2103, 0.0
      %vm2196 = vcmp.gt.f32.partialorder %v2108, 0.0
      %vm2197 = vcmp.gt.f32.partialorder %v2111, 0.0
      %vm2198 = vcmp.gt.f32.partialorder %v2116, 0.0
      %vm2199 = vcmp.gt.f32.partialorder %v2119, 0.0
      %vm2200 = vcmp.gt.f32.partialorder %v2124, 0.0
      %vm2201 = vcmp.gt.f32.partialorder %v2127, 0.0
      %vm2202 = vcmp.gt.f32.partialorder %v2132, 0.0
      %vm2203 = vcmp.gt.f32.partialorder %v2135, 0.0
      %vm2204 = vcmp.gt.f32.partialorder %v2140, 0.0
      %vm2205 = vcmp.gt.f32.partialorder %v2143, 0.0
      %vm2206 = vcmp.gt.f32.partialorder %v2148, 0.0
      %vm2207 = vcmp.gt.f32.partialorder %v2151, 0.0
      %vm2208 = vcmp.gt.f32.partialorder %v2156, 0.0
      %vm2209 = vcmp.gt.f32.partialorder %v2159, 0.0
      %v2210 = vmin.f32 %v1972, 0.0
      %v2211 = vmin.f32 %v1975, 0.0
      %v2212 = vmin.f32 %v1980, 0.0
      %v2213 = vmin.f32 %v1983, 0.0
      %v2214 = vmin.f32 %v1988, 0.0
      %v2215 = vmin.f32 %v1991, 0.0
      %v2216 = vmin.f32 %v1996, 0.0
      %v2217 = vmin.f32 %v1999, 0.0
      %v2218 = vmin.f32 %v2004, 0.0
      %v2219 = vmin.f32 %v2007, 0.0
      %v2220 = vmin.f32 %v2012, 0.0
      %v2221 = vmin.f32 %v2015, 0.0
      %v2222 = vmin.f32 %v2020, 0.0
      %v2223 = vmin.f32 %v2023, 0.0
      %v2224 = vmin.f32 %v2028, 0.0
      %v2225 = vmin.f32 %v2031, 0.0
      %v2226 = vmin.f32 %v2036, 0.0
      %v2227 = vmin.f32 %v2039, 0.0
      %v2228 = vmin.f32 %v2044, 0.0
      %v2229 = vmin.f32 %v2047, 0.0
      %v2230 = vmin.f32 %v2052, 0.0
      %v2231 = vmin.f32 %v2055, 0.0
      %v2232 = vmin.f32 %v2060, 0.0
      %v2233 = vmin.f32 %v2063, 0.0
      %v2234 = vmin.f32 %v2068, 0.0
      %v2235 = vmin.f32 %v2071, 0.0
      %v2236 = vmin.f32 %v2076, 0.0
      %v2237 = vmin.f32 %v2079, 0.0
      %v2238 = vmin.f32 %v2084, 0.0
      %v2239 = vmin.f32 %v2087, 0.0
      %v2240 = vmin.f32 %v2092, 0.0
      %v2241 = vmin.f32 %v2095, 0.0
      %v2242 = vmin.f32 %v2100, 0.0
      %v2243 = vmin.f32 %v2103, 0.0
      %v2244 = vmin.f32 %v2108, 0.0
      %v2245 = vmin.f32 %v2111, 0.0
      %v2246 = vmin.f32 %v2116, 0.0
      %v2247 = vmin.f32 %v2119, 0.0
      %v2248 = vmin.f32 %v2124, 0.0
      %v2249 = vmin.f32 %v2127, 0.0
      %v2250 = vmin.f32 %v2132, 0.0
      %v2251 = vmin.f32 %v2135, 0.0
      %v2252 = vmin.f32 %v2140, 0.0
      %v2253 = vmin.f32 %v2143, 0.0
      %v2254 = vmin.f32 %v2148, 0.0
      %v2255 = vmin.f32 %v2151, 0.0
      %v2256 = vmin.f32 %v2156, 0.0
      %v2257 = vmin.f32 %v2159, 0.0
      %v2258 = vmul.f32 %v2210, 1.442695
      %v2259 = vpow.pop %v2258
      %v2260 = vmul.f32 %v2211, 1.442695
      %v2261 = vpow.pop %v2260
      %v2262 = vmul.f32 %v2212, 1.442695
      %v2263 = vpow.pop %v2262
      %v2264 = vmul.f32 %v2213, 1.442695
      %v2265 = vpow.pop %v2264
      %v2266 = vmul.f32 %v2214, 1.442695
      %v2267 = vpow.pop %v2266
      %v2268 = vmul.f32 %v2215, 1.442695
      %v2269 = vpow.pop %v2268
      %v2270 = vmul.f32 %v2216, 1.442695
      %v2271 = vpow.pop %v2270
      %v2272 = vmul.f32 %v2217, 1.442695
      %v2273 = vpow.pop %v2272
      %v2274 = vmul.f32 %v2218, 1.442695
      %v2275 = vpow.pop %v2274
      %v2276 = vmul.f32 %v2219, 1.442695
      %v2277 = vpow.pop %v2276
      %v2278 = vmul.f32 %v2220, 1.442695
      %v2279 = vpow.pop %v2278
      %v2280 = vmul.f32 %v2221, 1.442695
      %v2281 = vpow.pop %v2280
      %v2282 = vmul.f32 %v2222, 1.442695
      %v2283 = vpow.pop %v2282
      %v2284 = vmul.f32 %v2223, 1.442695
      %v2285 = vpow.pop %v2284
      %v2286 = vmul.f32 %v2224, 1.442695
      %v2287 = vpow.pop %v2286
      %v2288 = vmul.f32 %v2225, 1.442695
      %v2289 = vpow.pop %v2288
      %v2290 = vmul.f32 %v2226, 1.442695
      %v2291 = vpow.pop %v2290
      %v2292 = vmul.f32 %v2227, 1.442695
      %v2293 = vpow.pop %v2292
      %v2294 = vmul.f32 %v2228, 1.442695
      %v2295 = vpow.pop %v2294
      %v2296 = vmul.f32 %v2229, 1.442695
      %v2297 = vpow.pop %v2296
      %v2298 = vmul.f32 %v2230, 1.442695
      %v2299 = vpow.pop %v2298
      %v2300 = vmul.f32 %v2231, 1.442695
      %v2301 = vpow.pop %v2300
      %v2302 = vmul.f32 %v2232, 1.442695
      %v2303 = vpow.pop %v2302
      %v2304 = vmul.f32 %v2233, 1.442695
      %v2305 = vpow.pop %v2304
      %v2306 = vmul.f32 %v2234, 1.442695
      %v2307 = vpow.pop %v2306
      %v2308 = vmul.f32 %v2235, 1.442695
      %v2309 = vpow.pop %v2308
      %v2310 = vmul.f32 %v2236, 1.442695
      %v2311 = vpow.pop %v2310
      %v2312 = vmul.f32 %v2237, 1.442695
      %v2313 = vpow.pop %v2312
      %v2314 = vmul.f32 %v2238, 1.442695
      %v2315 = vpow.pop %v2314
      %v2316 = vmul.f32 %v2239, 1.442695
      %v2317 = vpow.pop %v2316
      %v2318 = vmul.f32 %v2240, 1.442695
      %v2319 = vpow.pop %v2318
      %v2320 = vmul.f32 %v2241, 1.442695
      %v2321 = vpow.pop %v2320
      %v2322 = vmul.f32 %v2242, 1.442695
      %v2323 = vpow.pop %v2322
      %v2324 = vmul.f32 %v2243, 1.442695
      %v2325 = vpow.pop %v2324
      %v2326 = vmul.f32 %v2244, 1.442695
      %v2327 = vpow.pop %v2326
      %v2328 = vmul.f32 %v2245, 1.442695
      %v2329 = vpow.pop %v2328
      %v2330 = vmul.f32 %v2246, 1.442695
      %v2331 = vpow.pop %v2330
      %v2332 = vmul.f32 %v2247, 1.442695
      %v2333 = vpow.pop %v2332
      %v2334 = vmul.f32 %v2248, 1.442695
      %v2335 = vpow.pop %v2334
      %v2336 = vmul.f32 %v2249, 1.442695
      %v2337 = vpow.pop %v2336
      %v2338 = vmul.f32 %v2250, 1.442695
      %v2339 = vpow.pop %v2338
      %v2340 = vmul.f32 %v2251, 1.442695
      %v2341 = vpow.pop %v2340
      %v2342 = vmul.f32 %v2252, 1.442695
      %v2343 = vpow.pop %v2342
      %v2344 = vmul.f32 %v2253, 1.442695
      %v2345 = vpow.pop %v2344
      %v2346 = vmul.f32 %v2254, 1.442695
      %v2347 = vpow.pop %v2346
      %v2348 = vmul.f32 %v2255, 1.442695
      %v2349 = vpow.pop %v2348
      %v2350 = vmul.f32 %v2256, 1.442695
      %v2351 = vpow.pop %v2350
      %v2352 = vmul.f32 %v2257, 1.442695
      %v2353 = vpow.pop %v2352
      %v2354 = vsub.f32 %v2259, 1.0
      %v2355 = vsub.f32 %v2261, 1.0
      %v2356 = vsub.f32 %v2263, 1.0
      %v2357 = vsub.f32 %v2265, 1.0
      %v2358 = vsub.f32 %v2267, 1.0
      %v2359 = vsub.f32 %v2269, 1.0
      %v2360 = vsub.f32 %v2271, 1.0
      %v2361 = vsub.f32 %v2273, 1.0
      %v2362 = vsub.f32 %v2275, 1.0
      %v2363 = vsub.f32 %v2277, 1.0
      %v2364 = vsub.f32 %v2279, 1.0
      %v2365 = vsub.f32 %v2281, 1.0
      %v2366 = vsub.f32 %v2283, 1.0
      %v2367 = vsub.f32 %v2285, 1.0
      %v2368 = vsub.f32 %v2287, 1.0
      %v2369 = vsub.f32 %v2289, 1.0
      %v2370 = vsub.f32 %v2291, 1.0
      %v2371 = vsub.f32 %v2293, 1.0
      %v2372 = vsub.f32 %v2295, 1.0
      %v2373 = vsub.f32 %v2297, 1.0
      %v2374 = vsub.f32 %v2299, 1.0
      %v2375 = vsub.f32 %v2301, 1.0
      %v2376 = vsub.f32 %v2303, 1.0
      %v2377 = vsub.f32 %v2305, 1.0
      %v2378 = vsub.f32 %v2307, 1.0
      %v2379 = vsub.f32 %v2309, 1.0
      %v2380 = vsub.f32 %v2311, 1.0
      %v2381 = vsub.f32 %v2313, 1.0
      %v2382 = vsub.f32 %v2315, 1.0
      %v2383 = vsub.f32 %v2317, 1.0
      %v2384 = vsub.f32 %v2319, 1.0
      %v2385 = vsub.f32 %v2321, 1.0
      %v2386 = vsub.f32 %v2323, 1.0
      %v2387 = vsub.f32 %v2325, 1.0
      %v2388 = vsub.f32 %v2327, 1.0
      %v2389 = vsub.f32 %v2329, 1.0
      %v2390 = vsub.f32 %v2331, 1.0
      %v2391 = vsub.f32 %v2333, 1.0
      %v2392 = vsub.f32 %v2335, 1.0
      %v2393 = vsub.f32 %v2337, 1.0
      %v2394 = vsub.f32 %v2339, 1.0
      %v2395 = vsub.f32 %v2341, 1.0
      %v2396 = vsub.f32 %v2343, 1.0
      %v2397 = vsub.f32 %v2345, 1.0
      %v2398 = vsub.f32 %v2347, 1.0
      %v2399 = vsub.f32 %v2349, 1.0
      %v2400 = vsub.f32 %v2351, 1.0
      %v2401 = vsub.f32 %v2353, 1.0
      %v2402 = vsel %vm2162, %v1972, %v2354
      %v2403 = vsel %vm2163, %v1975, %v2355
      %v2404 = vsel %vm2164, %v1980, %v2356
      %v2405 = vsel %vm2165, %v1983, %v2357
      %v2406 = vsel %vm2166, %v1988, %v2358
      %v2407 = vsel %vm2167, %v1991, %v2359
      %v2408 = vsel %vm2168, %v1996, %v2360
      %v2409 = vsel %vm2169, %v1999, %v2361
      %v2410 = vsel %vm2170, %v2004, %v2362
      %v2411 = vsel %vm2171, %v2007, %v2363
      %v2412 = vsel %vm2172, %v2012, %v2364
      %v2413 = vsel %vm2173, %v2015, %v2365
      %v2414 = vsel %vm2174, %v2020, %v2366
      %v2415 = vsel %vm2175, %v2023, %v2367
      %v2416 = vsel %vm2176, %v2028, %v2368
      %v2417 = vsel %vm2177, %v2031, %v2369
      %v2418 = vsel %vm2178, %v2036, %v2370
      %v2419 = vsel %vm2179, %v2039, %v2371
      %v2420 = vsel %vm2180, %v2044, %v2372
      %v2421 = vsel %vm2181, %v2047, %v2373
      %v2422 = vsel %vm2182, %v2052, %v2374
      %v2423 = vsel %vm2183, %v2055, %v2375
      %v2424 = vsel %vm2184, %v2060, %v2376
      %v2425 = vsel %vm2185, %v2063, %v2377
      %v2426 = vsel %vm2186, %v2068, %v2378
      %v2427 = vsel %vm2187, %v2071, %v2379
      %v2428 = vsel %vm2188, %v2076, %v2380
      %v2429 = vsel %vm2189, %v2079, %v2381
      %v2430 = vsel %vm2190, %v2084, %v2382
      %v2431 = vsel %vm2191, %v2087, %v2383
      %v2432 = vsel %vm2192, %v2092, %v2384
      %v2433 = vsel %vm2193, %v2095, %v2385
      %v2434 = vsel %vm2194, %v2100, %v2386
      %v2435 = vsel %vm2195, %v2103, %v2387
      %v2436 = vsel %vm2196, %v2108, %v2388
      %v2437 = vsel %vm2197, %v2111, %v2389
      %v2438 = vsel %vm2198, %v2116, %v2390
      %v2439 = vsel %vm2199, %v2119, %v2391
      %v2440 = vsel %vm2200, %v2124, %v2392
      %v2441 = vsel %vm2201, %v2127, %v2393
      %v2442 = vsel %vm2202, %v2132, %v2394
      %v2443 = vsel %vm2203, %v2135, %v2395
      %v2444 = vsel %vm2204, %v2140, %v2396
      %v2445 = vsel %vm2205, %v2143, %v2397
      %v2446 = vsel %vm2206, %v2148, %v2398
      %v2447 = vsel %vm2207, %v2151, %v2399
      %v2448 = vsel %vm2208, %v2156, %v2400
      %v2449 = vsel %vm2209, %v2159, %v2401
      %v2450 = vpack.c.bf16 %v2403, %v2402
      %v2451 = vpack.c.bf16 %v2405, %v2404
      %v2452 = vpack.c.bf16 %v2407, %v2406
      %v2453 = vpack.c.bf16 %v2409, %v2408
      %v2454 = vpack.c.bf16 %v2411, %v2410
      %v2455 = vpack.c.bf16 %v2413, %v2412
      %v2456 = vpack.c.bf16 %v2415, %v2414
      %v2457 = vpack.c.bf16 %v2417, %v2416
      %v2458 = vpack.c.bf16 %v2419, %v2418
      %v2459 = vpack.c.bf16 %v2421, %v2420
      %v2460 = vpack.c.bf16 %v2423, %v2422
      %v2461 = vpack.c.bf16 %v2425, %v2424
      %v2462 = vpack.c.bf16 %v2427, %v2426
      %v2463 = vpack.c.bf16 %v2429, %v2428
      %v2464 = vpack.c.bf16 %v2431, %v2430
      %v2465 = vpack.c.bf16 %v2433, %v2432
      %v2466 = vpack.c.bf16 %v2435, %v2434
      %v2467 = vpack.c.bf16 %v2437, %v2436
      %v2468 = vpack.c.bf16 %v2439, %v2438
      %v2469 = vpack.c.bf16 %v2441, %v2440
      %v2470 = vpack.c.bf16 %v2443, %v2442
      %v2471 = vpack.c.bf16 %v2445, %v2444
      %v2472 = vpack.c.bf16 %v2447, %v2446
      %v2473 = vpack.c.bf16 %v2449, %v2448
      %v2474 = vld [vmem:[%s3] sm:$0xf]
      %v2475 = vld [vmem:[%s3 + $0x4] sm:$0xf]
      %v2476 = vld [vmem:[%s3 + $0x8] sm:$0xf]
      %v2477 = vld [vmem:[%s3 + $0xc] sm:$0xf]
      %v2478 = vld [vmem:[%s3 + $0x10] sm:$0xf]
      %v2479 = vld [vmem:[%s3 + $0x14] sm:$0xf]
      %v2480 = vld [vmem:[%s3 + $0x18] sm:$0xf]
      %v2481 = vld [vmem:[%s3 + $0x1c] sm:$0xf]
      %v2482 = vld [vmem:[%s3 + $0x20] sm:$0xf]
      %v2483 = vld [vmem:[%s3 + $0x24] sm:$0xf]
      %v2484 = vld [vmem:[%s3 + $0x28] sm:$0xf]
      %v2485 = vld [vmem:[%s3 + $0x2c] sm:$0xf]
      %v2486 = vld [vmem:[%s3 + $0x30] sm:$0xf]
      %v2487 = vld [vmem:[%s3 + $0x34] sm:$0xf]
      %v2488 = vld [vmem:[%s3 + $0x38] sm:$0xf]
      %v2489 = vld [vmem:[%s3 + $0x3c] sm:$0xf]
      %v2490 = vld [vmem:[%s4] sm:$0x1]
      %v2492 = vlaneseq
      %v2493 = vshrl.u32 %v2492, 7
      %v2494 = vsub.s32 0, %v2493
      %v2495 = vrot.slane %v2490, %v2494
      %v2513 = vunpack.c.l.b16 %v2474
      %v2514 = vunpack.c.l.b16 %v2475
      %v2515 = vunpack.c.l.b16 %v2476
      %v2516 = vunpack.c.l.b16 %v2477
      %v2517 = vunpack.c.l.b16 %v2478
      %v2518 = vunpack.c.l.b16 %v2479
      %v2519 = vunpack.c.l.b16 %v2480
      %v2520 = vunpack.c.l.b16 %v2481
      %v2521 = vunpack.c.l.b16 %v2482
      %v2522 = vunpack.c.l.b16 %v2483
      %v2523 = vunpack.c.l.b16 %v2484
      %v2524 = vunpack.c.l.b16 %v2485
      %v2525 = vunpack.c.l.b16 %v2486
      %v2526 = vunpack.c.l.b16 %v2487
      %v2527 = vunpack.c.l.b16 %v2488
      %v2528 = vunpack.c.l.b16 %v2489
      %v2529 = vpack.c.b16 %v2514, %v2513
      %v2530 = vpack.c.b16 %v2516, %v2515
      %v2531 = vpack.c.b16 %v2518, %v2517
      %v2532 = vpack.c.b16 %v2520, %v2519
      %v2533 = vpack.c.b16 %v2522, %v2521
      %v2534 = vpack.c.b16 %v2524, %v2523
      %v2535 = vpack.c.b16 %v2526, %v2525
      %v2536 = vpack.c.b16 %v2528, %v2527
      %2545 = vmatprep.subr.bf16.mxu0 0
      %2546 = vmatpush1.bf16.msra.mxu0 %v2536
      %2547 = vmatprep.subr.bf16.mxu0 0
      %2548 = vmatpush1.bf16.msra.mxu0 %v2535
      %2549 = vmatprep.subr.bf16.mxu0 0
      %2550 = vmatpush1.bf16.msra.mxu0 %v2534
      %2551 = vmatprep.subr.bf16.mxu0 0
      %2552 = vmatpush1.bf16.msra.mxu0 %v2533
      %2553 = vmatprep.subr.bf16.mxu0 0
      %2554 = vmatpush1.bf16.msra.mxu0 %v2532
      %2555 = vmatprep.subr.bf16.mxu0 0
      %2556 = vmatpush1.bf16.msra.mxu0 %v2531
      %2557 = vmatprep.subr.bf16.mxu0 0
      %2558 = vmatpush1.bf16.msra.mxu0 %v2530
      %2559 = vmatprep.subr.bf16.mxu0 0
      %2560 = vmatpush1.bf16.msra.mxu0 %v2529
      %2561 = vmatprep.subr.bf16.mxu0 0
      %2562 = vmatpush2.bf16.msra.mxu0 0
      %2563 = vmatprep.subr.bf16.mxu0 0
      %2564 = vmatpush2.bf16.msra.mxu0 0
      %2565 = vmatprep.subr.bf16.mxu0 0
      %2566 = vmatpush2.bf16.msra.mxu0 0
      %2567 = vmatprep.subr.bf16.mxu0 0
      %2568 = vmatpush2.bf16.msra.mxu0 0
      %2569 = vmatprep.subr.bf16.mxu0 0
      %2570 = vmatpush2.bf16.msra.mxu0 0
      %2571 = vmatprep.subr.bf16.mxu0 0
      %2572 = vmatpush2.bf16.msra.mxu0 0
      %2573 = vmatprep.subr.bf16.mxu0 0
      %2574 = vmatpush2.bf16.msra.mxu0 0
      %2575 = vmatprep.subr.bf16.mxu0 0
      %2576 = vmatpush2.bf16.msra.mxu0 0
      %2577 = vmatprep.mubr.bf16.mxu0 0
      %2578 = vmatmul.mubr.bf16.gmra.mxu0 %v2450
      %v2579 = vpop.f32.mrf.mxu0
      %v2580 = vadd.f32 %v2495, %v2579
      %v2581 = vpop.f32.mrf.mxu0
      %v2582 = vpop.f32.mrf.mxu0
      %v2583 = vadd.f32 %v2495, %v2582
      %v2584 = vpop.f32.mrf.mxu0
      %2585 = vmatprep.mubr.bf16.mxu0 0
      %2586 = vmatmul.mubr.bf16.gmra.mxu0 %v2451
      %v2587 = vpop.f32.mrf.mxu0
      %v2588 = vadd.f32 %v2495, %v2587
      %v2589 = vpop.f32.mrf.mxu0
      %v2590 = vpop.f32.mrf.mxu0
      %v2591 = vadd.f32 %v2495, %v2590
      %v2592 = vpop.f32.mrf.mxu0
      %2593 = vmatprep.mubr.bf16.mxu0 0
      %2594 = vmatmul.mubr.bf16.gmra.mxu0 %v2452
      %v2595 = vpop.f32.mrf.mxu0
      %v2596 = vadd.f32 %v2495, %v2595
      %v2597 = vpop.f32.mrf.mxu0
      %v2598 = vpop.f32.mrf.mxu0
      %v2599 = vadd.f32 %v2495, %v2598
      %v2600 = vpop.f32.mrf.mxu0
      %2601 = vmatprep.mubr.bf16.mxu0 0
      %2602 = vmatmul.mubr.bf16.gmra.mxu0 %v2453
      %v2603 = vpop.f32.mrf.mxu0
      %v2604 = vadd.f32 %v2495, %v2603
      %v2605 = vpop.f32.mrf.mxu0
      %v2606 = vpop.f32.mrf.mxu0
      %v2607 = vadd.f32 %v2495, %v2606
      %v2608 = vpop.f32.mrf.mxu0
      %2609 = vmatprep.mubr.bf16.mxu0 0
      %2610 = vmatmul.mubr.bf16.gmra.mxu0 %v2454
      %v2611 = vpop.f32.mrf.mxu0
      %v2612 = vadd.f32 %v2495, %v2611
      %v2613 = vpop.f32.mrf.mxu0
      %v2614 = vpop.f32.mrf.mxu0
      %v2615 = vadd.f32 %v2495, %v2614
      %v2616 = vpop.f32.mrf.mxu0
      %2617 = vmatprep.mubr.bf16.mxu0 0
      %2618 = vmatmul.mubr.bf16.gmra.mxu0 %v2455
      %v2619 = vpop.f32.mrf.mxu0
      %v2620 = vadd.f32 %v2495, %v2619
      %v2621 = vpop.f32.mrf.mxu0
      %v2622 = vpop.f32.mrf.mxu0
      %v2623 = vadd.f32 %v2495, %v2622
      %v2624 = vpop.f32.mrf.mxu0
      %2625 = vmatprep.mubr.bf16.mxu0 0
      %2626 = vmatmul.mubr.bf16.gmra.mxu0 %v2456
      %v2627 = vpop.f32.mrf.mxu0
      %v2628 = vadd.f32 %v2495, %v2627
      %v2629 = vpop.f32.mrf.mxu0
      %v2630 = vpop.f32.mrf.mxu0
      %v2631 = vadd.f32 %v2495, %v2630
      %v2632 = vpop.f32.mrf.mxu0
      %2633 = vmatprep.mubr.bf16.mxu0 0
      %2634 = vmatmul.mubr.bf16.gmra.mxu0 %v2457
      %v2635 = vpop.f32.mrf.mxu0
      %v2636 = vadd.f32 %v2495, %v2635
      %v2637 = vpop.f32.mrf.mxu0
      %v2638 = vpop.f32.mrf.mxu0
      %v2639 = vadd.f32 %v2495, %v2638
      %v2640 = vpop.f32.mrf.mxu0
      %2641 = vmatprep.mubr.bf16.mxu0 0
      %2642 = vmatmul.mubr.bf16.gmra.mxu0 %v2458
      %v2643 = vpop.f32.mrf.mxu0
      %v2644 = vadd.f32 %v2495, %v2643
      %v2645 = vpop.f32.mrf.mxu0
      %v2646 = vpop.f32.mrf.mxu0
      %v2647 = vadd.f32 %v2495, %v2646
      %v2648 = vpop.f32.mrf.mxu0
      %2649 = vmatprep.mubr.bf16.mxu0 0
      %2650 = vmatmul.mubr.bf16.gmra.mxu0 %v2459
      %v2651 = vpop.f32.mrf.mxu0
      %v2652 = vadd.f32 %v2495, %v2651
      %v2653 = vpop.f32.mrf.mxu0
      %v2654 = vpop.f32.mrf.mxu0
      %v2655 = vadd.f32 %v2495, %v2654
      %v2656 = vpop.f32.mrf.mxu0
      %2657 = vmatprep.mubr.bf16.mxu0 0
      %2658 = vmatmul.mubr.bf16.gmra.mxu0 %v2460
      %v2659 = vpop.f32.mrf.mxu0
      %v2660 = vadd.f32 %v2495, %v2659
      %v2661 = vpop.f32.mrf.mxu0
      %v2662 = vpop.f32.mrf.mxu0
      %v2663 = vadd.f32 %v2495, %v2662
      %v2664 = vpop.f32.mrf.mxu0
      %2665 = vmatprep.mubr.bf16.mxu0 0
      %2666 = vmatmul.mubr.bf16.gmra.mxu0 %v2461
      %v2667 = vpop.f32.mrf.mxu0
      %v2668 = vadd.f32 %v2495, %v2667
      %v2669 = vpop.f32.mrf.mxu0
      %v2670 = vpop.f32.mrf.mxu0
      %v2671 = vadd.f32 %v2495, %v2670
      %v2672 = vpop.f32.mrf.mxu0
      %2673 = vmatprep.mubr.bf16.mxu0 0
      %2674 = vmatmul.mubr.bf16.gmra.mxu0 %v2462
      %v2675 = vpop.f32.mrf.mxu0
      %v2676 = vadd.f32 %v2495, %v2675
      %v2677 = vpop.f32.mrf.mxu0
      %v2678 = vpop.f32.mrf.mxu0
      %v2679 = vadd.f32 %v2495, %v2678
      %v2680 = vpop.f32.mrf.mxu0
      %2681 = vmatprep.mubr.bf16.mxu0 0
      %2682 = vmatmul.mubr.bf16.gmra.mxu0 %v2463
      %v2683 = vpop.f32.mrf.mxu0
      %v2684 = vadd.f32 %v2495, %v2683
      %v2685 = vpop.f32.mrf.mxu0
      %v2686 = vpop.f32.mrf.mxu0
      %v2687 = vadd.f32 %v2495, %v2686
      %v2688 = vpop.f32.mrf.mxu0
      %2689 = vmatprep.mubr.bf16.mxu0 0
      %2690 = vmatmul.mubr.bf16.gmra.mxu0 %v2464
      %v2691 = vpop.f32.mrf.mxu0
      %v2692 = vadd.f32 %v2495, %v2691
      %v2693 = vpop.f32.mrf.mxu0
      %v2694 = vpop.f32.mrf.mxu0
      %v2695 = vadd.f32 %v2495, %v2694
      %v2696 = vpop.f32.mrf.mxu0
      %2697 = vmatprep.mubr.bf16.mxu0 0
      %2698 = vmatmul.mubr.bf16.gmra.mxu0 %v2465
      %v2699 = vpop.f32.mrf.mxu0
      %v2700 = vadd.f32 %v2495, %v2699
      %v2701 = vpop.f32.mrf.mxu0
      %v2702 = vpop.f32.mrf.mxu0
      %v2703 = vadd.f32 %v2495, %v2702
      %v2704 = vpop.f32.mrf.mxu0
      %2705 = vmatprep.mubr.bf16.mxu0 0
      %2706 = vmatmul.mubr.bf16.gmra.mxu0 %v2466
      %v2707 = vpop.f32.mrf.mxu0
      %v2708 = vadd.f32 %v2495, %v2707
      %v2709 = vpop.f32.mrf.mxu0
      %v2710 = vpop.f32.mrf.mxu0
      %v2711 = vadd.f32 %v2495, %v2710
      %v2712 = vpop.f32.mrf.mxu0
      %2713 = vmatprep.mubr.bf16.mxu0 0
      %2714 = vmatmul.mubr.bf16.gmra.mxu0 %v2467
      %v2715 = vpop.f32.mrf.mxu0
      %v2716 = vadd.f32 %v2495, %v2715
      %v2717 = vpop.f32.mrf.mxu0
      %v2718 = vpop.f32.mrf.mxu0
      %v2719 = vadd.f32 %v2495, %v2718
      %v2720 = vpop.f32.mrf.mxu0
      %2721 = vmatprep.mubr.bf16.mxu0 0
      %2722 = vmatmul.mubr.bf16.gmra.mxu0 %v2468
      %v2723 = vpop.f32.mrf.mxu0
      %v2724 = vadd.f32 %v2495, %v2723
      %v2725 = vpop.f32.mrf.mxu0
      %v2726 = vpop.f32.mrf.mxu0
      %v2727 = vadd.f32 %v2495, %v2726
      %v2728 = vpop.f32.mrf.mxu0
      %2729 = vmatprep.mubr.bf16.mxu0 0
      %2730 = vmatmul.mubr.bf16.gmra.mxu0 %v2469
      %v2731 = vpop.f32.mrf.mxu0
      %v2732 = vadd.f32 %v2495, %v2731
      %v2733 = vpop.f32.mrf.mxu0
      %v2734 = vpop.f32.mrf.mxu0
      %v2735 = vadd.f32 %v2495, %v2734
      %v2736 = vpop.f32.mrf.mxu0
      %2737 = vmatprep.mubr.bf16.mxu0 0
      %2738 = vmatmul.mubr.bf16.gmra.mxu0 %v2470
      %v2739 = vpop.f32.mrf.mxu0
      %v2740 = vadd.f32 %v2495, %v2739
      %v2741 = vpop.f32.mrf.mxu0
      %v2742 = vpop.f32.mrf.mxu0
      %v2743 = vadd.f32 %v2495, %v2742
      %v2744 = vpop.f32.mrf.mxu0
      %2745 = vmatprep.mubr.bf16.mxu0 0
      %2746 = vmatmul.mubr.bf16.gmra.mxu0 %v2471
      %v2747 = vpop.f32.mrf.mxu0
      %v2748 = vadd.f32 %v2495, %v2747
      %v2749 = vpop.f32.mrf.mxu0
      %v2750 = vpop.f32.mrf.mxu0
      %v2751 = vadd.f32 %v2495, %v2750
      %v2752 = vpop.f32.mrf.mxu0
      %2753 = vmatprep.mubr.bf16.mxu0 0
      %2754 = vmatmul.mubr.bf16.gmra.mxu0 %v2472
      %v2755 = vpop.f32.mrf.mxu0
      %v2756 = vadd.f32 %v2495, %v2755
      %v2757 = vpop.f32.mrf.mxu0
      %v2758 = vpop.f32.mrf.mxu0
      %v2759 = vadd.f32 %v2495, %v2758
      %v2760 = vpop.f32.mrf.mxu0
      %2761 = vmatprep.mubr.bf16.mxu0 0
      %2762 = vmatmul.mubr.bf16.gmra.mxu0 %v2473
      %v2763 = vpop.f32.mrf.mxu0
      %v2764 = vadd.f32 %v2495, %v2763
      %v2765 = vpop.f32.mrf.mxu0
      %v2766 = vpop.f32.mrf.mxu0
      %v2767 = vadd.f32 %v2495, %v2766
      %v2768 = vpop.f32.mrf.mxu0
      %2769 = vdwg.mxu0
      %v2770 = vxor.u32 %v2580, 2147483648
      %v2771 = vxor.u32 %v2583, 2147483648
      %v2772 = vxor.u32 %v2588, 2147483648
      %v2773 = vxor.u32 %v2591, 2147483648
      %v2774 = vxor.u32 %v2596, 2147483648
      %v2775 = vxor.u32 %v2599, 2147483648
      %v2776 = vxor.u32 %v2604, 2147483648
      %v2777 = vxor.u32 %v2607, 2147483648
      %v2778 = vxor.u32 %v2612, 2147483648
      %v2779 = vxor.u32 %v2615, 2147483648
      %v2780 = vxor.u32 %v2620, 2147483648
      %v2781 = vxor.u32 %v2623, 2147483648
      %v2782 = vxor.u32 %v2628, 2147483648
      %v2783 = vxor.u32 %v2631, 2147483648
      %v2784 = vxor.u32 %v2636, 2147483648
      %v2785 = vxor.u32 %v2639, 2147483648
      %v2786 = vxor.u32 %v2644, 2147483648
      %v2787 = vxor.u32 %v2647, 2147483648
      %v2788 = vxor.u32 %v2652, 2147483648
      %v2789 = vxor.u32 %v2655, 2147483648
      %v2790 = vxor.u32 %v2660, 2147483648
      %v2791 = vxor.u32 %v2663, 2147483648
      %v2792 = vxor.u32 %v2668, 2147483648
      %v2793 = vxor.u32 %v2671, 2147483648
      %v2794 = vxor.u32 %v2676, 2147483648
      %v2795 = vxor.u32 %v2679, 2147483648
      %v2796 = vxor.u32 %v2684, 2147483648
      %v2797 = vxor.u32 %v2687, 2147483648
      %v2798 = vxor.u32 %v2692, 2147483648
      %v2799 = vxor.u32 %v2695, 2147483648
      %v2800 = vxor.u32 %v2700, 2147483648
      %v2801 = vxor.u32 %v2703, 2147483648
      %v2802 = vxor.u32 %v2708, 2147483648
      %v2803 = vxor.u32 %v2711, 2147483648
      %v2804 = vxor.u32 %v2716, 2147483648
      %v2805 = vxor.u32 %v2719, 2147483648
      %v2806 = vxor.u32 %v2724, 2147483648
      %v2807 = vxor.u32 %v2727, 2147483648
      %v2808 = vxor.u32 %v2732, 2147483648
      %v2809 = vxor.u32 %v2735, 2147483648
      %v2810 = vxor.u32 %v2740, 2147483648
      %v2811 = vxor.u32 %v2743, 2147483648
      %v2812 = vxor.u32 %v2748, 2147483648
      %v2813 = vxor.u32 %v2751, 2147483648
      %v2814 = vxor.u32 %v2756, 2147483648
      %v2815 = vxor.u32 %v2759, 2147483648
      %v2816 = vxor.u32 %v2764, 2147483648
      %v2817 = vxor.u32 %v2767, 2147483648
      %v2818 = vmul.f32 %v2770, 1.442695
      %v2819 = vpow.pop %v2818
      %v2820 = vmul.f32 %v2771, 1.442695
      %v2821 = vpow.pop %v2820
      %v2822 = vmul.f32 %v2772, 1.442695
      %v2823 = vpow.pop %v2822
      %v2824 = vmul.f32 %v2773, 1.442695
      %v2825 = vpow.pop %v2824
      %v2826 = vmul.f32 %v2774, 1.442695
      %v2827 = vpow.pop %v2826
      %v2828 = vmul.f32 %v2775, 1.442695
      %v2829 = vpow.pop %v2828
      %v2830 = vmul.f32 %v2776, 1.442695
      %v2831 = vpow.pop %v2830
      %v2832 = vmul.f32 %v2777, 1.442695
      %v2833 = vpow.pop %v2832
      %v2834 = vmul.f32 %v2778, 1.442695
      %v2835 = vpow.pop %v2834
      %v2836 = vmul.f32 %v2779, 1.442695
      %v2837 = vpow.pop %v2836
      %v2838 = vmul.f32 %v2780, 1.442695
      %v2839 = vpow.pop %v2838
      %v2840 = vmul.f32 %v2781, 1.442695
      %v2841 = vpow.pop %v2840
      %v2842 = vmul.f32 %v2782, 1.442695
      %v2843 = vpow.pop %v2842
      %v2844 = vmul.f32 %v2783, 1.442695
      %v2845 = vpow.pop %v2844
      %v2846 = vmul.f32 %v2784, 1.442695
      %v2847 = vpow.pop %v2846
      %v2848 = vmul.f32 %v2785, 1.442695
      %v2849 = vpow.pop %v2848
      %v2850 = vmul.f32 %v2786, 1.442695
      %v2851 = vpow.pop %v2850
      %v2852 = vmul.f32 %v2787, 1.442695
      %v2853 = vpow.pop %v2852
      %v2854 = vmul.f32 %v2788, 1.442695
      %v2855 = vpow.pop %v2854
      %v2856 = vmul.f32 %v2789, 1.442695
      %v2857 = vpow.pop %v2856
      %v2858 = vmul.f32 %v2790, 1.442695
      %v2859 = vpow.pop %v2858
      %v2860 = vmul.f32 %v2791, 1.442695
      %v2861 = vpow.pop %v2860
      %v2862 = vmul.f32 %v2792, 1.442695
      %v2863 = vpow.pop %v2862
      %v2864 = vmul.f32 %v2793, 1.442695
      %v2865 = vpow.pop %v2864
      %v2866 = vmul.f32 %v2794, 1.442695
      %v2867 = vpow.pop %v2866
      %v2868 = vmul.f32 %v2795, 1.442695
      %v2869 = vpow.pop %v2868
      %v2870 = vmul.f32 %v2796, 1.442695
      %v2871 = vpow.pop %v2870
      %v2872 = vmul.f32 %v2797, 1.442695
      %v2873 = vpow.pop %v2872
      %v2874 = vmul.f32 %v2798, 1.442695
      %v2875 = vpow.pop %v2874
      %v2876 = vmul.f32 %v2799, 1.442695
      %v2877 = vpow.pop %v2876
      %v2878 = vmul.f32 %v2800, 1.442695
      %v2879 = vpow.pop %v2878
      %v2880 = vmul.f32 %v2801, 1.442695
      %v2881 = vpow.pop %v2880
      %v2882 = vmul.f32 %v2802, 1.442695
      %v2883 = vpow.pop %v2882
      %v2884 = vmul.f32 %v2803, 1.442695
      %v2885 = vpow.pop %v2884
      %v2886 = vmul.f32 %v2804, 1.442695
      %v2887 = vpow.pop %v2886
      %v2888 = vmul.f32 %v2805, 1.442695
      %v2889 = vpow.pop %v2888
      %v2890 = vmul.f32 %v2806, 1.442695
      %v2891 = vpow.pop %v2890
      %v2892 = vmul.f32 %v2807, 1.442695
      %v2893 = vpow.pop %v2892
      %v2894 = vmul.f32 %v2808, 1.442695
      %v2895 = vpow.pop %v2894
      %v2896 = vmul.f32 %v2809, 1.442695
      %v2897 = vpow.pop %v2896
      %v2898 = vmul.f32 %v2810, 1.442695
      %v2899 = vpow.pop %v2898
      %v2900 = vmul.f32 %v2811, 1.442695
      %v2901 = vpow.pop %v2900
      %v2902 = vmul.f32 %v2812, 1.442695
      %v2903 = vpow.pop %v2902
      %v2904 = vmul.f32 %v2813, 1.442695
      %v2905 = vpow.pop %v2904
      %v2906 = vmul.f32 %v2814, 1.442695
      %v2907 = vpow.pop %v2906
      %v2908 = vmul.f32 %v2815, 1.442695
      %v2909 = vpow.pop %v2908
      %v2910 = vmul.f32 %v2816, 1.442695
      %v2911 = vpow.pop %v2910
      %v2912 = vmul.f32 %v2817, 1.442695
      %v2913 = vpow.pop %v2912
      %v2914 = vadd.f32 %v2819, 1.0
      %v2915 = vadd.f32 %v2821, 1.0
      %v2916 = vadd.f32 %v2823, 1.0
      %v2917 = vadd.f32 %v2825, 1.0
      %v2918 = vadd.f32 %v2827, 1.0
      %v2919 = vadd.f32 %v2829, 1.0
      %v2920 = vadd.f32 %v2831, 1.0
      %v2921 = vadd.f32 %v2833, 1.0
      %v2922 = vadd.f32 %v2835, 1.0
      %v2923 = vadd.f32 %v2837, 1.0
      %v2924 = vadd.f32 %v2839, 1.0
      %v2925 = vadd.f32 %v2841, 1.0
      %v2926 = vadd.f32 %v2843, 1.0
      %v2927 = vadd.f32 %v2845, 1.0
      %v2928 = vadd.f32 %v2847, 1.0
      %v2929 = vadd.f32 %v2849, 1.0
      %v2930 = vadd.f32 %v2851, 1.0
      %v2931 = vadd.f32 %v2853, 1.0
      %v2932 = vadd.f32 %v2855, 1.0
      %v2933 = vadd.f32 %v2857, 1.0
      %v2934 = vadd.f32 %v2859, 1.0
      %v2935 = vadd.f32 %v2861, 1.0
      %v2936 = vadd.f32 %v2863, 1.0
      %v2937 = vadd.f32 %v2865, 1.0
      %v2938 = vadd.f32 %v2867, 1.0
      %v2939 = vadd.f32 %v2869, 1.0
      %v2940 = vadd.f32 %v2871, 1.0
      %v2941 = vadd.f32 %v2873, 1.0
      %v2942 = vadd.f32 %v2875, 1.0
      %v2943 = vadd.f32 %v2877, 1.0
      %v2944 = vadd.f32 %v2879, 1.0
      %v2945 = vadd.f32 %v2881, 1.0
      %v2946 = vadd.f32 %v2883, 1.0
      %v2947 = vadd.f32 %v2885, 1.0
      %v2948 = vadd.f32 %v2887, 1.0
      %v2949 = vadd.f32 %v2889, 1.0
      %v2950 = vadd.f32 %v2891, 1.0
      %v2951 = vadd.f32 %v2893, 1.0
      %v2952 = vadd.f32 %v2895, 1.0
      %v2953 = vadd.f32 %v2897, 1.0
      %v2954 = vadd.f32 %v2899, 1.0
      %v2955 = vadd.f32 %v2901, 1.0
      %v2956 = vadd.f32 %v2903, 1.0
      %v2957 = vadd.f32 %v2905, 1.0
      %v2958 = vadd.f32 %v2907, 1.0
      %v2959 = vadd.f32 %v2909, 1.0
      %v2960 = vadd.f32 %v2911, 1.0
      %v2961 = vadd.f32 %v2913, 1.0
      %v2962 = vrcp.pop %v2914
      %v2963 = vmul.f32 1.0, %v2962
      %v2964 = vrcp.pop %v2915
      %v2965 = vmul.f32 1.0, %v2964
      %v2966 = vrcp.pop %v2916
      %v2967 = vmul.f32 1.0, %v2966
      %v2968 = vrcp.pop %v2917
      %v2969 = vmul.f32 1.0, %v2968
      %v2970 = vrcp.pop %v2918
      %v2971 = vmul.f32 1.0, %v2970
      %v2972 = vrcp.pop %v2919
      %v2973 = vmul.f32 1.0, %v2972
      %v2974 = vrcp.pop %v2920
      %v2975 = vmul.f32 1.0, %v2974
      %v2976 = vrcp.pop %v2921
      %v2977 = vmul.f32 1.0, %v2976
      %v2978 = vrcp.pop %v2922
      %v2979 = vmul.f32 1.0, %v2978
      %v2980 = vrcp.pop %v2923
      %v2981 = vmul.f32 1.0, %v2980
      %v2982 = vrcp.pop %v2924
      %v2983 = vmul.f32 1.0, %v2982
      %v2984 = vrcp.pop %v2925
      %v2985 = vmul.f32 1.0, %v2984
      %v2986 = vrcp.pop %v2926
      %v2987 = vmul.f32 1.0, %v2986
      %v2988 = vrcp.pop %v2927
      %v2989 = vmul.f32 1.0, %v2988
      %v2990 = vrcp.pop %v2928
      %v2991 = vmul.f32 1.0, %v2990
      %v2992 = vrcp.pop %v2929
      %v2993 = vmul.f32 1.0, %v2992
      %v2994 = vrcp.pop %v2930
      %v2995 = vmul.f32 1.0, %v2994
      %v2996 = vrcp.pop %v2931
      %v2997 = vmul.f32 1.0, %v2996
      %v2998 = vrcp.pop %v2932
      %v2999 = vmul.f32 1.0, %v2998
      %v3000 = vrcp.pop %v2933
      %v3001 = vmul.f32 1.0, %v3000
      %v3002 = vrcp.pop %v2934
      %v3003 = vmul.f32 1.0, %v3002
      %v3004 = vrcp.pop %v2935
      %v3005 = vmul.f32 1.0, %v3004
      %v3006 = vrcp.pop %v2936
      %v3007 = vmul.f32 1.0, %v3006
      %v3008 = vrcp.pop %v2937
      %v3009 = vmul.f32 1.0, %v3008
      %v3010 = vrcp.pop %v2938
      %v3011 = vmul.f32 1.0, %v3010
      %v3012 = vrcp.pop %v2939
      %v3013 = vmul.f32 1.0, %v3012
      %v3014 = vrcp.pop %v2940
      %v3015 = vmul.f32 1.0, %v3014
      %v3016 = vrcp.pop %v2941
      %v3017 = vmul.f32 1.0, %v3016
      %v3018 = vrcp.pop %v2942
      %v3019 = vmul.f32 1.0, %v3018
      %v3020 = vrcp.pop %v2943
      %v3021 = vmul.f32 1.0, %v3020
      %v3022 = vrcp.pop %v2944
      %v3023 = vmul.f32 1.0, %v3022
      %v3024 = vrcp.pop %v2945
      %v3025 = vmul.f32 1.0, %v3024
      %v3026 = vrcp.pop %v2946
      %v3027 = vmul.f32 1.0, %v3026
      %v3028 = vrcp.pop %v2947
      %v3029 = vmul.f32 1.0, %v3028
      %v3030 = vrcp.pop %v2948
      %v3031 = vmul.f32 1.0, %v3030
      %v3032 = vrcp.pop %v2949
      %v3033 = vmul.f32 1.0, %v3032
      %v3034 = vrcp.pop %v2950
      %v3035 = vmul.f32 1.0, %v3034
      %v3036 = vrcp.pop %v2951
      %v3037 = vmul.f32 1.0, %v3036
      %v3038 = vrcp.pop %v2952
      %v3039 = vmul.f32 1.0, %v3038
      %v3040 = vrcp.pop %v2953
      %v3041 = vmul.f32 1.0, %v3040
      %v3042 = vrcp.pop %v2954
      %v3043 = vmul.f32 1.0, %v3042
      %v3044 = vrcp.pop %v2955
      %v3045 = vmul.f32 1.0, %v3044
      %v3046 = vrcp.pop %v2956
      %v3047 = vmul.f32 1.0, %v3046
      %v3048 = vrcp.pop %v2957
      %v3049 = vmul.f32 1.0, %v3048
      %v3050 = vrcp.pop %v2958
      %v3051 = vmul.f32 1.0, %v3050
      %v3052 = vrcp.pop %v2959
      %v3053 = vmul.f32 1.0, %v3052
      %v3054 = vrcp.pop %v2960
      %v3055 = vmul.f32 1.0, %v3054
      %v3056 = vrcp.pop %v2961
      %v3057 = vmul.f32 1.0, %v3056
      %3058 = vst [vmem:[%s229] sm:$0xff] %v2963
      %3059 = vst [vmem:[%s229 + $0x8] sm:$0xff] %v2965
      %3060 = vst [vmem:[%s229 + $0x10] sm:$0xff] %v2967
      %3061 = vst [vmem:[%s229 + $0x18] sm:$0xff] %v2969
      %3062 = vst [vmem:[%s229 + $0x20] sm:$0xff] %v2971
      %3063 = vst [vmem:[%s229 + $0x28] sm:$0xff] %v2973
      %3064 = vst [vmem:[%s229 + $0x30] sm:$0xff] %v2975
      %3065 = vst [vmem:[%s229 + $0x38] sm:$0xff] %v2977
      %3066 = vst [vmem:[%s229 + $0x40] sm:$0xff] %v2979
      %3067 = vst [vmem:[%s229 + $0x48] sm:$0xff] %v2981
      %3068 = vst [vmem:[%s229 + $0x50] sm:$0xff] %v2983
      %3069 = vst [vmem:[%s229 + $0x58] sm:$0xff] %v2985
      %3070 = vst [vmem:[%s229 + $0x60] sm:$0xff] %v2987
      %3071 = vst [vmem:[%s229 + $0x68] sm:$0xff] %v2989
      %3072 = vst [vmem:[%s229 + $0x70] sm:$0xff] %v2991
      %3073 = vst [vmem:[%s229 + $0x78] sm:$0xff] %v2993
      %3074 = vst [vmem:[%s229 + $0x80] sm:$0xff] %v2995
      %3075 = vst [vmem:[%s229 + $0x88] sm:$0xff] %v2997
      %3076 = vst [vmem:[%s229 + $0x90] sm:$0xff] %v2999
      %3077 = vst [vmem:[%s229 + $0x98] sm:$0xff] %v3001
      %3078 = vst [vmem:[%s229 + $0xa0] sm:$0xff] %v3003
      %3079 = vst [vmem:[%s229 + $0xa8] sm:$0xff] %v3005
      %3080 = vst [vmem:[%s229 + $0xb0] sm:$0xff] %v3007
      %3081 = vst [vmem:[%s229 + $0xb8] sm:$0xff] %v3009
      %3082 = vst [vmem:[%s229 + $0xc0] sm:$0xff] %v3011
      %3083 = vst [vmem:[%s229 + $0xc8] sm:$0xff] %v3013
      %3084 = vst [vmem:[%s229 + $0xd0] sm:$0xff] %v3015
      %3085 = vst [vmem:[%s229 + $0xd8] sm:$0xff] %v3017
      %3086 = vst [vmem:[%s229 + $0xe0] sm:$0xff] %v3019
      %3087 = vst [vmem:[%s229 + $0xe8] sm:$0xff] %v3021
      %3088 = vst [vmem:[%s229 + $0xf0] sm:$0xff] %v3023
      %3089 = vst [vmem:[%s229 + $0xf8] sm:$0xff] %v3025
      %3090 = vst [vmem:[%s229 + $0x100] sm:$0xff] %v3027
      %3091 = vst [vmem:[%s229 + $0x108] sm:$0xff] %v3029
      %3092 = vst [vmem:[%s229 + $0x110] sm:$0xff] %v3031
      %3093 = vst [vmem:[%s229 + $0x118] sm:$0xff] %v3033
      %3094 = vst [vmem:[%s229 + $0x120] sm:$0xff] %v3035
      %3095 = vst [vmem:[%s229 + $0x128] sm:$0xff] %v3037
      %3096 = vst [vmem:[%s229 + $0x130] sm:$0xff] %v3039
      %3097 = vst [vmem:[%s229 + $0x138] sm:$0xff] %v3041
      %3098 = vst [vmem:[%s229 + $0x140] sm:$0xff] %v3043
      %3099 = vst [vmem:[%s229 + $0x148] sm:$0xff] %v3045
      %3100 = vst [vmem:[%s229 + $0x150] sm:$0xff] %v3047
      %3101 = vst [vmem:[%s229 + $0x158] sm:$0xff] %v3049
      %3102 = vst [vmem:[%s229 + $0x160] sm:$0xff] %v3051
      %3103 = vst [vmem:[%s229 + $0x168] sm:$0xff] %v3053
      %3104 = vst [vmem:[%s229 + $0x170] sm:$0xff] %v3055
      %3105 = vst [vmem:[%s229 + $0x178] sm:$0xff] %v3057
      %s3106 = smul.u32 48, %s16
      %p3107 = scmp.lt.s32.totalorder %s3106, 95
      %s3108 = scalar_select %p3107, %s3106, 95
      %s3109 = smul.addr %s3108, 8
      %s3110 = scalar_lea.vmem %s5, %s3109
      // Predicated region
      $region41: #{gcn_forward_padded.3} parent=39 // pred_check
        %p3111 = pneg %p144
      $region42: #{gcn_forward_padded.3} parent=39 // pred_check_branch
        %3113 = sbr.rel (%p3111) target = $region44
      $region43: #{gcn_forward_padded.3} parent=39 // pred_region
        %s3114 = smul.u32 48, %s16
      $region44: #{gcn_forward_padded.3} parent=39 // pred_fallthru
        _
    $region40: #{gcn_forward_padded.3} parent=5 // pred_fallthru
      _
    %p3115 = scmp.le.s32.totalorder 2, %s11
    // Predicated region
    $region45: #{gcn_forward_padded.3} parent=5 // pred_check
      %p3116 = pneg %p3115
    $region46: #{gcn_forward_padded.3} parent=5 // pred_check_branch
      %3118 = sbr.rel (%p3116) target = $region48
    $region47: #{gcn_forward_padded.3} parent=5 // pred_region
      %s3119 = ssub.s32 %s11, 2
      // Predicated region
      $region49: #{gcn_forward_padded.3} parent=47 // pred_check
        %p3120 = pneg %p150
      $region50: #{gcn_forward_padded.3} parent=47 // pred_check_branch
        %3122 = sbr.rel (%p3120) target = $region52
      $region51: #{gcn_forward_padded.3} parent=47 // pred_region
        %s3123 = smul.u32 48, %s17
        %p3124 = scmp.lt.s32.totalorder %s3123, 95
        %s3125 = scalar_select %p3124, %s3123, 95
        %s3126 = smul.addr %s3125, 8
        %s3127 = scalar_lea.vmem %s5, %s3126
      $region52: #{gcn_forward_padded.3} parent=47 // pred_fallthru
        _
    $region48: #{gcn_forward_padded.3} parent=5 // pred_fallthru
      _
  $region6: #{gcn_forward_padded.3} parent=0 // loop_footer
    %s15 = sadd.s32 1, %s11
  $region7: #{gcn_forward_padded.3} parent=0 // loop_footer_branch
    %10 = sbr.rel target = $region3
  $region8: #{gcn_forward_padded.3} parent=0 // loop_exit
    _

// kernel: gcn_forward_padded.2
$region0: #{gcn_forward_padded.2}
  #allocation0 [shape = 'u32[]', space=smem, size = 0x4, offset = 0x4, fixed_abs, tag = 'smem constant byte address 0x4 - core index']
  #allocation1 [shape = 'u32[144,128]{1,0:T(1,128)}', space=vmem, size = 0x12000, scoped, tag = 'internal scratch']
  %s0 = inlined_call_operand.hbm [shape: bf16[768,768], index: 0, kind: input, shape index: {}]
  %s1 = inlined_call_operand.hbm [shape: bf16[768,128], index: 1, kind: input, shape index: {}]
  %s2 = inlined_call_operand.hbm [shape: bf16[128,128], index: 2, kind: input, shape index: {}]
  %s3 = inlined_call_operand.hbm [shape: f32[1,128], index: 3, kind: input, shape index: {}]
  %s4 = inlined_call_operand.hbm [shape: bf16[128,128], index: 4, kind: input, shape index: {}]
  %s5 = inlined_call_operand.vmem [shape: bf16[768,128], index: 5, kind: output, shape index: {}]
  %s6 = sld [smem:[#allocation0]]
  $region73: #{gcn_forward_padded.2} parent=0
    _
  %s8 = ssub.s32 1, %s6
  %s9 = scalar_select 0, %s8, %s6
  $region1: #{gcn_forward_padded.2} parent=0
    #allocation2 [shape = 'u8[1179648]{0}', space=vmem, size = 0x120000, scoped, tag = 'input window, operand 0']
    #allocation3 [shape = 's32[2]{0}', space=sflag, size = 0x8, scoped, tag = 'scoped memory for gcn_forward_padded.2']
    #allocation4 [shape = 'u8[196608]{0}', space=vmem, size = 0x30000, scoped, tag = 'input window, operand 1, single buffered']
    #allocation5 [shape = 's32[1]{0}', space=sflag, size = 0x4, scoped, tag = 'scoped memory for gcn_forward_padded.2']
    #allocation6 [shape = 'u8[32768]{0}', space=vmem, size = 0x8000, scoped, tag = 'input window, operand 2, single buffered']
    #allocation7 [shape = 'u8[512]{0}', space=vmem, size = 0x400, scoped, tag = 'input window, operand 3, single buffered']
    #allocation8 [shape = 's32[1]{0}', space=sflag, size = 0x4, scoped, tag = 'scoped memory for gcn_forward_padded.2']
    #allocation9 [shape = 'u8[32768]{0}', space=vmem, size = 0x8000, scoped, tag = 'input window, operand 4, single buffered']
    %10 = vsyncpa [#allocation3], 0
    %s11 = scalar_lea.sflag [#allocation3], 1
    %12 = vsyncpa %s11, 0
    %13 = vsyncpa [#allocation5], 0
    %14 = vsyncpa [#allocation8], 0
    loop: start=0, step=1, limit=4
    $region2: #{gcn_forward_padded.2} parent=1 // loop_pre_header
      _
    $region3: #{gcn_forward_padded.2} parent=1 // loop_header
      %s16 = sphi 0, %s20
      %p17 = scmp.ge.s32.totalorder %s16, 4
      %s26 = sphi 0, %s28
      %s29 = sphi 0, %s26
      %s30 = sphi 0, %s29
      %s46 = sphi 0, %s30
      %s50 = sphi 0, %s50
      %s52 = sphi 0, %s50
      %s53 = sphi 0, %s52
      %s67 = sphi 0, %s53
      %s71 = sphi 0, %s71
      %s73 = sphi 0, %s71
      %s74 = sphi 0, %s73
      %s88 = sphi 0, %s74
      %s92 = sphi 0, %s92
      %s94 = sphi 0, %s92
      %s95 = sphi 0, %s94
      %s109 = sphi 0, %s95
      %s113 = sphi 0, %s113
      %s115 = sphi 0, %s113
      %s116 = sphi 0, %s115
      %s130 = sphi 0, %s116
      %s136 = sphi 0, %s138
      %s139 = sphi 0, %s136
      %s140 = sphi 0, %s139
      %s156 = sphi 0, %s140
    $region4: #{gcn_forward_padded.2} parent=1 // loop_header_branch
      %19 = sbr.rel (%p17) target = $region8
    $region5: #{gcn_forward_padded.2} parent=1 // loop_body
      %s21 = ssub.s32 %s16, 1
      %s22 = ssub.s32 %s16, 2
      %s23 = sadd.s32 %s16, 1
      %s24 = ssub.s32 %s16, %s23
      %p25 = scmp.eq.s32.totalorder %s24, 0
      %s27 = sadd.s32 %s26, 1
      %s28 = scalar_select %p25, %s26, %s27
      %p31 = pneg %p25
      %p32 = scmp.eq.s32.totalorder %s16, 1
      %p33 = por %p31, %p32
      %p34 = scmp.ne.s32.totalorder %s26, %s29
      %p35 = scmp.eq.s32.totalorder %s16, 0
      %p36 = por %p34, %p35
      %p37 = scmp.ne.s32.totalorder %s26, %s29
      %p38 = scmp.eq.s32.totalorder %s21, 1
      %p39 = por %p37, %p38
      %p40 = scmp.ne.s32.totalorder %s29, %s30
      %p41 = scmp.eq.s32.totalorder %s21, 0
      %p42 = por %p40, %p41
      %p43 = scmp.ne.s32.totalorder %s29, %s30
      %p44 = scmp.eq.s32.totalorder %s22, 1
      %p45 = por %p43, %p44
      %p47 = scmp.ne.s32.totalorder %s30, %s46
      %p48 = scmp.eq.s32.totalorder %s22, 0
      %p49 = por %p47, %p48
      %s51 = sadd.s32 %s50, 1
      %p54 = scmp.eq.s32.totalorder %s16, 1
      %p55 = scmp.ne.s32.totalorder %s50, %s52
      %p56 = scmp.eq.s32.totalorder %s16, 0
      %p57 = por %p55, %p56
      %p58 = scmp.ne.s32.totalorder %s50, %s52
      %p59 = scmp.eq.s32.totalorder %s21, 1
      %p60 = por %p58, %p59
      %p61 = scmp.ne.s32.totalorder %s52, %s53
      %p62 = scmp.eq.s32.totalorder %s21, 0
      %p63 = por %p61, %p62
      %p64 = scmp.ne.s32.totalorder %s52, %s53
      %p65 = scmp.eq.s32.totalorder %s22, 1
      %p66 = por %p64, %p65
      %p68 = scmp.ne.s32.totalorder %s53, %s67
      %p69 = scmp.eq.s32.totalorder %s22, 0
      %p70 = por %p68, %p69
      %s72 = sadd.s32 %s71, 1
      %p75 = scmp.eq.s32.totalorder %s16, 1
      %p76 = scmp.ne.s32.totalorder %s71, %s73
      %p77 = scmp.eq.s32.totalorder %s16, 0
      %p78 = por %p76, %p77
      %p79 = scmp.ne.s32.totalorder %s71, %s73
      %p80 = scmp.eq.s32.totalorder %s21, 1
      %p81 = por %p79, %p80
      %p82 = scmp.ne.s32.totalorder %s73, %s74
      %p83 = scmp.eq.s32.totalorder %s21, 0
      %p84 = por %p82, %p83
      %p85 = scmp.ne.s32.totalorder %s73, %s74
      %p86 = scmp.eq.s32.totalorder %s22, 1
      %p87 = por %p85, %p86
      %p89 = scmp.ne.s32.totalorder %s74, %s88
      %p90 = scmp.eq.s32.totalorder %s22, 0
      %p91 = por %p89, %p90
      %s93 = sadd.s32 %s92, 1
      %p96 = scmp.eq.s32.totalorder %s16, 1
      %p97 = scmp.ne.s32.totalorder %s92, %s94
      %p98 = scmp.eq.s32.totalorder %s16, 0
      %p99 = por %p97, %p98
      %p100 = scmp.ne.s32.totalorder %s92, %s94
      %p101 = scmp.eq.s32.totalorder %s21, 1
      %p102 = por %p100, %p101
      %p103 = scmp.ne.s32.totalorder %s94, %s95
      %p104 = scmp.eq.s32.totalorder %s21, 0
      %p105 = por %p103, %p104
      %p106 = scmp.ne.s32.totalorder %s94, %s95
      %p107 = scmp.eq.s32.totalorder %s22, 1
      %p108 = por %p106, %p107
      %p110 = scmp.ne.s32.totalorder %s95, %s109
      %p111 = scmp.eq.s32.totalorder %s22, 0
      %p112 = por %p110, %p111
      %s114 = sadd.s32 %s113, 1
      %p117 = scmp.eq.s32.totalorder %s16, 1
      %p118 = scmp.ne.s32.totalorder %s113, %s115
      %p119 = scmp.eq.s32.totalorder %s16, 0
      %p120 = por %p118, %p119
      %p121 = scmp.ne.s32.totalorder %s113, %s115
      %p122 = scmp.eq.s32.totalorder %s21, 1
      %p123 = por %p121, %p122
      %p124 = scmp.ne.s32.totalorder %s115, %s116
      %p125 = scmp.eq.s32.totalorder %s21, 0
      %p126 = por %p124, %p125
      %p127 = scmp.ne.s32.totalorder %s115, %s116
      %p128 = scmp.eq.s32.totalorder %s22, 1
      %p129 = por %p127, %p128
      %p131 = scmp.ne.s32.totalorder %s116, %s130
      %p132 = scmp.eq.s32.totalorder %s22, 0
      %p133 = por %p131, %p132
      %s134 = ssub.s32 %s16, %s23
      %p135 = scmp.eq.s32.totalorder %s134, 0
      %s137 = sadd.s32 %s136, 1
      %s138 = scalar_select %p135, %s136, %s137
      %p141 = pneg %p135
      %p142 = scmp.eq.s32.totalorder %s16, 1
      %p143 = por %p141, %p142
      %p144 = scmp.ne.s32.totalorder %s136, %s139
      %p145 = scmp.eq.s32.totalorder %s16, 0
      %p146 = por %p144, %p145
      %p147 = scmp.ne.s32.totalorder %s136, %s139
      %p148 = scmp.eq.s32.totalorder %s21, 1
      %p149 = por %p147, %p148
      %p150 = scmp.ne.s32.totalorder %s139, %s140
      %p151 = scmp.eq.s32.totalorder %s21, 0
      %p152 = por %p150, %p151
      %p153 = scmp.ne.s32.totalorder %s139, %s140
      %p154 = scmp.eq.s32.totalorder %s22, 1
      %p155 = por %p153, %p154
      %p157 = scmp.ne.s32.totalorder %s140, %s156
      %p158 = scmp.eq.s32.totalorder %s22, 0
      %p159 = por %p157, %p158
      %p160 = scmp.le.s32.totalorder 1, %s16
      %p161 = scmp.lt.s32.totalorder %s16, 3
      %p162 = pnand %p160, %p161
      %p163 = pneg %p162
      // Predicated region
      $region9: #{gcn_forward_padded.2} parent=5 // pred_check
        _
      $region10: #{gcn_forward_padded.2} parent=5 // pred_check_branch
        %165 = sbr.rel (%p162) target = $region12
      $region11: #{gcn_forward_padded.2} parent=5 // pred_region
        %s166 = ssub.s32 %s16, 1
        // Predicated region
        $region13: #{gcn_forward_padded.2} parent=11 // pred_check
          %p167 = pneg %p63
        $region14: #{gcn_forward_padded.2} parent=11 // pred_check_branch
          %169 = sbr.rel (%p167) target = $region16
        $region15: #{gcn_forward_padded.2} parent=11 // pred_region
          %s171 = ssub.s32 6144, 6144
          %172 = vsyncadd [#allocation5], %s171
          %s173 = sshll.u32 [#allocation4], 4
          %s174 = int_to_ptr.vmem [resolvable:$true] %s173
          %179 = dma.hbm_to_vmem [thread:$0]  %s1, 6144, %s174, [#allocation5], 64, 64, 4
        $region16: #{gcn_forward_padded.2} parent=11 // pred_fallthru
          _
        // Predicated region
        $region17: #{gcn_forward_padded.2} parent=11 // pred_check
          %p180 = pneg %p84
        $region18: #{gcn_forward_padded.2} parent=11 // pred_check_branch
          %182 = sbr.rel (%p180) target = $region20
        $region19: #{gcn_forward_padded.2} parent=11 // pred_region
          %s184 = ssub.s32 1024, 1024
          %185 = vsyncadd [#allocation5], %s184
          %s186 = sshll.u32 [#allocation6], 4
          %s187 = int_to_ptr.vmem [resolvable:$true] %s186
          %192 = dma.hbm_to_vmem [thread:$0]  %s2, 1024, %s187, [#allocation5], 64, 64, 4
        $region20: #{gcn_forward_padded.2} parent=11 // pred_fallthru
          _
        // Predicated region
        $region21: #{gcn_forward_padded.2} parent=11 // pred_check
          %p193 = pneg %p105
        $region22: #{gcn_forward_padded.2} parent=11 // pred_check_branch
          %195 = sbr.rel (%p193) target = $region24
        $region23: #{gcn_forward_padded.2} parent=11 // pred_region
          %s197 = ssub.s32 16, 16
          %198 = vsyncadd [#allocation8], %s197
          %s200 = sshll.u32 [#allocation7], 4
          %s201 = int_to_ptr.vmem [resolvable:$true] %s200
          %203 = dma.hbm_to_vmem [thread:$0]  %s3, 16, %s201, [#allocation8]
        $region24: #{gcn_forward_padded.2} parent=11 // pred_fallthru
          _
        // Predicated region
        $region25: #{gcn_forward_padded.2} parent=11 // pred_check
          %p204 = pneg %p126
        $region26: #{gcn_forward_padded.2} parent=11 // pred_check_branch
          %206 = sbr.rel (%p204) target = $region28
        $region27: #{gcn_forward_padded.2} parent=11 // pred_region
          %s208 = ssub.s32 1024, 1024
          %209 = vsyncadd [#allocation8], %s208
          %s210 = sshll.u32 [#allocation9], 4
          %s211 = int_to_ptr.vmem [resolvable:$true] %s210
          %216 = dma.hbm_to_vmem [thread:$0]  %s4, 1024, %s211, [#allocation8], 64, 64, 4
        $region28: #{gcn_forward_padded.2} parent=11 // pred_fallthru
          _
      $region12: #{gcn_forward_padded.2} parent=5 // pred_fallthru
        _
      %p217 = scmp.lt.s32.totalorder %s16, 2
      // Predicated region
      $region29: #{gcn_forward_padded.2} parent=5 // pred_check
        %p218 = pneg %p217
      $region30: #{gcn_forward_padded.2} parent=5 // pred_check_branch
        %220 = sbr.rel (%p218) target = $region32
      $region31: #{gcn_forward_padded.2} parent=5 // pred_region
        // Predicated region
        $region33: #{gcn_forward_padded.2} parent=31 // pred_check
          %p221 = pneg %p36
        $region34: #{gcn_forward_padded.2} parent=31 // pred_check_branch
          %223 = sbr.rel (%p221) target = $region36
        $region35: #{gcn_forward_padded.2} parent=31 // pred_region
          %s224 = sand.u32 %s26, 1
          %s225 = scalar_lea.sflag [#allocation3], %s224
          %s226 = sand.u32 %s26, 1
          %s227 = smul.addr %s226, 1152
          %s228 = scalar_lea.vmem [#allocation2], %s227
          %s229 = smul.u32 48, %s16
          %s231 = ssub.s32 18432, 18432
          %232 = vsyncadd %s225, %s231
          %s233 = smul.addr %s229, 6
          %s234 = smul.addr %s233, 64
          %s235 = scalar_lea.hbm %s0, %s234
          %s236 = sshll.u32 %s228, 4
          %s237 = int_to_ptr.vmem [resolvable:$true] %s236
          %242 = dma.hbm_to_vmem [thread:$0]  %s235, 18432, %s237, %s225, 384, 384, 24
        $region36: #{gcn_forward_padded.2} parent=31 // pred_fallthru
          _
      $region32: #{gcn_forward_padded.2} parent=5 // pred_fallthru
        _
      %p243 = scmp.le.s32.totalorder 1, %s16
      %p244 = scmp.lt.s32.totalorder %s16, 3
      %p245 = pnand %p243, %p244
      %p246 = pneg %p245
      // Predicated region
      $region37: #{gcn_forward_padded.2} parent=5 // pred_check
        _
      $region38: #{gcn_forward_padded.2} parent=5 // pred_check_branch
        %248 = sbr.rel (%p245) target = $region40
      $region39: #{gcn_forward_padded.2} parent=5 // pred_region
        %s249 = ssub.s32 %s16, 1
        %s250 = sand.u32 %s29, 1
        %s251 = scalar_lea.sflag [#allocation3], %s250
        %s252 = sand.u32 %s29, 1
        %s253 = smul.addr %s252, 1152
        %s254 = scalar_lea.vmem [#allocation2], %s253
        // Predicated region
        $region41: #{gcn_forward_padded.2} parent=39 // pred_check
          %p255 = pneg %p42
        $region42: #{gcn_forward_padded.2} parent=39 // pred_check_branch
          %257 = sbr.rel (%p255) target = $region44
        $region43: #{gcn_forward_padded.2} parent=39 // pred_region
          %258 = dma.done %s251, 18432
        $region44: #{gcn_forward_padded.2} parent=39 // pred_fallthru
          _
        // Predicated region
        $region45: #{gcn_forward_padded.2} parent=39 // pred_check
          %p259 = pneg %p63
        $region46: #{gcn_forward_padded.2} parent=39 // pred_check_branch
          %261 = sbr.rel (%p259) target = $region48
        $region47: #{gcn_forward_padded.2} parent=39 // pred_region
          %262 = dma.done [#allocation5], 6144
        $region48: #{gcn_forward_padded.2} parent=39 // pred_fallthru
          _
        // Predicated region
        $region49: #{gcn_forward_padded.2} parent=39 // pred_check
          %p263 = pneg %p84
        $region50: #{gcn_forward_padded.2} parent=39 // pred_check_branch
          %265 = sbr.rel (%p263) target = $region52
        $region51: #{gcn_forward_padded.2} parent=39 // pred_region
          %266 = dma.done [#allocation5], 1024
        $region52: #{gcn_forward_padded.2} parent=39 // pred_fallthru
          _
        // Predicated region
        $region53: #{gcn_forward_padded.2} parent=39 // pred_check
          %p267 = pneg %p105
        $region54: #{gcn_forward_padded.2} parent=39 // pred_check_branch
          %269 = sbr.rel (%p267) target = $region56
        $region55: #{gcn_forward_padded.2} parent=39 // pred_region
          %270 = dma.done [#allocation8], 16
        $region56: #{gcn_forward_padded.2} parent=39 // pred_fallthru
          _
        // Predicated region
        $region57: #{gcn_forward_padded.2} parent=39 // pred_check
          %p271 = pneg %p126
        $region58: #{gcn_forward_padded.2} parent=39 // pred_check_branch
          %273 = sbr.rel (%p271) target = $region60
        $region59: #{gcn_forward_padded.2} parent=39 // pred_region
          %274 = dma.done [#allocation8], 1024
        $region60: #{gcn_forward_padded.2} parent=39 // pred_fallthru
          _
        %s275 = sand.u32 %s29, 1
        %s276 = scalar_lea.sflag [#allocation3], %s275
        %s277 = sand.u32 %s29, 1
        %s278 = smul.addr %s277, 1152
        %s279 = scalar_lea.vmem [#allocation2], %s278
        %p280 = pneg %p42
        %p281 = pneg %p39
        %p282 = pneg %p63
        %p283 = pneg %p60
        %p284 = pneg %p84
        %p285 = pneg %p81
        %p286 = pneg %p105
        %p287 = pneg %p102
        %p288 = pneg %p126
        %p289 = pneg %p123
        %p290 = pneg %p152
        %p291 = pneg %p149
        %s292 = smul.u32 48, %s21
        %p293 = scmp.lt.s32.totalorder %s292, 95
        %s294 = scalar_select %p293, %s292, 95
        %s295 = smul.addr %s294, 4
        %s296 = scalar_lea.vmem %s5, %s295
        %s297 = smul.u32 48, %s21
        %s298 = smul.u32 48, %s21
        %p299 = scmp.lt.s32.totalorder %s298, 95
        %s300 = scalar_select %p299, %s298, 95
        %s301 = smul.addr %s300, 4
        %s302 = scalar_lea.vmem %s5, %s301
        %s303 = smul.u32 48, %s21
        %v305 = vld [vmem:[#allocation4] sm:$0xf]
        %v306 = vld [vmem:[#allocation4 + $0x4] sm:$0xf]
        %v307 = vld [vmem:[#allocation4 + $0x8] sm:$0xf]
        %v308 = vld [vmem:[#allocation4 + $0xc] sm:$0xf]
        %v309 = vld [vmem:[#allocation4 + $0x10] sm:$0xf]
        %v310 = vld [vmem:[#allocation4 + $0x14] sm:$0xf]
        %v311 = vld [vmem:[#allocation4 + $0x18] sm:$0xf]
        %v312 = vld [vmem:[#allocation4 + $0x1c] sm:$0xf]
        %v313 = vld [vmem:[#allocation4 + $0x20] sm:$0xf]
        %v314 = vld [vmem:[#allocation4 + $0x24] sm:$0xf]
        %v315 = vld [vmem:[#allocation4 + $0x28] sm:$0xf]
        %v316 = vld [vmem:[#allocation4 + $0x2c] sm:$0xf]
        %v317 = vld [vmem:[#allocation4 + $0x30] sm:$0xf]
        %v318 = vld [vmem:[#allocation4 + $0x34] sm:$0xf]
        %v319 = vld [vmem:[#allocation4 + $0x38] sm:$0xf]
        %v320 = vld [vmem:[#allocation4 + $0x3c] sm:$0xf]
        %v321 = vld [vmem:[#allocation4 + $0x40] sm:$0xf]
        %v322 = vld [vmem:[#allocation4 + $0x44] sm:$0xf]
        %v323 = vld [vmem:[#allocation4 + $0x48] sm:$0xf]
        %v324 = vld [vmem:[#allocation4 + $0x4c] sm:$0xf]
        %v325 = vld [vmem:[#allocation4 + $0x50] sm:$0xf]
        %v326 = vld [vmem:[#allocation4 + $0x54] sm:$0xf]
        %v327 = vld [vmem:[#allocation4 + $0x58] sm:$0xf]
        %v328 = vld [vmem:[#allocation4 + $0x5c] sm:$0xf]
        %v329 = vld [vmem:[#allocation4 + $0x60] sm:$0xf]
        %v330 = vld [vmem:[#allocation4 + $0x64] sm:$0xf]
        %v331 = vld [vmem:[#allocation4 + $0x68] sm:$0xf]
        %v332 = vld [vmem:[#allocation4 + $0x6c] sm:$0xf]
        %v333 = vld [vmem:[#allocation4 + $0x70] sm:$0xf]
        %v334 = vld [vmem:[#allocation4 + $0x74] sm:$0xf]
        %v335 = vld [vmem:[#allocation4 + $0x78] sm:$0xf]
        %v336 = vld [vmem:[#allocation4 + $0x7c] sm:$0xf]
        %v337 = vld [vmem:[#allocation4 + $0x80] sm:$0xf]
        %v338 = vld [vmem:[#allocation4 + $0x84] sm:$0xf]
        %v339 = vld [vmem:[#allocation4 + $0x88] sm:$0xf]
        %v340 = vld [vmem:[#allocation4 + $0x8c] sm:$0xf]
        %v341 = vld [vmem:[#allocation4 + $0x90] sm:$0xf]
        %v342 = vld [vmem:[#allocation4 + $0x94] sm:$0xf]
        %v343 = vld [vmem:[#allocation4 + $0x98] sm:$0xf]
        %v344 = vld [vmem:[#allocation4 + $0x9c] sm:$0xf]
        %v345 = vld [vmem:[#allocation4 + $0xa0] sm:$0xf]
        %v346 = vld [vmem:[#allocation4 + $0xa4] sm:$0xf]
        %v347 = vld [vmem:[#allocation4 + $0xa8] sm:$0xf]
        %v348 = vld [vmem:[#allocation4 + $0xac] sm:$0xf]
        %v349 = vld [vmem:[#allocation4 + $0xb0] sm:$0xf]
        %v350 = vld [vmem:[#allocation4 + $0xb4] sm:$0xf]
        %v351 = vld [vmem:[#allocation4 + $0xb8] sm:$0xf]
        %v352 = vld [vmem:[#allocation4 + $0xbc] sm:$0xf]
        %v353 = vld [vmem:[#allocation4 + $0xc0] sm:$0xf]
        %v354 = vld [vmem:[#allocation4 + $0xc4] sm:$0xf]
        %v355 = vld [vmem:[#allocation4 + $0xc8] sm:$0xf]
        %v356 = vld [vmem:[#allocation4 + $0xcc] sm:$0xf]
        %v357 = vld [vmem:[#allocation4 + $0xd0] sm:$0xf]
        %v358 = vld [vmem:[#allocation4 + $0xd4] sm:$0xf]
        %v359 = vld [vmem:[#allocation4 + $0xd8] sm:$0xf]
        %v360 = vld [vmem:[#allocation4 + $0xdc] sm:$0xf]
        %v361 = vld [vmem:[#allocation4 + $0xe0] sm:$0xf]
        %v362 = vld [vmem:[#allocation4 + $0xe4] sm:$0xf]
        %v363 = vld [vmem:[#allocation4 + $0xe8] sm:$0xf]
        %v364 = vld [vmem:[#allocation4 + $0xec] sm:$0xf]
        %v365 = vld [vmem:[#allocation4 + $0xf0] sm:$0xf]
        %v366 = vld [vmem:[#allocation4 + $0xf4] sm:$0xf]
        %v367 = vld [vmem:[#allocation4 + $0xf8] sm:$0xf]
        %v368 = vld [vmem:[#allocation4 + $0xfc] sm:$0xf]
        %v369 = vld [vmem:[#allocation4 + $0x100] sm:$0xf]
        %v370 = vld [vmem:[#allocation4 + $0x104] sm:$0xf]
        %v371 = vld [vmem:[#allocation4 + $0x108] sm:$0xf]
        %v372 = vld [vmem:[#allocation4 + $0x10c] sm:$0xf]
        %v373 = vld [vmem:[#allocation4 + $0x110] sm:$0xf]
        %v374 = vld [vmem:[#allocation4 + $0x114] sm:$0xf]
        %v375 = vld [vmem:[#allocation4 + $0x118] sm:$0xf]
        %v376 = vld [vmem:[#allocation4 + $0x11c] sm:$0xf]
        %v377 = vld [vmem:[#allocation4 + $0x120] sm:$0xf]
        %v378 = vld [vmem:[#allocation4 + $0x124] sm:$0xf]
        %v379 = vld [vmem:[#allocation4 + $0x128] sm:$0xf]
        %v380 = vld [vmem:[#allocation4 + $0x12c] sm:$0xf]
        %v381 = vld [vmem:[#allocation4 + $0x130] sm:$0xf]
        %v382 = vld [vmem:[#allocation4 + $0x134] sm:$0xf]
        %v383 = vld [vmem:[#allocation4 + $0x138] sm:$0xf]
        %v384 = vld [vmem:[#allocation4 + $0x13c] sm:$0xf]
        %v385 = vld [vmem:[#allocation4 + $0x140] sm:$0xf]
        %v386 = vld [vmem:[#allocation4 + $0x144] sm:$0xf]
        %v387 = vld [vmem:[#allocation4 + $0x148] sm:$0xf]
        %v388 = vld [vmem:[#allocation4 + $0x14c] sm:$0xf]
        %v389 = vld [vmem:[#allocation4 + $0x150] sm:$0xf]
        %v390 = vld [vmem:[#allocation4 + $0x154] sm:$0xf]
        %v391 = vld [vmem:[#allocation4 + $0x158] sm:$0xf]
        %v392 = vld [vmem:[#allocation4 + $0x15c] sm:$0xf]
        %v393 = vld [vmem:[#allocation4 + $0x160] sm:$0xf]
        %v394 = vld [vmem:[#allocation4 + $0x164] sm:$0xf]
        %v395 = vld [vmem:[#allocation4 + $0x168] sm:$0xf]
        %v396 = vld [vmem:[#allocation4 + $0x16c] sm:$0xf]
        %v397 = vld [vmem:[#allocation4 + $0x170] sm:$0xf]
        %v398 = vld [vmem:[#allocation4 + $0x174] sm:$0xf]
        %v399 = vld [vmem:[#allocation4 + $0x178] sm:$0xf]
        %v400 = vld [vmem:[#allocation4 + $0x17c] sm:$0xf]
        %v401 = vld [vmem:[#allocation6] sm:$0xf]
        %v402 = vld [vmem:[#allocation6 + $0x4] sm:$0xf]
        %v403 = vld [vmem:[#allocation6 + $0x8] sm:$0xf]
        %v404 = vld [vmem:[#allocation6 + $0xc] sm:$0xf]
        %v405 = vld [vmem:[#allocation6 + $0x10] sm:$0xf]
        %v406 = vld [vmem:[#allocation6 + $0x14] sm:$0xf]
        %v407 = vld [vmem:[#allocation6 + $0x18] sm:$0xf]
        %v408 = vld [vmem:[#allocation6 + $0x1c] sm:$0xf]
        %v409 = vld [vmem:[#allocation6 + $0x20] sm:$0xf]
        %v410 = vld [vmem:[#allocation6 + $0x24] sm:$0xf]
        %v411 = vld [vmem:[#allocation6 + $0x28] sm:$0xf]
        %v412 = vld [vmem:[#allocation6 + $0x2c] sm:$0xf]
        %v413 = vld [vmem:[#allocation6 + $0x30] sm:$0xf]
        %v414 = vld [vmem:[#allocation6 + $0x34] sm:$0xf]
        %v415 = vld [vmem:[#allocation6 + $0x38] sm:$0xf]
        %v416 = vld [vmem:[#allocation6 + $0x3c] sm:$0xf]
        %v513 = vunpack.c.l.b16 %v305
        %v514 = vunpack.c.l.b16 %v306
        %v515 = vunpack.c.l.b16 %v307
        %v516 = vunpack.c.l.b16 %v308
        %v517 = vunpack.c.l.b16 %v309
        %v518 = vunpack.c.l.b16 %v310
        %v519 = vunpack.c.l.b16 %v311
        %v520 = vunpack.c.l.b16 %v312
        %v521 = vunpack.c.l.b16 %v313
        %v522 = vunpack.c.l.b16 %v314
        %v523 = vunpack.c.l.b16 %v315
        %v524 = vunpack.c.l.b16 %v316
        %v525 = vunpack.c.l.b16 %v317
        %v526 = vunpack.c.l.b16 %v318
        %v527 = vunpack.c.l.b16 %v319
        %v528 = vunpack.c.l.b16 %v320
        %v529 = vunpack.c.l.b16 %v321
        %v530 = vunpack.c.l.b16 %v322
        %v531 = vunpack.c.l.b16 %v323
        %v532 = vunpack.c.l.b16 %v324
        %v533 = vunpack.c.l.b16 %v325
        %v534 = vunpack.c.l.b16 %v326
        %v535 = vunpack.c.l.b16 %v327
        %v536 = vunpack.c.l.b16 %v328
        %v537 = vunpack.c.l.b16 %v329
        %v538 = vunpack.c.l.b16 %v330
        %v539 = vunpack.c.l.b16 %v331
        %v540 = vunpack.c.l.b16 %v332
        %v541 = vunpack.c.l.b16 %v333
        %v542 = vunpack.c.l.b16 %v334
        %v543 = vunpack.c.l.b16 %v335
        %v544 = vunpack.c.l.b16 %v336
        %v545 = vunpack.c.l.b16 %v337
        %v546 = vunpack.c.l.b16 %v338
        %v547 = vunpack.c.l.b16 %v339
        %v548 = vunpack.c.l.b16 %v340
        %v549 = vunpack.c.l.b16 %v341
        %v550 = vunpack.c.l.b16 %v342
        %v551 = vunpack.c.l.b16 %v343
        %v552 = vunpack.c.l.b16 %v344
        %v553 = vunpack.c.l.b16 %v345
        %v554 = vunpack.c.l.b16 %v346
        %v555 = vunpack.c.l.b16 %v347
        %v556 = vunpack.c.l.b16 %v348
        %v557 = vunpack.c.l.b16 %v349
        %v558 = vunpack.c.l.b16 %v350
        %v559 = vunpack.c.l.b16 %v351
        %v560 = vunpack.c.l.b16 %v352
        %v561 = vunpack.c.l.b16 %v353
        %v562 = vunpack.c.l.b16 %v354
        %v563 = vunpack.c.l.b16 %v355
        %v564 = vunpack.c.l.b16 %v356
        %v565 = vunpack.c.l.b16 %v357
        %v566 = vunpack.c.l.b16 %v358
        %v567 = vunpack.c.l.b16 %v359
        %v568 = vunpack.c.l.b16 %v360
        %v569 = vunpack.c.l.b16 %v361
        %v570 = vunpack.c.l.b16 %v362
        %v571 = vunpack.c.l.b16 %v363
        %v572 = vunpack.c.l.b16 %v364
        %v573 = vunpack.c.l.b16 %v365
        %v574 = vunpack.c.l.b16 %v366
        %v575 = vunpack.c.l.b16 %v367
        %v576 = vunpack.c.l.b16 %v368
        %v577 = vunpack.c.l.b16 %v369
        %v578 = vunpack.c.l.b16 %v370
        %v579 = vunpack.c.l.b16 %v371
        %v580 = vunpack.c.l.b16 %v372
        %v581 = vunpack.c.l.b16 %v373
        %v582 = vunpack.c.l.b16 %v374
        %v583 = vunpack.c.l.b16 %v375
        %v584 = vunpack.c.l.b16 %v376
        %v585 = vunpack.c.l.b16 %v377
        %v586 = vunpack.c.l.b16 %v378
        %v587 = vunpack.c.l.b16 %v379
        %v588 = vunpack.c.l.b16 %v380
        %v589 = vunpack.c.l.b16 %v381
        %v590 = vunpack.c.l.b16 %v382
        %v591 = vunpack.c.l.b16 %v383
        %v592 = vunpack.c.l.b16 %v384
        %v593 = vunpack.c.l.b16 %v385
        %v594 = vunpack.c.l.b16 %v386
        %v595 = vunpack.c.l.b16 %v387
        %v596 = vunpack.c.l.b16 %v388
        %v597 = vunpack.c.l.b16 %v389
        %v598 = vunpack.c.l.b16 %v390
        %v599 = vunpack.c.l.b16 %v391
        %v600 = vunpack.c.l.b16 %v392
        %v601 = vunpack.c.l.b16 %v393
        %v602 = vunpack.c.l.b16 %v394
        %v603 = vunpack.c.l.b16 %v395
        %v604 = vunpack.c.l.b16 %v396
        %v605 = vunpack.c.l.b16 %v397
        %v606 = vunpack.c.l.b16 %v398
        %v607 = vunpack.c.l.b16 %v399
        %v608 = vunpack.c.l.b16 %v400
        %v609 = vpack.c.b16 %v514, %v513
        %v610 = vpack.c.b16 %v516, %v515
        %v611 = vpack.c.b16 %v518, %v517
        %v612 = vpack.c.b16 %v520, %v519
        %v613 = vpack.c.b16 %v522, %v521
        %v614 = vpack.c.b16 %v524, %v523
        %v615 = vpack.c.b16 %v526, %v525
        %v616 = vpack.c.b16 %v528, %v527
        %v617 = vpack.c.b16 %v530, %v529
        %v618 = vpack.c.b16 %v532, %v531
        %v619 = vpack.c.b16 %v534, %v533
        %v620 = vpack.c.b16 %v536, %v535
        %v621 = vpack.c.b16 %v538, %v537
        %v622 = vpack.c.b16 %v540, %v539
        %v623 = vpack.c.b16 %v542, %v541
        %v624 = vpack.c.b16 %v544, %v543
        %v625 = vpack.c.b16 %v546, %v545
        %v626 = vpack.c.b16 %v548, %v547
        %v627 = vpack.c.b16 %v550, %v549
        %v628 = vpack.c.b16 %v552, %v551
        %v629 = vpack.c.b16 %v554, %v553
        %v630 = vpack.c.b16 %v556, %v555
        %v631 = vpack.c.b16 %v558, %v557
        %v632 = vpack.c.b16 %v560, %v559
        %v633 = vpack.c.b16 %v562, %v561
        %v634 = vpack.c.b16 %v564, %v563
        %v635 = vpack.c.b16 %v566, %v565
        %v636 = vpack.c.b16 %v568, %v567
        %v637 = vpack.c.b16 %v570, %v569
        %v638 = vpack.c.b16 %v572, %v571
        %v639 = vpack.c.b16 %v574, %v573
        %v640 = vpack.c.b16 %v576, %v575
        %v641 = vpack.c.b16 %v578, %v577
        %v642 = vpack.c.b16 %v580, %v579
        %v643 = vpack.c.b16 %v582, %v581
        %v644 = vpack.c.b16 %v584, %v583
        %v645 = vpack.c.b16 %v586, %v585
        %v646 = vpack.c.b16 %v588, %v587
        %v647 = vpack.c.b16 %v590, %v589
        %v648 = vpack.c.b16 %v592, %v591
        %v649 = vpack.c.b16 %v594, %v593
        %v650 = vpack.c.b16 %v596, %v595
        %v651 = vpack.c.b16 %v598, %v597
        %v652 = vpack.c.b16 %v600, %v599
        %v653 = vpack.c.b16 %v602, %v601
        %v654 = vpack.c.b16 %v604, %v603
        %v655 = vpack.c.b16 %v606, %v605
        %v656 = vpack.c.b16 %v608, %v607
        %v721 = vunpack.c.l.b16 %v401
        %v722 = vunpack.c.l.b16 %v402
        %v723 = vunpack.c.l.b16 %v403
        %v724 = vunpack.c.l.b16 %v404
        %v725 = vunpack.c.l.b16 %v405
        %v726 = vunpack.c.l.b16 %v406
        %v727 = vunpack.c.l.b16 %v407
        %v728 = vunpack.c.l.b16 %v408
        %v729 = vunpack.c.l.b16 %v409
        %v730 = vunpack.c.l.b16 %v410
        %v731 = vunpack.c.l.b16 %v411
        %v732 = vunpack.c.l.b16 %v412
        %v733 = vunpack.c.l.b16 %v413
        %v734 = vunpack.c.l.b16 %v414
        %v735 = vunpack.c.l.b16 %v415
        %v736 = vunpack.c.l.b16 %v416
        %v737 = vpack.c.b16 %v722, %v721
        %v738 = vpack.c.b16 %v724, %v723
        %v739 = vpack.c.b16 %v726, %v725
        %v740 = vpack.c.b16 %v728, %v727
        %v741 = vpack.c.b16 %v730, %v729
        %v742 = vpack.c.b16 %v732, %v731
        %v743 = vpack.c.b16 %v734, %v733
        %v744 = vpack.c.b16 %v736, %v735
        %753 = vmatprep.subr.bf16.mxu0 0
        %754 = vmatpush1.bf16.msra.mxu0 %v744
        %755 = vmatprep.subr.bf16.mxu0 0
        %756 = vmatpush1.bf16.msra.mxu0 %v743
        %757 = vmatprep.subr.bf16.mxu0 0
        %758 = vmatpush1.bf16.msra.mxu0 %v742
        %759 = vmatprep.subr.bf16.mxu0 0
        %760 = vmatpush1.bf16.msra.mxu0 %v741
        %761 = vmatprep.subr.bf16.mxu0 0
        %762 = vmatpush1.bf16.msra.mxu0 %v740
        %763 = vmatprep.subr.bf16.mxu0 0
        %764 = vmatpush1.bf16.msra.mxu0 %v739
        %765 = vmatprep.subr.bf16.mxu0 0
        %766 = vmatpush1.bf16.msra.mxu0 %v738
        %767 = vmatprep.subr.bf16.mxu0 0
        %768 = vmatpush1.bf16.msra.mxu0 %v737
        %769 = vmatprep.subr.bf16.mxu0 0
        %770 = vmatpush2.bf16.msra.mxu0 0
        %771 = vmatprep.subr.bf16.mxu0 0
        %772 = vmatpush2.bf16.msra.mxu0 0
        %773 = vmatprep.subr.bf16.mxu0 0
        %774 = vmatpush2.bf16.msra.mxu0 0
        %775 = vmatprep.subr.bf16.mxu0 0
        %776 = vmatpush2.bf16.msra.mxu0 0
        %777 = vmatprep.subr.bf16.mxu0 0
        %778 = vmatpush2.bf16.msra.mxu0 0
        %779 = vmatprep.subr.bf16.mxu0 0
        %780 = vmatpush2.bf16.msra.mxu0 0
        %781 = vmatprep.subr.bf16.mxu0 0
        %782 = vmatpush2.bf16.msra.mxu0 0
        %783 = vmatprep.subr.bf16.mxu0 0
        %784 = vmatpush2.bf16.msra.mxu0 0
        %785 = vmatprep.mubr.bf16.mxu0 0
        %786 = vmatmul.mubr.bf16.gmra.mxu0 %v609
        %v787 = vpop.f32.mrf.mxu0
        %v788 = vadd.f32 0.0, %v787
        %v789 = vpop.f32.mrf.mxu0
        %v790 = vpop.f32.mrf.mxu0
        %v791 = vadd.f32 0.0, %v790
        %v792 = vpop.f32.mrf.mxu0
        %793 = vmatprep.mubr.bf16.mxu0 0
        %794 = vmatmul.mubr.bf16.gmra.mxu0 %v610
        %v795 = vpop.f32.mrf.mxu0
        %v796 = vadd.f32 0.0, %v795
        %v797 = vpop.f32.mrf.mxu0
        %v798 = vpop.f32.mrf.mxu0
        %v799 = vadd.f32 0.0, %v798
        %v800 = vpop.f32.mrf.mxu0
        %801 = vmatprep.mubr.bf16.mxu0 0
        %802 = vmatmul.mubr.bf16.gmra.mxu0 %v611
        %v803 = vpop.f32.mrf.mxu0
        %v804 = vadd.f32 0.0, %v803
        %v805 = vpop.f32.mrf.mxu0
        %v806 = vpop.f32.mrf.mxu0
        %v807 = vadd.f32 0.0, %v806
        %v808 = vpop.f32.mrf.mxu0
        %809 = vmatprep.mubr.bf16.mxu0 0
        %810 = vmatmul.mubr.bf16.gmra.mxu0 %v612
        %v811 = vpop.f32.mrf.mxu0
        %v812 = vadd.f32 0.0, %v811
        %v813 = vpop.f32.mrf.mxu0
        %v814 = vpop.f32.mrf.mxu0
        %v815 = vadd.f32 0.0, %v814
        %v816 = vpop.f32.mrf.mxu0
        %817 = vmatprep.mubr.bf16.mxu0 0
        %818 = vmatmul.mubr.bf16.gmra.mxu0 %v613
        %v819 = vpop.f32.mrf.mxu0
        %v820 = vadd.f32 0.0, %v819
        %v821 = vpop.f32.mrf.mxu0
        %v822 = vpop.f32.mrf.mxu0
        %v823 = vadd.f32 0.0, %v822
        %v824 = vpop.f32.mrf.mxu0
        %825 = vmatprep.mubr.bf16.mxu0 0
        %826 = vmatmul.mubr.bf16.gmra.mxu0 %v614
        %v827 = vpop.f32.mrf.mxu0
        %v828 = vadd.f32 0.0, %v827
        %v829 = vpop.f32.mrf.mxu0
        %v830 = vpop.f32.mrf.mxu0
        %v831 = vadd.f32 0.0, %v830
        %v832 = vpop.f32.mrf.mxu0
        %833 = vmatprep.mubr.bf16.mxu0 0
        %834 = vmatmul.mubr.bf16.gmra.mxu0 %v615
        %v835 = vpop.f32.mrf.mxu0
        %v836 = vadd.f32 0.0, %v835
        %v837 = vpop.f32.mrf.mxu0
        %v838 = vpop.f32.mrf.mxu0
        %v839 = vadd.f32 0.0, %v838
        %v840 = vpop.f32.mrf.mxu0
        %841 = vmatprep.mubr.bf16.mxu0 0
        %842 = vmatmul.mubr.bf16.gmra.mxu0 %v616
        %v843 = vpop.f32.mrf.mxu0
        %v844 = vadd.f32 0.0, %v843
        %v845 = vpop.f32.mrf.mxu0
        %v846 = vpop.f32.mrf.mxu0
        %v847 = vadd.f32 0.0, %v846
        %v848 = vpop.f32.mrf.mxu0
        %849 = vmatprep.mubr.bf16.mxu0 0
        %850 = vmatmul.mubr.bf16.gmra.mxu0 %v617
        %v851 = vpop.f32.mrf.mxu0
        %v852 = vadd.f32 0.0, %v851
        %v853 = vpop.f32.mrf.mxu0
        %v854 = vpop.f32.mrf.mxu0
        %v855 = vadd.f32 0.0, %v854
        %v856 = vpop.f32.mrf.mxu0
        %857 = vmatprep.mubr.bf16.mxu0 0
        %858 = vmatmul.mubr.bf16.gmra.mxu0 %v618
        %v859 = vpop.f32.mrf.mxu0
        %v860 = vadd.f32 0.0, %v859
        %v861 = vpop.f32.mrf.mxu0
        %v862 = vpop.f32.mrf.mxu0
        %v863 = vadd.f32 0.0, %v862
        %v864 = vpop.f32.mrf.mxu0
        %865 = vmatprep.mubr.bf16.mxu0 0
        %866 = vmatmul.mubr.bf16.gmra.mxu0 %v619
        %v867 = vpop.f32.mrf.mxu0
        %v868 = vadd.f32 0.0, %v867
        %v869 = vpop.f32.mrf.mxu0
        %v870 = vpop.f32.mrf.mxu0
        %v871 = vadd.f32 0.0, %v870
        %v872 = vpop.f32.mrf.mxu0
        %873 = vmatprep.mubr.bf16.mxu0 0
        %874 = vmatmul.mubr.bf16.gmra.mxu0 %v620
        %v875 = vpop.f32.mrf.mxu0
        %v876 = vadd.f32 0.0, %v875
        %v877 = vpop.f32.mrf.mxu0
        %v878 = vpop.f32.mrf.mxu0
        %v879 = vadd.f32 0.0, %v878
        %v880 = vpop.f32.mrf.mxu0
        %881 = vmatprep.mubr.bf16.mxu0 0
        %882 = vmatmul.mubr.bf16.gmra.mxu0 %v621
        %v883 = vpop.f32.mrf.mxu0
        %v884 = vadd.f32 0.0, %v883
        %v885 = vpop.f32.mrf.mxu0
        %v886 = vpop.f32.mrf.mxu0
        %v887 = vadd.f32 0.0, %v886
        %v888 = vpop.f32.mrf.mxu0
        %889 = vmatprep.mubr.bf16.mxu0 0
        %890 = vmatmul.mubr.bf16.gmra.mxu0 %v622
        %v891 = vpop.f32.mrf.mxu0
        %v892 = vadd.f32 0.0, %v891
        %v893 = vpop.f32.mrf.mxu0
        %v894 = vpop.f32.mrf.mxu0
        %v895 = vadd.f32 0.0, %v894
        %v896 = vpop.f32.mrf.mxu0
        %897 = vmatprep.mubr.bf16.mxu0 0
        %898 = vmatmul.mubr.bf16.gmra.mxu0 %v623
        %v899 = vpop.f32.mrf.mxu0
        %v900 = vadd.f32 0.0, %v899
        %v901 = vpop.f32.mrf.mxu0
        %v902 = vpop.f32.mrf.mxu0
        %v903 = vadd.f32 0.0, %v902
        %v904 = vpop.f32.mrf.mxu0
        %905 = vmatprep.mubr.bf16.mxu0 0
        %906 = vmatmul.mubr.bf16.gmra.mxu0 %v624
        %v907 = vpop.f32.mrf.mxu0
        %v908 = vadd.f32 0.0, %v907
        %v909 = vpop.f32.mrf.mxu0
        %v910 = vpop.f32.mrf.mxu0
        %v911 = vadd.f32 0.0, %v910
        %v912 = vpop.f32.mrf.mxu0
        %913 = vmatprep.mubr.bf16.mxu0 0
        %914 = vmatmul.mubr.bf16.gmra.mxu0 %v625
        %v915 = vpop.f32.mrf.mxu0
        %v916 = vadd.f32 0.0, %v915
        %v917 = vpop.f32.mrf.mxu0
        %v918 = vpop.f32.mrf.mxu0
        %v919 = vadd.f32 0.0, %v918
        %v920 = vpop.f32.mrf.mxu0
        %921 = vmatprep.mubr.bf16.mxu0 0
        %922 = vmatmul.mubr.bf16.gmra.mxu0 %v626
        %v923 = vpop.f32.mrf.mxu0
        %v924 = vadd.f32 0.0, %v923
        %v925 = vpop.f32.mrf.mxu0
        %v926 = vpop.f32.mrf.mxu0
        %v927 = vadd.f32 0.0, %v926
        %v928 = vpop.f32.mrf.mxu0
        %929 = vmatprep.mubr.bf16.mxu0 0
        %930 = vmatmul.mubr.bf16.gmra.mxu0 %v627
        %v931 = vpop.f32.mrf.mxu0
        %v932 = vadd.f32 0.0, %v931
        %v933 = vpop.f32.mrf.mxu0
        %v934 = vpop.f32.mrf.mxu0
        %v935 = vadd.f32 0.0, %v934
        %v936 = vpop.f32.mrf.mxu0
        %937 = vmatprep.mubr.bf16.mxu0 0
        %938 = vmatmul.mubr.bf16.gmra.mxu0 %v628
        %v939 = vpop.f32.mrf.mxu0
        %v940 = vadd.f32 0.0, %v939
        %v941 = vpop.f32.mrf.mxu0
        %v942 = vpop.f32.mrf.mxu0
        %v943 = vadd.f32 0.0, %v942
        %v944 = vpop.f32.mrf.mxu0
        %945 = vmatprep.mubr.bf16.mxu0 0
        %946 = vmatmul.mubr.bf16.gmra.mxu0 %v629
        %v947 = vpop.f32.mrf.mxu0
        %v948 = vadd.f32 0.0, %v947
        %v949 = vpop.f32.mrf.mxu0
        %v950 = vpop.f32.mrf.mxu0
        %v951 = vadd.f32 0.0, %v950
        %v952 = vpop.f32.mrf.mxu0
        %953 = vmatprep.mubr.bf16.mxu0 0
        %954 = vmatmul.mubr.bf16.gmra.mxu0 %v630
        %v955 = vpop.f32.mrf.mxu0
        %v956 = vadd.f32 0.0, %v955
        %v957 = vpop.f32.mrf.mxu0
        %v958 = vpop.f32.mrf.mxu0
        %v959 = vadd.f32 0.0, %v958
        %v960 = vpop.f32.mrf.mxu0
        %961 = vmatprep.mubr.bf16.mxu0 0
        %962 = vmatmul.mubr.bf16.gmra.mxu0 %v631
        %v963 = vpop.f32.mrf.mxu0
        %v964 = vadd.f32 0.0, %v963
        %v965 = vpop.f32.mrf.mxu0
        %v966 = vpop.f32.mrf.mxu0
        %v967 = vadd.f32 0.0, %v966
        %v968 = vpop.f32.mrf.mxu0
        %969 = vmatprep.mubr.bf16.mxu0 0
        %970 = vmatmul.mubr.bf16.gmra.mxu0 %v632
        %v971 = vpop.f32.mrf.mxu0
        %v972 = vadd.f32 0.0, %v971
        %v973 = vpop.f32.mrf.mxu0
        %v974 = vpop.f32.mrf.mxu0
        %v975 = vadd.f32 0.0, %v974
        %v976 = vpop.f32.mrf.mxu0
        %977 = vmatprep.mubr.bf16.mxu0 0
        %978 = vmatmul.mubr.bf16.gmra.mxu0 %v633
        %v979 = vpop.f32.mrf.mxu0
        %v980 = vadd.f32 0.0, %v979
        %v981 = vpop.f32.mrf.mxu0
        %v982 = vpop.f32.mrf.mxu0
        %v983 = vadd.f32 0.0, %v982
        %v984 = vpop.f32.mrf.mxu0
        %985 = vmatprep.mubr.bf16.mxu0 0
        %986 = vmatmul.mubr.bf16.gmra.mxu0 %v634
        %v987 = vpop.f32.mrf.mxu0
        %v988 = vadd.f32 0.0, %v987
        %v989 = vpop.f32.mrf.mxu0
        %v990 = vpop.f32.mrf.mxu0
        %v991 = vadd.f32 0.0, %v990
        %v992 = vpop.f32.mrf.mxu0
        %993 = vmatprep.mubr.bf16.mxu0 0
        %994 = vmatmul.mubr.bf16.gmra.mxu0 %v635
        %v995 = vpop.f32.mrf.mxu0
        %v996 = vadd.f32 0.0, %v995
        %v997 = vpop.f32.mrf.mxu0
        %v998 = vpop.f32.mrf.mxu0
        %v999 = vadd.f32 0.0, %v998
        %v1000 = vpop.f32.mrf.mxu0
        %1001 = vmatprep.mubr.bf16.mxu0 0
        %1002 = vmatmul.mubr.bf16.gmra.mxu0 %v636
        %v1003 = vpop.f32.mrf.mxu0
        %v1004 = vadd.f32 0.0, %v1003
        %v1005 = vpop.f32.mrf.mxu0
        %v1006 = vpop.f32.mrf.mxu0
        %v1007 = vadd.f32 0.0, %v1006
        %v1008 = vpop.f32.mrf.mxu0
        %1009 = vmatprep.mubr.bf16.mxu0 0
        %1010 = vmatmul.mubr.bf16.gmra.mxu0 %v637
        %v1011 = vpop.f32.mrf.mxu0
        %v1012 = vadd.f32 0.0, %v1011
        %v1013 = vpop.f32.mrf.mxu0
        %v1014 = vpop.f32.mrf.mxu0
        %v1015 = vadd.f32 0.0, %v1014
        %v1016 = vpop.f32.mrf.mxu0
        %1017 = vmatprep.mubr.bf16.mxu0 0
        %1018 = vmatmul.mubr.bf16.gmra.mxu0 %v638
        %v1019 = vpop.f32.mrf.mxu0
        %v1020 = vadd.f32 0.0, %v1019
        %v1021 = vpop.f32.mrf.mxu0
        %v1022 = vpop.f32.mrf.mxu0
        %v1023 = vadd.f32 0.0, %v1022
        %v1024 = vpop.f32.mrf.mxu0
        %1025 = vmatprep.mubr.bf16.mxu0 0
        %1026 = vmatmul.mubr.bf16.gmra.mxu0 %v639
        %v1027 = vpop.f32.mrf.mxu0
        %v1028 = vadd.f32 0.0, %v1027
        %v1029 = vpop.f32.mrf.mxu0
        %v1030 = vpop.f32.mrf.mxu0
        %v1031 = vadd.f32 0.0, %v1030
        %v1032 = vpop.f32.mrf.mxu0
        %1033 = vmatprep.mubr.bf16.mxu0 0
        %1034 = vmatmul.mubr.bf16.gmra.mxu0 %v640
        %v1035 = vpop.f32.mrf.mxu0
        %v1036 = vadd.f32 0.0, %v1035
        %v1037 = vpop.f32.mrf.mxu0
        %v1038 = vpop.f32.mrf.mxu0
        %v1039 = vadd.f32 0.0, %v1038
        %v1040 = vpop.f32.mrf.mxu0
        %1041 = vmatprep.mubr.bf16.mxu0 0
        %1042 = vmatmul.mubr.bf16.gmra.mxu0 %v641
        %v1043 = vpop.f32.mrf.mxu0
        %v1044 = vadd.f32 0.0, %v1043
        %v1045 = vpop.f32.mrf.mxu0
        %v1046 = vpop.f32.mrf.mxu0
        %v1047 = vadd.f32 0.0, %v1046
        %v1048 = vpop.f32.mrf.mxu0
        %1049 = vmatprep.mubr.bf16.mxu0 0
        %1050 = vmatmul.mubr.bf16.gmra.mxu0 %v642
        %v1051 = vpop.f32.mrf.mxu0
        %v1052 = vadd.f32 0.0, %v1051
        %v1053 = vpop.f32.mrf.mxu0
        %v1054 = vpop.f32.mrf.mxu0
        %v1055 = vadd.f32 0.0, %v1054
        %v1056 = vpop.f32.mrf.mxu0
        %1057 = vmatprep.mubr.bf16.mxu0 0
        %1058 = vmatmul.mubr.bf16.gmra.mxu0 %v643
        %v1059 = vpop.f32.mrf.mxu0
        %v1060 = vadd.f32 0.0, %v1059
        %v1061 = vpop.f32.mrf.mxu0
        %v1062 = vpop.f32.mrf.mxu0
        %v1063 = vadd.f32 0.0, %v1062
        %v1064 = vpop.f32.mrf.mxu0
        %1065 = vmatprep.mubr.bf16.mxu0 0
        %1066 = vmatmul.mubr.bf16.gmra.mxu0 %v644
        %v1067 = vpop.f32.mrf.mxu0
        %v1068 = vadd.f32 0.0, %v1067
        %v1069 = vpop.f32.mrf.mxu0
        %v1070 = vpop.f32.mrf.mxu0
        %v1071 = vadd.f32 0.0, %v1070
        %v1072 = vpop.f32.mrf.mxu0
        %1073 = vmatprep.mubr.bf16.mxu0 0
        %1074 = vmatmul.mubr.bf16.gmra.mxu0 %v645
        %v1075 = vpop.f32.mrf.mxu0
        %v1076 = vadd.f32 0.0, %v1075
        %v1077 = vpop.f32.mrf.mxu0
        %v1078 = vpop.f32.mrf.mxu0
        %v1079 = vadd.f32 0.0, %v1078
        %v1080 = vpop.f32.mrf.mxu0
        %1081 = vmatprep.mubr.bf16.mxu0 0
        %1082 = vmatmul.mubr.bf16.gmra.mxu0 %v646
        %v1083 = vpop.f32.mrf.mxu0
        %v1084 = vadd.f32 0.0, %v1083
        %v1085 = vpop.f32.mrf.mxu0
        %v1086 = vpop.f32.mrf.mxu0
        %v1087 = vadd.f32 0.0, %v1086
        %v1088 = vpop.f32.mrf.mxu0
        %1089 = vmatprep.mubr.bf16.mxu0 0
        %1090 = vmatmul.mubr.bf16.gmra.mxu0 %v647
        %v1091 = vpop.f32.mrf.mxu0
        %v1092 = vadd.f32 0.0, %v1091
        %v1093 = vpop.f32.mrf.mxu0
        %v1094 = vpop.f32.mrf.mxu0
        %v1095 = vadd.f32 0.0, %v1094
        %v1096 = vpop.f32.mrf.mxu0
        %1097 = vmatprep.mubr.bf16.mxu0 0
        %1098 = vmatmul.mubr.bf16.gmra.mxu0 %v648
        %v1099 = vpop.f32.mrf.mxu0
        %v1100 = vadd.f32 0.0, %v1099
        %v1101 = vpop.f32.mrf.mxu0
        %v1102 = vpop.f32.mrf.mxu0
        %v1103 = vadd.f32 0.0, %v1102
        %v1104 = vpop.f32.mrf.mxu0
        %1105 = vmatprep.mubr.bf16.mxu0 0
        %1106 = vmatmul.mubr.bf16.gmra.mxu0 %v649
        %v1107 = vpop.f32.mrf.mxu0
        %v1108 = vadd.f32 0.0, %v1107
        %v1109 = vpop.f32.mrf.mxu0
        %v1110 = vpop.f32.mrf.mxu0
        %v1111 = vadd.f32 0.0, %v1110
        %v1112 = vpop.f32.mrf.mxu0
        %1113 = vmatprep.mubr.bf16.mxu0 0
        %1114 = vmatmul.mubr.bf16.gmra.mxu0 %v650
        %v1115 = vpop.f32.mrf.mxu0
        %v1116 = vadd.f32 0.0, %v1115
        %v1117 = vpop.f32.mrf.mxu0
        %v1118 = vpop.f32.mrf.mxu0
        %v1119 = vadd.f32 0.0, %v1118
        %v1120 = vpop.f32.mrf.mxu0
        %1121 = vmatprep.mubr.bf16.mxu0 0
        %1122 = vmatmul.mubr.bf16.gmra.mxu0 %v651
        %v1123 = vpop.f32.mrf.mxu0
        %v1124 = vadd.f32 0.0, %v1123
        %v1125 = vpop.f32.mrf.mxu0
        %v1126 = vpop.f32.mrf.mxu0
        %v1127 = vadd.f32 0.0, %v1126
        %v1128 = vpop.f32.mrf.mxu0
        %1129 = vmatprep.mubr.bf16.mxu0 0
        %1130 = vmatmul.mubr.bf16.gmra.mxu0 %v652
        %v1131 = vpop.f32.mrf.mxu0
        %v1132 = vadd.f32 0.0, %v1131
        %v1133 = vpop.f32.mrf.mxu0
        %v1134 = vpop.f32.mrf.mxu0
        %v1135 = vadd.f32 0.0, %v1134
        %v1136 = vpop.f32.mrf.mxu0
        %1137 = vmatprep.mubr.bf16.mxu0 0
        %1138 = vmatmul.mubr.bf16.gmra.mxu0 %v653
        %v1139 = vpop.f32.mrf.mxu0
        %v1140 = vadd.f32 0.0, %v1139
        %v1141 = vpop.f32.mrf.mxu0
        %v1142 = vpop.f32.mrf.mxu0
        %v1143 = vadd.f32 0.0, %v1142
        %v1144 = vpop.f32.mrf.mxu0
        %1145 = vmatprep.mubr.bf16.mxu0 0
        %1146 = vmatmul.mubr.bf16.gmra.mxu0 %v654
        %v1147 = vpop.f32.mrf.mxu0
        %v1148 = vadd.f32 0.0, %v1147
        %v1149 = vpop.f32.mrf.mxu0
        %v1150 = vpop.f32.mrf.mxu0
        %v1151 = vadd.f32 0.0, %v1150
        %v1152 = vpop.f32.mrf.mxu0
        %1153 = vmatprep.mubr.bf16.mxu0 0
        %1154 = vmatmul.mubr.bf16.gmra.mxu0 %v655
        %v1155 = vpop.f32.mrf.mxu0
        %v1156 = vadd.f32 0.0, %v1155
        %v1157 = vpop.f32.mrf.mxu0
        %v1158 = vpop.f32.mrf.mxu0
        %v1159 = vadd.f32 0.0, %v1158
        %v1160 = vpop.f32.mrf.mxu0
        %1161 = vmatprep.mubr.bf16.mxu0 0
        %1162 = vmatmul.mubr.bf16.gmra.mxu0 %v656
        %v1163 = vpop.f32.mrf.mxu0
        %v1164 = vadd.f32 0.0, %v1163
        %v1165 = vpop.f32.mrf.mxu0
        %v1166 = vpop.f32.mrf.mxu0
        %v1167 = vadd.f32 0.0, %v1166
        %v1168 = vpop.f32.mrf.mxu0
        %1169 = vdwg.mxu0
        %v1170 = vpack.c.bf16 %v791, %v788
        %v1171 = vpack.c.bf16 %v799, %v796
        %v1172 = vpack.c.bf16 %v807, %v804
        %v1173 = vpack.c.bf16 %v815, %v812
        %v1174 = vpack.c.bf16 %v823, %v820
        %v1175 = vpack.c.bf16 %v831, %v828
        %v1176 = vpack.c.bf16 %v839, %v836
        %v1177 = vpack.c.bf16 %v847, %v844
        %v1178 = vpack.c.bf16 %v855, %v852
        %v1179 = vpack.c.bf16 %v863, %v860
        %v1180 = vpack.c.bf16 %v871, %v868
        %v1181 = vpack.c.bf16 %v879, %v876
        %v1182 = vpack.c.bf16 %v887, %v884
        %v1183 = vpack.c.bf16 %v895, %v892
        %v1184 = vpack.c.bf16 %v903, %v900
        %v1185 = vpack.c.bf16 %v911, %v908
        %v1186 = vpack.c.bf16 %v919, %v916
        %v1187 = vpack.c.bf16 %v927, %v924
        %v1188 = vpack.c.bf16 %v935, %v932
        %v1189 = vpack.c.bf16 %v943, %v940
        %v1190 = vpack.c.bf16 %v951, %v948
        %v1191 = vpack.c.bf16 %v959, %v956
        %v1192 = vpack.c.bf16 %v967, %v964
        %v1193 = vpack.c.bf16 %v975, %v972
        %v1194 = vpack.c.bf16 %v983, %v980
        %v1195 = vpack.c.bf16 %v991, %v988
        %v1196 = vpack.c.bf16 %v999, %v996
        %v1197 = vpack.c.bf16 %v1007, %v1004
        %v1198 = vpack.c.bf16 %v1015, %v1012
        %v1199 = vpack.c.bf16 %v1023, %v1020
        %v1200 = vpack.c.bf16 %v1031, %v1028
        %v1201 = vpack.c.bf16 %v1039, %v1036
        %v1202 = vpack.c.bf16 %v1047, %v1044
        %v1203 = vpack.c.bf16 %v1055, %v1052
        %v1204 = vpack.c.bf16 %v1063, %v1060
        %v1205 = vpack.c.bf16 %v1071, %v1068
        %v1206 = vpack.c.bf16 %v1079, %v1076
        %v1207 = vpack.c.bf16 %v1087, %v1084
        %v1208 = vpack.c.bf16 %v1095, %v1092
        %v1209 = vpack.c.bf16 %v1103, %v1100
        %v1210 = vpack.c.bf16 %v1111, %v1108
        %v1211 = vpack.c.bf16 %v1119, %v1116
        %v1212 = vpack.c.bf16 %v1127, %v1124
        %v1213 = vpack.c.bf16 %v1135, %v1132
        %v1214 = vpack.c.bf16 %v1143, %v1140
        %v1215 = vpack.c.bf16 %v1151, %v1148
        %v1216 = vpack.c.bf16 %v1159, %v1156
        %v1217 = vpack.c.bf16 %v1167, %v1164
        %v1218 = vld [vmem:[%s254] sm:$0xff]
        %v1219 = vld [vmem:[%s254 + $0x8] sm:$0xff]
        %v1220 = vld [vmem:[%s254 + $0x10] sm:$0xff]
        %v1221 = vld [vmem:[%s254 + $0x18] sm:$0xff]
        %v1222 = vld [vmem:[%s254 + $0x20] sm:$0xff]
        %v1223 = vld [vmem:[%s254 + $0x28] sm:$0xff]
        %v1224 = vld [vmem:[%s254 + $0x30] sm:$0xff]
        %v1225 = vld [vmem:[%s254 + $0x38] sm:$0xff]
        %v1226 = vld [vmem:[%s254 + $0x40] sm:$0xff]
        %v1227 = vld [vmem:[%s254 + $0x48] sm:$0xff]
        %v1228 = vld [vmem:[%s254 + $0x50] sm:$0xff]
        %v1229 = vld [vmem:[%s254 + $0x58] sm:$0xff]
        %v1230 = vld [vmem:[%s254 + $0x60] sm:$0xff]
        %v1231 = vld [vmem:[%s254 + $0x68] sm:$0xff]
        %v1232 = vld [vmem:[%s254 + $0x70] sm:$0xff]
        %v1233 = vld [vmem:[%s254 + $0x78] sm:$0xff]
        %v1234 = vld [vmem:[%s254 + $0x80] sm:$0xff]
        %v1235 = vld [vmem:[%s254 + $0x88] sm:$0xff]
        %v1236 = vld [vmem:[%s254 + $0x90] sm:$0xff]
        %v1237 = vld [vmem:[%s254 + $0x98] sm:$0xff]
        %v1238 = vld [vmem:[%s254 + $0xa0] sm:$0xff]
        %v1239 = vld [vmem:[%s254 + $0xa8] sm:$0xff]
        %v1240 = vld [vmem:[%s254 + $0xb0] sm:$0xff]
        %v1241 = vld [vmem:[%s254 + $0xb8] sm:$0xff]
        %v1242 = vld [vmem:[%s254 + $0xc0] sm:$0xff]
        %v1243 = vld [vmem:[%s254 + $0xc8] sm:$0xff]
        %v1244 = vld [vmem:[%s254 + $0xd0] sm:$0xff]
        %v1245 = vld [vmem:[%s254 + $0xd8] sm:$0xff]
        %v1246 = vld [vmem:[%s254 + $0xe0] sm:$0xff]
        %v1247 = vld [vmem:[%s254 + $0xe8] sm:$0xff]
        %v1248 = vld [vmem:[%s254 + $0xf0] sm:$0xff]
        %v1249 = vld [vmem:[%s254 + $0xf8] sm:$0xff]
        %v1250 = vld [vmem:[%s254 + $0x100] sm:$0xff]
        %v1251 = vld [vmem:[%s254 + $0x108] sm:$0xff]
        %v1252 = vld [vmem:[%s254 + $0x110] sm:$0xff]
        %v1253 = vld [vmem:[%s254 + $0x118] sm:$0xff]
        %v1254 = vld [vmem:[%s254 + $0x120] sm:$0xff]
        %v1255 = vld [vmem:[%s254 + $0x128] sm:$0xff]
        %v1256 = vld [vmem:[%s254 + $0x130] sm:$0xff]
        %v1257 = vld [vmem:[%s254 + $0x138] sm:$0xff]
        %v1258 = vld [vmem:[%s254 + $0x140] sm:$0xff]
        %v1259 = vld [vmem:[%s254 + $0x148] sm:$0xff]
        %v1260 = vld [vmem:[%s254 + $0x150] sm:$0xff]
        %v1261 = vld [vmem:[%s254 + $0x158] sm:$0xff]
        %v1262 = vld [vmem:[%s254 + $0x160] sm:$0xff]
        %v1263 = vld [vmem:[%s254 + $0x168] sm:$0xff]
        %v1264 = vld [vmem:[%s254 + $0x170] sm:$0xff]
        %v1265 = vld [vmem:[%s254 + $0x178] sm:$0xff]
        %v1266 = vld [vmem:[%s254 + $0x180] sm:$0xff]
        %v1267 = vld [vmem:[%s254 + $0x188] sm:$0xff]
        %v1268 = vld [vmem:[%s254 + $0x190] sm:$0xff]
        %v1269 = vld [vmem:[%s254 + $0x198] sm:$0xff]
        %v1270 = vld [vmem:[%s254 + $0x1a0] sm:$0xff]
        %v1271 = vld [vmem:[%s254 + $0x1a8] sm:$0xff]
        %v1272 = vld [vmem:[%s254 + $0x1b0] sm:$0xff]
        %v1273 = vld [vmem:[%s254 + $0x1b8] sm:$0xff]
        %v1274 = vld [vmem:[%s254 + $0x1c0] sm:$0xff]
        %v1275 = vld [vmem:[%s254 + $0x1c8] sm:$0xff]
        %v1276 = vld [vmem:[%s254 + $0x1d0] sm:$0xff]
        %v1277 = vld [vmem:[%s254 + $0x1d8] sm:$0xff]
        %v1278 = vld [vmem:[%s254 + $0x1e0] sm:$0xff]
        %v1279 = vld [vmem:[%s254 + $0x1e8] sm:$0xff]
        %v1280 = vld [vmem:[%s254 + $0x1f0] sm:$0xff]
        %v1281 = vld [vmem:[%s254 + $0x1f8] sm:$0xff]
        %v1282 = vld [vmem:[%s254 + $0x200] sm:$0xff]
        %v1283 = vld [vmem:[%s254 + $0x208] sm:$0xff]
        %v1284 = vld [vmem:[%s254 + $0x210] sm:$0xff]
        %v1285 = vld [vmem:[%s254 + $0x218] sm:$0xff]
        %v1286 = vld [vmem:[%s254 + $0x220] sm:$0xff]
        %v1287 = vld [vmem:[%s254 + $0x228] sm:$0xff]
        %v1288 = vld [vmem:[%s254 + $0x230] sm:$0xff]
        %v1289 = vld [vmem:[%s254 + $0x238] sm:$0xff]
        %v1290 = vld [vmem:[%s254 + $0x240] sm:$0xff]
        %v1291 = vld [vmem:[%s254 + $0x248] sm:$0xff]
        %v1292 = vld [vmem:[%s254 + $0x250] sm:$0xff]
        %v1293 = vld [vmem:[%s254 + $0x258] sm:$0xff]
        %v1294 = vld [vmem:[%s254 + $0x260] sm:$0xff]
        %v1295 = vld [vmem:[%s254 + $0x268] sm:$0xff]
        %v1296 = vld [vmem:[%s254 + $0x270] sm:$0xff]
        %v1297 = vld [vmem:[%s254 + $0x278] sm:$0xff]
        %v1298 = vld [vmem:[%s254 + $0x280] sm:$0xff]
        %v1299 = vld [vmem:[%s254 + $0x288] sm:$0xff]
        %v1300 = vld [vmem:[%s254 + $0x290] sm:$0xff]
        %v1301 = vld [vmem:[%s254 + $0x298] sm:$0xff]
        %v1302 = vld [vmem:[%s254 + $0x2a0] sm:$0xff]
        %v1303 = vld [vmem:[%s254 + $0x2a8] sm:$0xff]
        %v1304 = vld [vmem:[%s254 + $0x2b0] sm:$0xff]
        %v1305 = vld [vmem:[%s254 + $0x2b8] sm:$0xff]
        %v1306 = vld [vmem:[%s254 + $0x2c0] sm:$0xff]
        %v1307 = vld [vmem:[%s254 + $0x2c8] sm:$0xff]
        %v1308 = vld [vmem:[%s254 + $0x2d0] sm:$0xff]
        %v1309 = vld [vmem:[%s254 + $0x2d8] sm:$0xff]
        %v1310 = vld [vmem:[%s254 + $0x2e0] sm:$0xff]
        %v1311 = vld [vmem:[%s254 + $0x2e8] sm:$0xff]
        %v1312 = vld [vmem:[%s254 + $0x2f0] sm:$0xff]
        %v1313 = vld [vmem:[%s254 + $0x2f8] sm:$0xff]
        %v1314 = vld [vmem:[%s254 + $0x300] sm:$0xff]
        %v1315 = vld [vmem:[%s254 + $0x308] sm:$0xff]
        %v1316 = vld [vmem:[%s254 + $0x310] sm:$0xff]
        %v1317 = vld [vmem:[%s254 + $0x318] sm:$0xff]
        %v1318 = vld [vmem:[%s254 + $0x320] sm:$0xff]
        %v1319 = vld [vmem:[%s254 + $0x328] sm:$0xff]
        %v1320 = vld [vmem:[%s254 + $0x330] sm:$0xff]
        %v1321 = vld [vmem:[%s254 + $0x338] sm:$0xff]
        %v1322 = vld [vmem:[%s254 + $0x340] sm:$0xff]
        %v1323 = vld [vmem:[%s254 + $0x348] sm:$0xff]
        %v1324 = vld [vmem:[%s254 + $0x350] sm:$0xff]
        %v1325 = vld [vmem:[%s254 + $0x358] sm:$0xff]
        %v1326 = vld [vmem:[%s254 + $0x360] sm:$0xff]
        %v1327 = vld [vmem:[%s254 + $0x368] sm:$0xff]
        %v1328 = vld [vmem:[%s254 + $0x370] sm:$0xff]
        %v1329 = vld [vmem:[%s254 + $0x378] sm:$0xff]
        %v1330 = vld [vmem:[%s254 + $0x380] sm:$0xff]
        %v1331 = vld [vmem:[%s254 + $0x388] sm:$0xff]
        %v1332 = vld [vmem:[%s254 + $0x390] sm:$0xff]
        %v1333 = vld [vmem:[%s254 + $0x398] sm:$0xff]
        %v1334 = vld [vmem:[%s254 + $0x3a0] sm:$0xff]
        %v1335 = vld [vmem:[%s254 + $0x3a8] sm:$0xff]
        %v1336 = vld [vmem:[%s254 + $0x3b0] sm:$0xff]
        %v1337 = vld [vmem:[%s254 + $0x3b8] sm:$0xff]
        %v1338 = vld [vmem:[%s254 + $0x3c0] sm:$0xff]
        %v1339 = vld [vmem:[%s254 + $0x3c8] sm:$0xff]
        %v1340 = vld [vmem:[%s254 + $0x3d0] sm:$0xff]
        %v1341 = vld [vmem:[%s254 + $0x3d8] sm:$0xff]
        %v1342 = vld [vmem:[%s254 + $0x3e0] sm:$0xff]
        %v1343 = vld [vmem:[%s254 + $0x3e8] sm:$0xff]
        %v1344 = vld [vmem:[%s254 + $0x3f0] sm:$0xff]
        %v1345 = vld [vmem:[%s254 + $0x3f8] sm:$0xff]
        %v1346 = vld [vmem:[%s254 + $0x400] sm:$0xff]
        %v1347 = vld [vmem:[%s254 + $0x408] sm:$0xff]
        %v1348 = vld [vmem:[%s254 + $0x410] sm:$0xff]
        %v1349 = vld [vmem:[%s254 + $0x418] sm:$0xff]
        %v1350 = vld [vmem:[%s254 + $0x420] sm:$0xff]
        %v1351 = vld [vmem:[%s254 + $0x428] sm:$0xff]
        %v1352 = vld [vmem:[%s254 + $0x430] sm:$0xff]
        %v1353 = vld [vmem:[%s254 + $0x438] sm:$0xff]
        %v1354 = vld [vmem:[%s254 + $0x440] sm:$0xff]
        %v1355 = vld [vmem:[%s254 + $0x448] sm:$0xff]
        %v1356 = vld [vmem:[%s254 + $0x450] sm:$0xff]
        %v1357 = vld [vmem:[%s254 + $0x458] sm:$0xff]
        %v1358 = vld [vmem:[%s254 + $0x460] sm:$0xff]
        %v1359 = vld [vmem:[%s254 + $0x468] sm:$0xff]
        %v1360 = vld [vmem:[%s254 + $0x470] sm:$0xff]
        %v1361 = vld [vmem:[%s254 + $0x478] sm:$0xff]
        %v1362 = vld [vmem:[#allocation7] sm:$0x1]
        %v1364 = vlaneseq
        %v1365 = vshrl.u32 %v1364, 7
        %v1366 = vsub.s32 0, %v1365
        %v1367 = vrot.slane %v1362, %v1366
        %v1513 = vunpack.c.l.b16 %v1218
        %v1514 = vunpack.c.h.b16 %v1218
        %v1515 = vunpack.c.l.b16 %v1219
        %v1516 = vunpack.c.h.b16 %v1219
        %v1517 = vunpack.c.l.b16 %v1220
        %v1518 = vunpack.c.h.b16 %v1220
        %v1519 = vunpack.c.l.b16 %v1221
        %v1520 = vunpack.c.h.b16 %v1221
        %v1521 = vunpack.c.l.b16 %v1222
        %v1522 = vunpack.c.h.b16 %v1222
        %v1523 = vunpack.c.l.b16 %v1223
        %v1524 = vunpack.c.h.b16 %v1223
        %v1525 = vunpack.c.l.b16 %v1224
        %v1526 = vunpack.c.h.b16 %v1224
        %v1527 = vunpack.c.l.b16 %v1225
        %v1528 = vunpack.c.h.b16 %v1225
        %v1529 = vunpack.c.l.b16 %v1226
        %v1530 = vunpack.c.h.b16 %v1226
        %v1531 = vunpack.c.l.b16 %v1227
        %v1532 = vunpack.c.h.b16 %v1227
        %v1533 = vunpack.c.l.b16 %v1228
        %v1534 = vunpack.c.h.b16 %v1228
        %v1535 = vunpack.c.l.b16 %v1229
        %v1536 = vunpack.c.h.b16 %v1229
        %v1537 = vunpack.c.l.b16 %v1230
        %v1538 = vunpack.c.h.b16 %v1230
        %v1539 = vunpack.c.l.b16 %v1231
        %v1540 = vunpack.c.h.b16 %v1231
        %v1541 = vunpack.c.l.b16 %v1232
        %v1542 = vunpack.c.h.b16 %v1232
        %v1543 = vunpack.c.l.b16 %v1233
        %v1544 = vunpack.c.h.b16 %v1233
        %v1545 = vunpack.c.l.b16 %v1234
        %v1546 = vunpack.c.h.b16 %v1234
        %v1547 = vunpack.c.l.b16 %v1235
        %v1548 = vunpack.c.h.b16 %v1235
        %v1549 = vunpack.c.l.b16 %v1236
        %v1550 = vunpack.c.h.b16 %v1236
        %v1551 = vunpack.c.l.b16 %v1237
        %v1552 = vunpack.c.h.b16 %v1237
        %v1553 = vunpack.c.l.b16 %v1238
        %v1554 = vunpack.c.h.b16 %v1238
        %v1555 = vunpack.c.l.b16 %v1239
        %v1556 = vunpack.c.h.b16 %v1239
        %v1557 = vunpack.c.l.b16 %v1240
        %v1558 = vunpack.c.h.b16 %v1240
        %v1559 = vunpack.c.l.b16 %v1241
        %v1560 = vunpack.c.h.b16 %v1241
        %v1561 = vunpack.c.l.b16 %v1242
        %v1562 = vunpack.c.h.b16 %v1242
        %v1563 = vunpack.c.l.b16 %v1243
        %v1564 = vunpack.c.h.b16 %v1243
        %v1565 = vunpack.c.l.b16 %v1244
        %v1566 = vunpack.c.h.b16 %v1244
        %v1567 = vunpack.c.l.b16 %v1245
        %v1568 = vunpack.c.h.b16 %v1245
        %v1569 = vunpack.c.l.b16 %v1246
        %v1570 = vunpack.c.h.b16 %v1246
        %v1571 = vunpack.c.l.b16 %v1247
        %v1572 = vunpack.c.h.b16 %v1247
        %v1573 = vunpack.c.l.b16 %v1248
        %v1574 = vunpack.c.h.b16 %v1248
        %v1575 = vunpack.c.l.b16 %v1249
        %v1576 = vunpack.c.h.b16 %v1249
        %v1577 = vunpack.c.l.b16 %v1250
        %v1578 = vunpack.c.h.b16 %v1250
        %v1579 = vunpack.c.l.b16 %v1251
        %v1580 = vunpack.c.h.b16 %v1251
        %v1581 = vunpack.c.l.b16 %v1252
        %v1582 = vunpack.c.h.b16 %v1252
        %v1583 = vunpack.c.l.b16 %v1253
        %v1584 = vunpack.c.h.b16 %v1253
        %v1585 = vunpack.c.l.b16 %v1254
        %v1586 = vunpack.c.h.b16 %v1254
        %v1587 = vunpack.c.l.b16 %v1255
        %v1588 = vunpack.c.h.b16 %v1255
        %v1589 = vunpack.c.l.b16 %v1256
        %v1590 = vunpack.c.h.b16 %v1256
        %v1591 = vunpack.c.l.b16 %v1257
        %v1592 = vunpack.c.h.b16 %v1257
        %v1593 = vunpack.c.l.b16 %v1258
        %v1594 = vunpack.c.h.b16 %v1258
        %v1595 = vunpack.c.l.b16 %v1259
        %v1596 = vunpack.c.h.b16 %v1259
        %v1597 = vunpack.c.l.b16 %v1260
        %v1598 = vunpack.c.h.b16 %v1260
        %v1599 = vunpack.c.l.b16 %v1261
        %v1600 = vunpack.c.h.b16 %v1261
        %v1601 = vunpack.c.l.b16 %v1262
        %v1602 = vunpack.c.h.b16 %v1262
        %v1603 = vunpack.c.l.b16 %v1263
        %v1604 = vunpack.c.h.b16 %v1263
        %v1605 = vunpack.c.l.b16 %v1264
        %v1606 = vunpack.c.h.b16 %v1264
        %v1607 = vunpack.c.l.b16 %v1265
        %v1608 = vunpack.c.h.b16 %v1265
        %v1609 = vunpack.c.l.b16 %v1266
        %v1610 = vunpack.c.h.b16 %v1266
        %v1611 = vunpack.c.l.b16 %v1267
        %v1612 = vunpack.c.h.b16 %v1267
        %v1613 = vunpack.c.l.b16 %v1268
        %v1614 = vunpack.c.h.b16 %v1268
        %v1615 = vunpack.c.l.b16 %v1269
        %v1616 = vunpack.c.h.b16 %v1269
        %v1617 = vunpack.c.l.b16 %v1270
        %v1618 = vunpack.c.h.b16 %v1270
        %v1619 = vunpack.c.l.b16 %v1271
        %v1620 = vunpack.c.h.b16 %v1271
        %v1621 = vunpack.c.l.b16 %v1272
        %v1622 = vunpack.c.h.b16 %v1272
        %v1623 = vunpack.c.l.b16 %v1273
        %v1624 = vunpack.c.h.b16 %v1273
        %v1625 = vunpack.c.l.b16 %v1274
        %v1626 = vunpack.c.h.b16 %v1274
        %v1627 = vunpack.c.l.b16 %v1275
        %v1628 = vunpack.c.h.b16 %v1275
        %v1629 = vunpack.c.l.b16 %v1276
        %v1630 = vunpack.c.h.b16 %v1276
        %v1631 = vunpack.c.l.b16 %v1277
        %v1632 = vunpack.c.h.b16 %v1277
        %v1633 = vunpack.c.l.b16 %v1278
        %v1634 = vunpack.c.h.b16 %v1278
        %v1635 = vunpack.c.l.b16 %v1279
        %v1636 = vunpack.c.h.b16 %v1279
        %v1637 = vunpack.c.l.b16 %v1280
        %v1638 = vunpack.c.h.b16 %v1280
        %v1639 = vunpack.c.l.b16 %v1281
        %v1640 = vunpack.c.h.b16 %v1281
        %v1641 = vunpack.c.l.b16 %v1282
        %v1642 = vunpack.c.h.b16 %v1282
        %v1643 = vunpack.c.l.b16 %v1283
        %v1644 = vunpack.c.h.b16 %v1283
        %v1645 = vunpack.c.l.b16 %v1284
        %v1646 = vunpack.c.h.b16 %v1284
        %v1647 = vunpack.c.l.b16 %v1285
        %v1648 = vunpack.c.h.b16 %v1285
        %v1649 = vunpack.c.l.b16 %v1286
        %v1650 = vunpack.c.h.b16 %v1286
        %v1651 = vunpack.c.l.b16 %v1287
        %v1652 = vunpack.c.h.b16 %v1287
        %v1653 = vunpack.c.l.b16 %v1288
        %v1654 = vunpack.c.h.b16 %v1288
        %v1655 = vunpack.c.l.b16 %v1289
        %v1656 = vunpack.c.h.b16 %v1289
        %v1657 = vunpack.c.l.b16 %v1290
        %v1658 = vunpack.c.h.b16 %v1290
        %v1659 = vunpack.c.l.b16 %v1291
        %v1660 = vunpack.c.h.b16 %v1291
        %v1661 = vunpack.c.l.b16 %v1292
        %v1662 = vunpack.c.h.b16 %v1292
        %v1663 = vunpack.c.l.b16 %v1293
        %v1664 = vunpack.c.h.b16 %v1293
        %v1665 = vunpack.c.l.b16 %v1294
        %v1666 = vunpack.c.h.b16 %v1294
        %v1667 = vunpack.c.l.b16 %v1295
        %v1668 = vunpack.c.h.b16 %v1295
        %v1669 = vunpack.c.l.b16 %v1296
        %v1670 = vunpack.c.h.b16 %v1296
        %v1671 = vunpack.c.l.b16 %v1297
        %v1672 = vunpack.c.h.b16 %v1297
        %v1673 = vunpack.c.l.b16 %v1298
        %v1674 = vunpack.c.h.b16 %v1298
        %v1675 = vunpack.c.l.b16 %v1299
        %v1676 = vunpack.c.h.b16 %v1299
        %v1677 = vunpack.c.l.b16 %v1300
        %v1678 = vunpack.c.h.b16 %v1300
        %v1679 = vunpack.c.l.b16 %v1301
        %v1680 = vunpack.c.h.b16 %v1301
        %v1681 = vunpack.c.l.b16 %v1302
        %v1682 = vunpack.c.h.b16 %v1302
        %v1683 = vunpack.c.l.b16 %v1303
        %v1684 = vunpack.c.h.b16 %v1303
        %v1685 = vunpack.c.l.b16 %v1304
        %v1686 = vunpack.c.h.b16 %v1304
        %v1687 = vunpack.c.l.b16 %v1305
        %v1688 = vunpack.c.h.b16 %v1305
        %v1689 = vunpack.c.l.b16 %v1306
        %v1690 = vunpack.c.h.b16 %v1306
        %v1691 = vunpack.c.l.b16 %v1307
        %v1692 = vunpack.c.h.b16 %v1307
        %v1693 = vunpack.c.l.b16 %v1308
        %v1694 = vunpack.c.h.b16 %v1308
        %v1695 = vunpack.c.l.b16 %v1309
        %v1696 = vunpack.c.h.b16 %v1309
        %v1697 = vunpack.c.l.b16 %v1310
        %v1698 = vunpack.c.h.b16 %v1310
        %v1699 = vunpack.c.l.b16 %v1311
        %v1700 = vunpack.c.h.b16 %v1311
        %v1701 = vunpack.c.l.b16 %v1312
        %v1702 = vunpack.c.h.b16 %v1312
        %v1703 = vunpack.c.l.b16 %v1313
        %v1704 = vunpack.c.h.b16 %v1313
        %v1705 = vunpack.c.l.b16 %v1314
        %v1706 = vunpack.c.h.b16 %v1314
        %v1707 = vunpack.c.l.b16 %v1315
        %v1708 = vunpack.c.h.b16 %v1315
        %v1709 = vunpack.c.l.b16 %v1316
        %v1710 = vunpack.c.h.b16 %v1316
        %v1711 = vunpack.c.l.b16 %v1317
        %v1712 = vunpack.c.h.b16 %v1317
        %v1713 = vunpack.c.l.b16 %v1318
        %v1714 = vunpack.c.h.b16 %v1318
        %v1715 = vunpack.c.l.b16 %v1319
        %v1716 = vunpack.c.h.b16 %v1319
        %v1717 = vunpack.c.l.b16 %v1320
        %v1718 = vunpack.c.h.b16 %v1320
        %v1719 = vunpack.c.l.b16 %v1321
        %v1720 = vunpack.c.h.b16 %v1321
        %v1721 = vunpack.c.l.b16 %v1322
        %v1722 = vunpack.c.h.b16 %v1322
        %v1723 = vunpack.c.l.b16 %v1323
        %v1724 = vunpack.c.h.b16 %v1323
        %v1725 = vunpack.c.l.b16 %v1324
        %v1726 = vunpack.c.h.b16 %v1324
        %v1727 = vunpack.c.l.b16 %v1325
        %v1728 = vunpack.c.h.b16 %v1325
        %v1729 = vunpack.c.l.b16 %v1326
        %v1730 = vunpack.c.h.b16 %v1326
        %v1731 = vunpack.c.l.b16 %v1327
        %v1732 = vunpack.c.h.b16 %v1327
        %v1733 = vunpack.c.l.b16 %v1328
        %v1734 = vunpack.c.h.b16 %v1328
        %v1735 = vunpack.c.l.b16 %v1329
        %v1736 = vunpack.c.h.b16 %v1329
        %v1737 = vunpack.c.l.b16 %v1330
        %v1738 = vunpack.c.h.b16 %v1330
        %v1739 = vunpack.c.l.b16 %v1331
        %v1740 = vunpack.c.h.b16 %v1331
        %v1741 = vunpack.c.l.b16 %v1332
        %v1742 = vunpack.c.h.b16 %v1332
        %v1743 = vunpack.c.l.b16 %v1333
        %v1744 = vunpack.c.h.b16 %v1333
        %v1745 = vunpack.c.l.b16 %v1334
        %v1746 = vunpack.c.h.b16 %v1334
        %v1747 = vunpack.c.l.b16 %v1335
        %v1748 = vunpack.c.h.b16 %v1335
        %v1749 = vunpack.c.l.b16 %v1336
        %v1750 = vunpack.c.h.b16 %v1336
        %v1751 = vunpack.c.l.b16 %v1337
        %v1752 = vunpack.c.h.b16 %v1337
        %v1753 = vunpack.c.l.b16 %v1338
        %v1754 = vunpack.c.h.b16 %v1338
        %v1755 = vunpack.c.l.b16 %v1339
        %v1756 = vunpack.c.h.b16 %v1339
        %v1757 = vunpack.c.l.b16 %v1340
        %v1758 = vunpack.c.h.b16 %v1340
        %v1759 = vunpack.c.l.b16 %v1341
        %v1760 = vunpack.c.h.b16 %v1341
        %v1761 = vunpack.c.l.b16 %v1342
        %v1762 = vunpack.c.h.b16 %v1342
        %v1763 = vunpack.c.l.b16 %v1343
        %v1764 = vunpack.c.h.b16 %v1343
        %v1765 = vunpack.c.l.b16 %v1344
        %v1766 = vunpack.c.h.b16 %v1344
        %v1767 = vunpack.c.l.b16 %v1345
        %v1768 = vunpack.c.h.b16 %v1345
        %v1769 = vunpack.c.l.b16 %v1346
        %v1770 = vunpack.c.h.b16 %v1346
        %v1771 = vunpack.c.l.b16 %v1347
        %v1772 = vunpack.c.h.b16 %v1347
        %v1773 = vunpack.c.l.b16 %v1348
        %v1774 = vunpack.c.h.b16 %v1348
        %v1775 = vunpack.c.l.b16 %v1349
        %v1776 = vunpack.c.h.b16 %v1349
        %v1777 = vunpack.c.l.b16 %v1350
        %v1778 = vunpack.c.h.b16 %v1350
        %v1779 = vunpack.c.l.b16 %v1351
        %v1780 = vunpack.c.h.b16 %v1351
        %v1781 = vunpack.c.l.b16 %v1352
        %v1782 = vunpack.c.h.b16 %v1352
        %v1783 = vunpack.c.l.b16 %v1353
        %v1784 = vunpack.c.h.b16 %v1353
        %v1785 = vunpack.c.l.b16 %v1354
        %v1786 = vunpack.c.h.b16 %v1354
        %v1787 = vunpack.c.l.b16 %v1355
        %v1788 = vunpack.c.h.b16 %v1355
        %v1789 = vunpack.c.l.b16 %v1356
        %v1790 = vunpack.c.h.b16 %v1356
        %v1791 = vunpack.c.l.b16 %v1357
        %v1792 = vunpack.c.h.b16 %v1357
        %v1793 = vunpack.c.l.b16 %v1358
        %v1794 = vunpack.c.h.b16 %v1358
        %v1795 = vunpack.c.l.b16 %v1359
        %v1796 = vunpack.c.h.b16 %v1359
        %v1797 = vunpack.c.l.b16 %v1360
        %v1798 = vunpack.c.h.b16 %v1360
        %v1799 = vunpack.c.l.b16 %v1361
        %v1800 = vunpack.c.h.b16 %v1361
        %v1801 = vpack.c.b16 %v1519, %v1513
        %v1802 = vpack.c.b16 %v1520, %v1514
        %v1803 = vpack.c.b16 %v1521, %v1515
        %v1804 = vpack.c.b16 %v1522, %v1516
        %v1805 = vpack.c.b16 %v1523, %v1517
        %v1806 = vpack.c.b16 %v1524, %v1518
        %v1807 = vpack.c.b16 %v1531, %v1525
        %v1808 = vpack.c.b16 %v1532, %v1526
        %v1809 = vpack.c.b16 %v1533, %v1527
        %v1810 = vpack.c.b16 %v1534, %v1528
        %v1811 = vpack.c.b16 %v1535, %v1529
        %v1812 = vpack.c.b16 %v1536, %v1530
        %v1813 = vpack.c.b16 %v1543, %v1537
        %v1814 = vpack.c.b16 %v1544, %v1538
        %v1815 = vpack.c.b16 %v1545, %v1539
        %v1816 = vpack.c.b16 %v1546, %v1540
        %v1817 = vpack.c.b16 %v1547, %v1541
        %v1818 = vpack.c.b16 %v1548, %v1542
        %v1819 = vpack.c.b16 %v1555, %v1549
        %v1820 = vpack.c.b16 %v1556, %v1550
        %v1821 = vpack.c.b16 %v1557, %v1551
        %v1822 = vpack.c.b16 %v1558, %v1552
        %v1823 = vpack.c.b16 %v1559, %v1553
        %v1824 = vpack.c.b16 %v1560, %v1554
        %v1825 = vpack.c.b16 %v1567, %v1561
        %v1826 = vpack.c.b16 %v1568, %v1562
        %v1827 = vpack.c.b16 %v1569, %v1563
        %v1828 = vpack.c.b16 %v1570, %v1564
        %v1829 = vpack.c.b16 %v1571, %v1565
        %v1830 = vpack.c.b16 %v1572, %v1566
        %v1831 = vpack.c.b16 %v1579, %v1573
        %v1832 = vpack.c.b16 %v1580, %v1574
        %v1833 = vpack.c.b16 %v1581, %v1575
        %v1834 = vpack.c.b16 %v1582, %v1576
        %v1835 = vpack.c.b16 %v1583, %v1577
        %v1836 = vpack.c.b16 %v1584, %v1578
        %v1837 = vpack.c.b16 %v1591, %v1585
        %v1838 = vpack.c.b16 %v1592, %v1586
        %v1839 = vpack.c.b16 %v1593, %v1587
        %v1840 = vpack.c.b16 %v1594, %v1588
        %v1841 = vpack.c.b16 %v1595, %v1589
        %v1842 = vpack.c.b16 %v1596, %v1590
        %v1843 = vpack.c.b16 %v1603, %v1597
        %v1844 = vpack.c.b16 %v1604, %v1598
        %v1845 = vpack.c.b16 %v1605, %v1599
        %v1846 = vpack.c.b16 %v1606, %v1600
        %v1847 = vpack.c.b16 %v1607, %v1601
        %v1848 = vpack.c.b16 %v1608, %v1602
        %v1849 = vpack.c.b16 %v1615, %v1609
        %v1850 = vpack.c.b16 %v1616, %v1610
        %v1851 = vpack.c.b16 %v1617, %v1611
        %v1852 = vpack.c.b16 %v1618, %v1612
        %v1853 = vpack.c.b16 %v1619, %v1613
        %v1854 = vpack.c.b16 %v1620, %v1614
        %v1855 = vpack.c.b16 %v1627, %v1621
        %v1856 = vpack.c.b16 %v1628, %v1622
        %v1857 = vpack.c.b16 %v1629, %v1623
        %v1858 = vpack.c.b16 %v1630, %v1624
        %v1859 = vpack.c.b16 %v1631, %v1625
        %v1860 = vpack.c.b16 %v1632, %v1626
        %v1861 = vpack.c.b16 %v1639, %v1633
        %v1862 = vpack.c.b16 %v1640, %v1634
        %v1863 = vpack.c.b16 %v1641, %v1635
        %v1864 = vpack.c.b16 %v1642, %v1636
        %v1865 = vpack.c.b16 %v1643, %v1637
        %v1866 = vpack.c.b16 %v1644, %v1638
        %v1867 = vpack.c.b16 %v1651, %v1645
        %v1868 = vpack.c.b16 %v1652, %v1646
        %v1869 = vpack.c.b16 %v1653, %v1647
        %v1870 = vpack.c.b16 %v1654, %v1648
        %v1871 = vpack.c.b16 %v1655, %v1649
        %v1872 = vpack.c.b16 %v1656, %v1650
        %v1873 = vpack.c.b16 %v1663, %v1657
        %v1874 = vpack.c.b16 %v1664, %v1658
        %v1875 = vpack.c.b16 %v1665, %v1659
        %v1876 = vpack.c.b16 %v1666, %v1660
        %v1877 = vpack.c.b16 %v1667, %v1661
        %v1878 = vpack.c.b16 %v1668, %v1662
        %v1879 = vpack.c.b16 %v1675, %v1669
        %v1880 = vpack.c.b16 %v1676, %v1670
        %v1881 = vpack.c.b16 %v1677, %v1671
        %v1882 = vpack.c.b16 %v1678, %v1672
        %v1883 = vpack.c.b16 %v1679, %v1673
        %v1884 = vpack.c.b16 %v1680, %v1674
        %v1885 = vpack.c.b16 %v1687, %v1681
        %v1886 = vpack.c.b16 %v1688, %v1682
        %v1887 = vpack.c.b16 %v1689, %v1683
        %v1888 = vpack.c.b16 %v1690, %v1684
        %v1889 = vpack.c.b16 %v1691, %v1685
        %v1890 = vpack.c.b16 %v1692, %v1686
        %v1891 = vpack.c.b16 %v1699, %v1693
        %v1892 = vpack.c.b16 %v1700, %v1694
        %v1893 = vpack.c.b16 %v1701, %v1695
        %v1894 = vpack.c.b16 %v1702, %v1696
        %v1895 = vpack.c.b16 %v1703, %v1697
        %v1896 = vpack.c.b16 %v1704, %v1698
        %v1897 = vpack.c.b16 %v1711, %v1705
        %v1898 = vpack.c.b16 %v1712, %v1706
        %v1899 = vpack.c.b16 %v1713, %v1707
        %v1900 = vpack.c.b16 %v1714, %v1708
        %v1901 = vpack.c.b16 %v1715, %v1709
        %v1902 = vpack.c.b16 %v1716, %v1710
        %v1903 = vpack.c.b16 %v1723, %v1717
        %v1904 = vpack.c.b16 %v1724, %v1718
        %v1905 = vpack.c.b16 %v1725, %v1719
        %v1906 = vpack.c.b16 %v1726, %v1720
        %v1907 = vpack.c.b16 %v1727, %v1721
        %v1908 = vpack.c.b16 %v1728, %v1722
        %v1909 = vpack.c.b16 %v1735, %v1729
        %v1910 = vpack.c.b16 %v1736, %v1730
        %v1911 = vpack.c.b16 %v1737, %v1731
        %v1912 = vpack.c.b16 %v1738, %v1732
        %v1913 = vpack.c.b16 %v1739, %v1733
        %v1914 = vpack.c.b16 %v1740, %v1734
        %v1915 = vpack.c.b16 %v1747, %v1741
        %v1916 = vpack.c.b16 %v1748, %v1742
        %v1917 = vpack.c.b16 %v1749, %v1743
        %v1918 = vpack.c.b16 %v1750, %v1744
        %v1919 = vpack.c.b16 %v1751, %v1745
        %v1920 = vpack.c.b16 %v1752, %v1746
        %v1921 = vpack.c.b16 %v1759, %v1753
        %v1922 = vpack.c.b16 %v1760, %v1754
        %v1923 = vpack.c.b16 %v1761, %v1755
        %v1924 = vpack.c.b16 %v1762, %v1756
        %v1925 = vpack.c.b16 %v1763, %v1757
        %v1926 = vpack.c.b16 %v1764, %v1758
        %v1927 = vpack.c.b16 %v1771, %v1765
        %v1928 = vpack.c.b16 %v1772, %v1766
        %v1929 = vpack.c.b16 %v1773, %v1767
        %v1930 = vpack.c.b16 %v1774, %v1768
        %v1931 = vpack.c.b16 %v1775, %v1769
        %v1932 = vpack.c.b16 %v1776, %v1770
        %v1933 = vpack.c.b16 %v1783, %v1777
        %v1934 = vpack.c.b16 %v1784, %v1778
        %v1935 = vpack.c.b16 %v1785, %v1779
        %v1936 = vpack.c.b16 %v1786, %v1780
        %v1937 = vpack.c.b16 %v1787, %v1781
        %v1938 = vpack.c.b16 %v1788, %v1782
        %v1939 = vpack.c.b16 %v1795, %v1789
        %v1940 = vpack.c.b16 %v1796, %v1790
        %v1941 = vpack.c.b16 %v1797, %v1791
        %v1942 = vpack.c.b16 %v1798, %v1792
        %v1943 = vpack.c.b16 %v1799, %v1793
        %v1944 = vpack.c.b16 %v1800, %v1794
        %2089 = vmatprep.subr.bf16.mxu0 0
        %2090 = vmatpush1.bf16.msra.mxu0 %v1177
        %2091 = vmatprep.subr.bf16.mxu0 0
        %2092 = vmatpush1.bf16.msra.mxu0 %v1176
        %2093 = vmatprep.subr.bf16.mxu0 0
        %2094 = vmatpush1.bf16.msra.mxu0 %v1175
        %2095 = vmatprep.subr.bf16.mxu0 0
        %2096 = vmatpush1.bf16.msra.mxu0 %v1174
        %2097 = vmatprep.subr.bf16.mxu0 0
        %2098 = vmatpush1.bf16.msra.mxu0 %v1173
        %2099 = vmatprep.subr.bf16.mxu0 0
        %2100 = vmatpush1.bf16.msra.mxu0 %v1172
        %2101 = vmatprep.subr.bf16.mxu0 0
        %2102 = vmatpush1.bf16.msra.mxu0 %v1171
        %2103 = vmatprep.subr.bf16.mxu0 0
        %2104 = vmatpush1.bf16.msra.mxu0 %v1170
        %2105 = vmatprep.subr.bf16.mxu0 0
        %2106 = vmatpush2.bf16.msra.mxu0 %v1185
        %2107 = vmatprep.subr.bf16.mxu0 0
        %2108 = vmatpush2.bf16.msra.mxu0 %v1184
        %2109 = vmatprep.subr.bf16.mxu0 0
        %2110 = vmatpush2.bf16.msra.mxu0 %v1183
        %2111 = vmatprep.subr.bf16.mxu0 0
        %2112 = vmatpush2.bf16.msra.mxu0 %v1182
        %2113 = vmatprep.subr.bf16.mxu0 0
        %2114 = vmatpush2.bf16.msra.mxu0 %v1181
        %2115 = vmatprep.subr.bf16.mxu0 0
        %2116 = vmatpush2.bf16.msra.mxu0 %v1180
        %2117 = vmatprep.subr.bf16.mxu0 0
        %2118 = vmatpush2.bf16.msra.mxu0 %v1179
        %2119 = vmatprep.subr.bf16.mxu0 0
        %2120 = vmatpush2.bf16.msra.mxu0 %v1178
        %2121 = vmatprep.mubr.bf16.mxu0 %v1802
        %2122 = vmatmul.mubr.bf16.gmra.mxu0 %v1801
        %v2123 = vpop.f32.mrf.mxu0
        %v2124 = vadd.f32 %v1367, %v2123
        %v2125 = vpop.f32.mrf.mxu0
        %v2126 = vpop.f32.mrf.mxu0
        %v2127 = vadd.f32 %v1367, %v2126
        %v2128 = vpop.f32.mrf.mxu0
        %2129 = vmatprep.mubr.bf16.mxu0 %v1808
        %2130 = vmatmul.mubr.bf16.gmra.mxu0 %v1807
        %v2131 = vpop.f32.mrf.mxu0
        %v2132 = vadd.f32 %v1367, %v2131
        %v2133 = vpop.f32.mrf.mxu0
        %v2134 = vpop.f32.mrf.mxu0
        %v2135 = vadd.f32 %v1367, %v2134
        %v2136 = vpop.f32.mrf.mxu0
        %2137 = vmatprep.mubr.bf16.mxu0 %v1814
        %2138 = vmatmul.mubr.bf16.gmra.mxu0 %v1813
        %v2139 = vpop.f32.mrf.mxu0
        %v2140 = vadd.f32 %v1367, %v2139
        %v2141 = vpop.f32.mrf.mxu0
        %v2142 = vpop.f32.mrf.mxu0
        %v2143 = vadd.f32 %v1367, %v2142
        %v2144 = vpop.f32.mrf.mxu0
        %2145 = vmatprep.mubr.bf16.mxu0 %v1820
        %2146 = vmatmul.mubr.bf16.gmra.mxu0 %v1819
        %v2147 = vpop.f32.mrf.mxu0
        %v2148 = vadd.f32 %v1367, %v2147
        %v2149 = vpop.f32.mrf.mxu0
        %v2150 = vpop.f32.mrf.mxu0
        %v2151 = vadd.f32 %v1367, %v2150
        %v2152 = vpop.f32.mrf.mxu0
        %2153 = vmatprep.mubr.bf16.mxu0 %v1826
        %2154 = vmatmul.mubr.bf16.gmra.mxu0 %v1825
        %v2155 = vpop.f32.mrf.mxu0
        %v2156 = vadd.f32 %v1367, %v2155
        %v2157 = vpop.f32.mrf.mxu0
        %v2158 = vpop.f32.mrf.mxu0
        %v2159 = vadd.f32 %v1367, %v2158
        %v2160 = vpop.f32.mrf.mxu0
        %2161 = vmatprep.mubr.bf16.mxu0 %v1832
        %2162 = vmatmul.mubr.bf16.gmra.mxu0 %v1831
        %v2163 = vpop.f32.mrf.mxu0
        %v2164 = vadd.f32 %v1367, %v2163
        %v2165 = vpop.f32.mrf.mxu0
        %v2166 = vpop.f32.mrf.mxu0
        %v2167 = vadd.f32 %v1367, %v2166
        %v2168 = vpop.f32.mrf.mxu0
        %2169 = vmatprep.mubr.bf16.mxu0 %v1838
        %2170 = vmatmul.mubr.bf16.gmra.mxu0 %v1837
        %v2171 = vpop.f32.mrf.mxu0
        %v2172 = vadd.f32 %v1367, %v2171
        %v2173 = vpop.f32.mrf.mxu0
        %v2174 = vpop.f32.mrf.mxu0
        %v2175 = vadd.f32 %v1367, %v2174
        %v2176 = vpop.f32.mrf.mxu0
        %2177 = vmatprep.mubr.bf16.mxu0 %v1844
        %2178 = vmatmul.mubr.bf16.gmra.mxu0 %v1843
        %v2179 = vpop.f32.mrf.mxu0
        %v2180 = vadd.f32 %v1367, %v2179
        %v2181 = vpop.f32.mrf.mxu0
        %v2182 = vpop.f32.mrf.mxu0
        %v2183 = vadd.f32 %v1367, %v2182
        %v2184 = vpop.f32.mrf.mxu0
        %2185 = vmatprep.mubr.bf16.mxu0 %v1850
        %2186 = vmatmul.mubr.bf16.gmra.mxu0 %v1849
        %v2187 = vpop.f32.mrf.mxu0
        %v2188 = vadd.f32 %v1367, %v2187
        %v2189 = vpop.f32.mrf.mxu0
        %v2190 = vpop.f32.mrf.mxu0
        %v2191 = vadd.f32 %v1367, %v2190
        %v2192 = vpop.f32.mrf.mxu0
        %2193 = vmatprep.mubr.bf16.mxu0 %v1856
        %2194 = vmatmul.mubr.bf16.gmra.mxu0 %v1855
        %v2195 = vpop.f32.mrf.mxu0
        %v2196 = vadd.f32 %v1367, %v2195
        %v2197 = vpop.f32.mrf.mxu0
        %v2198 = vpop.f32.mrf.mxu0
        %v2199 = vadd.f32 %v1367, %v2198
        %v2200 = vpop.f32.mrf.mxu0
        %2201 = vmatprep.mubr.bf16.mxu0 %v1862
        %2202 = vmatmul.mubr.bf16.gmra.mxu0 %v1861
        %v2203 = vpop.f32.mrf.mxu0
        %v2204 = vadd.f32 %v1367, %v2203
        %v2205 = vpop.f32.mrf.mxu0
        %v2206 = vpop.f32.mrf.mxu0
        %v2207 = vadd.f32 %v1367, %v2206
        %v2208 = vpop.f32.mrf.mxu0
        %2209 = vmatprep.mubr.bf16.mxu0 %v1868
        %2210 = vmatmul.mubr.bf16.gmra.mxu0 %v1867
        %v2211 = vpop.f32.mrf.mxu0
        %v2212 = vadd.f32 %v1367, %v2211
        %v2213 = vpop.f32.mrf.mxu0
        %v2214 = vpop.f32.mrf.mxu0
        %v2215 = vadd.f32 %v1367, %v2214
        %v2216 = vpop.f32.mrf.mxu0
        %2217 = vmatprep.mubr.bf16.mxu0 %v1874
        %2218 = vmatmul.mubr.bf16.gmra.mxu0 %v1873
        %v2219 = vpop.f32.mrf.mxu0
        %v2220 = vadd.f32 %v1367, %v2219
        %v2221 = vpop.f32.mrf.mxu0
        %v2222 = vpop.f32.mrf.mxu0
        %v2223 = vadd.f32 %v1367, %v2222
        %v2224 = vpop.f32.mrf.mxu0
        %2225 = vmatprep.mubr.bf16.mxu0 %v1880
        %2226 = vmatmul.mubr.bf16.gmra.mxu0 %v1879
        %v2227 = vpop.f32.mrf.mxu0
        %v2228 = vadd.f32 %v1367, %v2227
        %v2229 = vpop.f32.mrf.mxu0
        %v2230 = vpop.f32.mrf.mxu0
        %v2231 = vadd.f32 %v1367, %v2230
        %v2232 = vpop.f32.mrf.mxu0
        %2233 = vmatprep.mubr.bf16.mxu0 %v1886
        %2234 = vmatmul.mubr.bf16.gmra.mxu0 %v1885
        %v2235 = vpop.f32.mrf.mxu0
        %v2236 = vadd.f32 %v1367, %v2235
        %v2237 = vpop.f32.mrf.mxu0
        %v2238 = vpop.f32.mrf.mxu0
        %v2239 = vadd.f32 %v1367, %v2238
        %v2240 = vpop.f32.mrf.mxu0
        %2241 = vmatprep.mubr.bf16.mxu0 %v1892
        %2242 = vmatmul.mubr.bf16.gmra.mxu0 %v1891
        %v2243 = vpop.f32.mrf.mxu0
        %v2244 = vadd.f32 %v1367, %v2243
        %v2245 = vpop.f32.mrf.mxu0
        %v2246 = vpop.f32.mrf.mxu0
        %v2247 = vadd.f32 %v1367, %v2246
        %v2248 = vpop.f32.mrf.mxu0
        %2249 = vmatprep.mubr.bf16.mxu0 %v1898
        %2250 = vmatmul.mubr.bf16.gmra.mxu0 %v1897
        %v2251 = vpop.f32.mrf.mxu0
        %v2252 = vadd.f32 %v1367, %v2251
        %v2253 = vpop.f32.mrf.mxu0
        %v2254 = vpop.f32.mrf.mxu0
        %v2255 = vadd.f32 %v1367, %v2254
        %v2256 = vpop.f32.mrf.mxu0
        %2257 = vmatprep.mubr.bf16.mxu0 %v1904
        %2258 = vmatmul.mubr.bf16.gmra.mxu0 %v1903
        %v2259 = vpop.f32.mrf.mxu0
        %v2260 = vadd.f32 %v1367, %v2259
        %v2261 = vpop.f32.mrf.mxu0
        %v2262 = vpop.f32.mrf.mxu0
        %v2263 = vadd.f32 %v1367, %v2262
        %v2264 = vpop.f32.mrf.mxu0
        %2265 = vmatprep.mubr.bf16.mxu0 %v1910
        %2266 = vmatmul.mubr.bf16.gmra.mxu0 %v1909
        %v2267 = vpop.f32.mrf.mxu0
        %v2268 = vadd.f32 %v1367, %v2267
        %v2269 = vpop.f32.mrf.mxu0
        %v2270 = vpop.f32.mrf.mxu0
        %v2271 = vadd.f32 %v1367, %v2270
        %v2272 = vpop.f32.mrf.mxu0
        %2273 = vmatprep.mubr.bf16.mxu0 %v1916
        %2274 = vmatmul.mubr.bf16.gmra.mxu0 %v1915
        %v2275 = vpop.f32.mrf.mxu0
        %v2276 = vadd.f32 %v1367, %v2275
        %v2277 = vpop.f32.mrf.mxu0
        %v2278 = vpop.f32.mrf.mxu0
        %v2279 = vadd.f32 %v1367, %v2278
        %v2280 = vpop.f32.mrf.mxu0
        %2281 = vmatprep.mubr.bf16.mxu0 %v1922
        %2282 = vmatmul.mubr.bf16.gmra.mxu0 %v1921
        %v2283 = vpop.f32.mrf.mxu0
        %v2284 = vadd.f32 %v1367, %v2283
        %v2285 = vpop.f32.mrf.mxu0
        %v2286 = vpop.f32.mrf.mxu0
        %v2287 = vadd.f32 %v1367, %v2286
        %v2288 = vpop.f32.mrf.mxu0
        %2289 = vmatprep.mubr.bf16.mxu0 %v1928
        %2290 = vmatmul.mubr.bf16.gmra.mxu0 %v1927
        %v2291 = vpop.f32.mrf.mxu0
        %v2292 = vadd.f32 %v1367, %v2291
        %v2293 = vpop.f32.mrf.mxu0
        %v2294 = vpop.f32.mrf.mxu0
        %v2295 = vadd.f32 %v1367, %v2294
        %v2296 = vpop.f32.mrf.mxu0
        %2297 = vmatprep.mubr.bf16.mxu0 %v1934
        %2298 = vmatmul.mubr.bf16.gmra.mxu0 %v1933
        %v2299 = vpop.f32.mrf.mxu0
        %v2300 = vadd.f32 %v1367, %v2299
        %v2301 = vpop.f32.mrf.mxu0
        %v2302 = vpop.f32.mrf.mxu0
        %v2303 = vadd.f32 %v1367, %v2302
        %v2304 = vpop.f32.mrf.mxu0
        %2305 = vmatprep.mubr.bf16.mxu0 %v1940
        %2306 = vmatmul.mubr.bf16.gmra.mxu0 %v1939
        %v2307 = vpop.f32.mrf.mxu0
        %v2308 = vadd.f32 %v1367, %v2307
        %v2309 = vpop.f32.mrf.mxu0
        %v2310 = vpop.f32.mrf.mxu0
        %v2311 = vadd.f32 %v1367, %v2310
        %v2312 = vpop.f32.mrf.mxu0
        %2313 = vdwg.mxu0
        %2314 = vmatprep.subr.bf16.mxu0 0
        %2315 = vmatpush1.bf16.msra.mxu0 %v1193
        %2316 = vmatprep.subr.bf16.mxu0 0
        %2317 = vmatpush1.bf16.msra.mxu0 %v1192
        %2318 = vmatprep.subr.bf16.mxu0 0
        %2319 = vmatpush1.bf16.msra.mxu0 %v1191
        %2320 = vmatprep.subr.bf16.mxu0 0
        %2321 = vmatpush1.bf16.msra.mxu0 %v1190
        %2322 = vmatprep.subr.bf16.mxu0 0
        %2323 = vmatpush1.bf16.msra.mxu0 %v1189
        %2324 = vmatprep.subr.bf16.mxu0 0
        %2325 = vmatpush1.bf16.msra.mxu0 %v1188
        %2326 = vmatprep.subr.bf16.mxu0 0
        %2327 = vmatpush1.bf16.msra.mxu0 %v1187
        %2328 = vmatprep.subr.bf16.mxu0 0
        %2329 = vmatpush1.bf16.msra.mxu0 %v1186
        %2330 = vmatprep.subr.bf16.mxu0 0
        %2331 = vmatpush2.bf16.msra.mxu0 %v1201
        %2332 = vmatprep.subr.bf16.mxu0 0
        %2333 = vmatpush2.bf16.msra.mxu0 %v1200
        %2334 = vmatprep.subr.bf16.mxu0 0
        %2335 = vmatpush2.bf16.msra.mxu0 %v1199
        %2336 = vmatprep.subr.bf16.mxu0 0
        %2337 = vmatpush2.bf16.msra.mxu0 %v1198
        %2338 = vmatprep.subr.bf16.mxu0 0
        %2339 = vmatpush2.bf16.msra.mxu0 %v1197
        %2340 = vmatprep.subr.bf16.mxu0 0
        %2341 = vmatpush2.bf16.msra.mxu0 %v1196
        %2342 = vmatprep.subr.bf16.mxu0 0
        %2343 = vmatpush2.bf16.msra.mxu0 %v1195
        %2344 = vmatprep.subr.bf16.mxu0 0
        %2345 = vmatpush2.bf16.msra.mxu0 %v1194
        %2346 = vmatprep.mubr.bf16.mxu0 %v1804
        %2347 = vmatmul.mubr.bf16.gmra.mxu0 %v1803
        %v2348 = vpop.f32.mrf.mxu0
        %v2349 = vadd.f32 %v2124, %v2348
        %v2350 = vpop.f32.mrf.mxu0
        %v2351 = vpop.f32.mrf.mxu0
        %v2352 = vadd.f32 %v2127, %v2351
        %v2353 = vpop.f32.mrf.mxu0
        %2354 = vmatprep.mubr.bf16.mxu0 %v1810
        %2355 = vmatmul.mubr.bf16.gmra.mxu0 %v1809
        %v2356 = vpop.f32.mrf.mxu0
        %v2357 = vadd.f32 %v2132, %v2356
        %v2358 = vpop.f32.mrf.mxu0
        %v2359 = vpop.f32.mrf.mxu0
        %v2360 = vadd.f32 %v2135, %v2359
        %v2361 = vpop.f32.mrf.mxu0
        %2362 = vmatprep.mubr.bf16.mxu0 %v1816
        %2363 = vmatmul.mubr.bf16.gmra.mxu0 %v1815
        %v2364 = vpop.f32.mrf.mxu0
        %v2365 = vadd.f32 %v2140, %v2364
        %v2366 = vpop.f32.mrf.mxu0
        %v2367 = vpop.f32.mrf.mxu0
        %v2368 = vadd.f32 %v2143, %v2367
        %v2369 = vpop.f32.mrf.mxu0
        %2370 = vmatprep.mubr.bf16.mxu0 %v1822
        %2371 = vmatmul.mubr.bf16.gmra.mxu0 %v1821
        %v2372 = vpop.f32.mrf.mxu0
        %v2373 = vadd.f32 %v2148, %v2372
        %v2374 = vpop.f32.mrf.mxu0
        %v2375 = vpop.f32.mrf.mxu0
        %v2376 = vadd.f32 %v2151, %v2375
        %v2377 = vpop.f32.mrf.mxu0
        %2378 = vmatprep.mubr.bf16.mxu0 %v1828
        %2379 = vmatmul.mubr.bf16.gmra.mxu0 %v1827
        %v2380 = vpop.f32.mrf.mxu0
        %v2381 = vadd.f32 %v2156, %v2380
        %v2382 = vpop.f32.mrf.mxu0
        %v2383 = vpop.f32.mrf.mxu0
        %v2384 = vadd.f32 %v2159, %v2383
        %v2385 = vpop.f32.mrf.mxu0
        %2386 = vmatprep.mubr.bf16.mxu0 %v1834
        %2387 = vmatmul.mubr.bf16.gmra.mxu0 %v1833
        %v2388 = vpop.f32.mrf.mxu0
        %v2389 = vadd.f32 %v2164, %v2388
        %v2390 = vpop.f32.mrf.mxu0
        %v2391 = vpop.f32.mrf.mxu0
        %v2392 = vadd.f32 %v2167, %v2391
        %v2393 = vpop.f32.mrf.mxu0
        %2394 = vmatprep.mubr.bf16.mxu0 %v1840
        %2395 = vmatmul.mubr.bf16.gmra.mxu0 %v1839
        %v2396 = vpop.f32.mrf.mxu0
        %v2397 = vadd.f32 %v2172, %v2396
        %v2398 = vpop.f32.mrf.mxu0
        %v2399 = vpop.f32.mrf.mxu0
        %v2400 = vadd.f32 %v2175, %v2399
        %v2401 = vpop.f32.mrf.mxu0
        %2402 = vmatprep.mubr.bf16.mxu0 %v1846
        %2403 = vmatmul.mubr.bf16.gmra.mxu0 %v1845
        %v2404 = vpop.f32.mrf.mxu0
        %v2405 = vadd.f32 %v2180, %v2404
        %v2406 = vpop.f32.mrf.mxu0
        %v2407 = vpop.f32.mrf.mxu0
        %v2408 = vadd.f32 %v2183, %v2407
        %v2409 = vpop.f32.mrf.mxu0
        %2410 = vmatprep.mubr.bf16.mxu0 %v1852
        %2411 = vmatmul.mubr.bf16.gmra.mxu0 %v1851
        %v2412 = vpop.f32.mrf.mxu0
        %v2413 = vadd.f32 %v2188, %v2412
        %v2414 = vpop.f32.mrf.mxu0
        %v2415 = vpop.f32.mrf.mxu0
        %v2416 = vadd.f32 %v2191, %v2415
        %v2417 = vpop.f32.mrf.mxu0
        %2418 = vmatprep.mubr.bf16.mxu0 %v1858
        %2419 = vmatmul.mubr.bf16.gmra.mxu0 %v1857
        %v2420 = vpop.f32.mrf.mxu0
        %v2421 = vadd.f32 %v2196, %v2420
        %v2422 = vpop.f32.mrf.mxu0
        %v2423 = vpop.f32.mrf.mxu0
        %v2424 = vadd.f32 %v2199, %v2423
        %v2425 = vpop.f32.mrf.mxu0
        %2426 = vmatprep.mubr.bf16.mxu0 %v1864
        %2427 = vmatmul.mubr.bf16.gmra.mxu0 %v1863
        %v2428 = vpop.f32.mrf.mxu0
        %v2429 = vadd.f32 %v2204, %v2428
        %v2430 = vpop.f32.mrf.mxu0
        %v2431 = vpop.f32.mrf.mxu0
        %v2432 = vadd.f32 %v2207, %v2431
        %v2433 = vpop.f32.mrf.mxu0
        %2434 = vmatprep.mubr.bf16.mxu0 %v1870
        %2435 = vmatmul.mubr.bf16.gmra.mxu0 %v1869
        %v2436 = vpop.f32.mrf.mxu0
        %v2437 = vadd.f32 %v2212, %v2436
        %v2438 = vpop.f32.mrf.mxu0
        %v2439 = vpop.f32.mrf.mxu0
        %v2440 = vadd.f32 %v2215, %v2439
        %v2441 = vpop.f32.mrf.mxu0
        %2442 = vmatprep.mubr.bf16.mxu0 %v1876
        %2443 = vmatmul.mubr.bf16.gmra.mxu0 %v1875
        %v2444 = vpop.f32.mrf.mxu0
        %v2445 = vadd.f32 %v2220, %v2444
        %v2446 = vpop.f32.mrf.mxu0
        %v2447 = vpop.f32.mrf.mxu0
        %v2448 = vadd.f32 %v2223, %v2447
        %v2449 = vpop.f32.mrf.mxu0
        %2450 = vmatprep.mubr.bf16.mxu0 %v1882
        %2451 = vmatmul.mubr.bf16.gmra.mxu0 %v1881
        %v2452 = vpop.f32.mrf.mxu0
        %v2453 = vadd.f32 %v2228, %v2452
        %v2454 = vpop.f32.mrf.mxu0
        %v2455 = vpop.f32.mrf.mxu0
        %v2456 = vadd.f32 %v2231, %v2455
        %v2457 = vpop.f32.mrf.mxu0
        %2458 = vmatprep.mubr.bf16.mxu0 %v1888
        %2459 = vmatmul.mubr.bf16.gmra.mxu0 %v1887
        %v2460 = vpop.f32.mrf.mxu0
        %v2461 = vadd.f32 %v2236, %v2460
        %v2462 = vpop.f32.mrf.mxu0
        %v2463 = vpop.f32.mrf.mxu0
        %v2464 = vadd.f32 %v2239, %v2463
        %v2465 = vpop.f32.mrf.mxu0
        %2466 = vmatprep.mubr.bf16.mxu0 %v1894
        %2467 = vmatmul.mubr.bf16.gmra.mxu0 %v1893
        %v2468 = vpop.f32.mrf.mxu0
        %v2469 = vadd.f32 %v2244, %v2468
        %v2470 = vpop.f32.mrf.mxu0
        %v2471 = vpop.f32.mrf.mxu0
        %v2472 = vadd.f32 %v2247, %v2471
        %v2473 = vpop.f32.mrf.mxu0
        %2474 = vmatprep.mubr.bf16.mxu0 %v1900
        %2475 = vmatmul.mubr.bf16.gmra.mxu0 %v1899
        %v2476 = vpop.f32.mrf.mxu0
        %v2477 = vadd.f32 %v2252, %v2476
        %v2478 = vpop.f32.mrf.mxu0
        %v2479 = vpop.f32.mrf.mxu0
        %v2480 = vadd.f32 %v2255, %v2479
        %v2481 = vpop.f32.mrf.mxu0
        %2482 = vmatprep.mubr.bf16.mxu0 %v1906
        %2483 = vmatmul.mubr.bf16.gmra.mxu0 %v1905
        %v2484 = vpop.f32.mrf.mxu0
        %v2485 = vadd.f32 %v2260, %v2484
        %v2486 = vpop.f32.mrf.mxu0
        %v2487 = vpop.f32.mrf.mxu0
        %v2488 = vadd.f32 %v2263, %v2487
        %v2489 = vpop.f32.mrf.mxu0
        %2490 = vmatprep.mubr.bf16.mxu0 %v1912
        %2491 = vmatmul.mubr.bf16.gmra.mxu0 %v1911
        %v2492 = vpop.f32.mrf.mxu0
        %v2493 = vadd.f32 %v2268, %v2492
        %v2494 = vpop.f32.mrf.mxu0
        %v2495 = vpop.f32.mrf.mxu0
        %v2496 = vadd.f32 %v2271, %v2495
        %v2497 = vpop.f32.mrf.mxu0
        %2498 = vmatprep.mubr.bf16.mxu0 %v1918
        %2499 = vmatmul.mubr.bf16.gmra.mxu0 %v1917
        %v2500 = vpop.f32.mrf.mxu0
        %v2501 = vadd.f32 %v2276, %v2500
        %v2502 = vpop.f32.mrf.mxu0
        %v2503 = vpop.f32.mrf.mxu0
        %v2504 = vadd.f32 %v2279, %v2503
        %v2505 = vpop.f32.mrf.mxu0
        %2506 = vmatprep.mubr.bf16.mxu0 %v1924
        %2507 = vmatmul.mubr.bf16.gmra.mxu0 %v1923
        %v2508 = vpop.f32.mrf.mxu0
        %v2509 = vadd.f32 %v2284, %v2508
        %v2510 = vpop.f32.mrf.mxu0
        %v2511 = vpop.f32.mrf.mxu0
        %v2512 = vadd.f32 %v2287, %v2511
        %v2513 = vpop.f32.mrf.mxu0
        %2514 = vmatprep.mubr.bf16.mxu0 %v1930
        %2515 = vmatmul.mubr.bf16.gmra.mxu0 %v1929
        %v2516 = vpop.f32.mrf.mxu0
        %v2517 = vadd.f32 %v2292, %v2516
        %v2518 = vpop.f32.mrf.mxu0
        %v2519 = vpop.f32.mrf.mxu0
        %v2520 = vadd.f32 %v2295, %v2519
        %v2521 = vpop.f32.mrf.mxu0
        %2522 = vmatprep.mubr.bf16.mxu0 %v1936
        %2523 = vmatmul.mubr.bf16.gmra.mxu0 %v1935
        %v2524 = vpop.f32.mrf.mxu0
        %v2525 = vadd.f32 %v2300, %v2524
        %v2526 = vpop.f32.mrf.mxu0
        %v2527 = vpop.f32.mrf.mxu0
        %v2528 = vadd.f32 %v2303, %v2527
        %v2529 = vpop.f32.mrf.mxu0
        %2530 = vmatprep.mubr.bf16.mxu0 %v1942
        %2531 = vmatmul.mubr.bf16.gmra.mxu0 %v1941
        %v2532 = vpop.f32.mrf.mxu0
        %v2533 = vadd.f32 %v2308, %v2532
        %v2534 = vpop.f32.mrf.mxu0
        %v2535 = vpop.f32.mrf.mxu0
        %v2536 = vadd.f32 %v2311, %v2535
        %v2537 = vpop.f32.mrf.mxu0
        %2538 = vdwg.mxu0
        %2539 = vmatprep.subr.bf16.mxu0 0
        %2540 = vmatpush1.bf16.msra.mxu0 %v1209
        %2541 = vmatprep.subr.bf16.mxu0 0
        %2542 = vmatpush1.bf16.msra.mxu0 %v1208
        %2543 = vmatprep.subr.bf16.mxu0 0
        %2544 = vmatpush1.bf16.msra.mxu0 %v1207
        %2545 = vmatprep.subr.bf16.mxu0 0
        %2546 = vmatpush1.bf16.msra.mxu0 %v1206
        %2547 = vmatprep.subr.bf16.mxu0 0
        %2548 = vmatpush1.bf16.msra.mxu0 %v1205
        %2549 = vmatprep.subr.bf16.mxu0 0
        %2550 = vmatpush1.bf16.msra.mxu0 %v1204
        %2551 = vmatprep.subr.bf16.mxu0 0
        %2552 = vmatpush1.bf16.msra.mxu0 %v1203
        %2553 = vmatprep.subr.bf16.mxu0 0
        %2554 = vmatpush1.bf16.msra.mxu0 %v1202
        %2555 = vmatprep.subr.bf16.mxu0 0
        %2556 = vmatpush2.bf16.msra.mxu0 %v1217
        %2557 = vmatprep.subr.bf16.mxu0 0
        %2558 = vmatpush2.bf16.msra.mxu0 %v1216
        %2559 = vmatprep.subr.bf16.mxu0 0
        %2560 = vmatpush2.bf16.msra.mxu0 %v1215
        %2561 = vmatprep.subr.bf16.mxu0 0
        %2562 = vmatpush2.bf16.msra.mxu0 %v1214
        %2563 = vmatprep.subr.bf16.mxu0 0
        %2564 = vmatpush2.bf16.msra.mxu0 %v1213
        %2565 = vmatprep.subr.bf16.mxu0 0
        %2566 = vmatpush2.bf16.msra.mxu0 %v1212
        %2567 = vmatprep.subr.bf16.mxu0 0
        %2568 = vmatpush2.bf16.msra.mxu0 %v1211
        %2569 = vmatprep.subr.bf16.mxu0 0
        %2570 = vmatpush2.bf16.msra.mxu0 %v1210
        %2571 = vmatprep.mubr.bf16.mxu0 %v1806
        %2572 = vmatmul.mubr.bf16.gmra.mxu0 %v1805
        %v2573 = vpop.f32.mrf.mxu0
        %v2574 = vadd.f32 %v2349, %v2573
        %v2575 = vpop.f32.mrf.mxu0
        %v2576 = vpop.f32.mrf.mxu0
        %v2577 = vadd.f32 %v2352, %v2576
        %v2578 = vpop.f32.mrf.mxu0
        %2579 = vmatprep.mubr.bf16.mxu0 %v1812
        %2580 = vmatmul.mubr.bf16.gmra.mxu0 %v1811
        %v2581 = vpop.f32.mrf.mxu0
        %v2582 = vadd.f32 %v2357, %v2581
        %v2583 = vpop.f32.mrf.mxu0
        %v2584 = vpop.f32.mrf.mxu0
        %v2585 = vadd.f32 %v2360, %v2584
        %v2586 = vpop.f32.mrf.mxu0
        %2587 = vmatprep.mubr.bf16.mxu0 %v1818
        %2588 = vmatmul.mubr.bf16.gmra.mxu0 %v1817
        %v2589 = vpop.f32.mrf.mxu0
        %v2590 = vadd.f32 %v2365, %v2589
        %v2591 = vpop.f32.mrf.mxu0
        %v2592 = vpop.f32.mrf.mxu0
        %v2593 = vadd.f32 %v2368, %v2592
        %v2594 = vpop.f32.mrf.mxu0
        %2595 = vmatprep.mubr.bf16.mxu0 %v1824
        %2596 = vmatmul.mubr.bf16.gmra.mxu0 %v1823
        %v2597 = vpop.f32.mrf.mxu0
        %v2598 = vadd.f32 %v2373, %v2597
        %v2599 = vpop.f32.mrf.mxu0
        %v2600 = vpop.f32.mrf.mxu0
        %v2601 = vadd.f32 %v2376, %v2600
        %v2602 = vpop.f32.mrf.mxu0
        %2603 = vmatprep.mubr.bf16.mxu0 %v1830
        %2604 = vmatmul.mubr.bf16.gmra.mxu0 %v1829
        %v2605 = vpop.f32.mrf.mxu0
        %v2606 = vadd.f32 %v2381, %v2605
        %v2607 = vpop.f32.mrf.mxu0
        %v2608 = vpop.f32.mrf.mxu0
        %v2609 = vadd.f32 %v2384, %v2608
        %v2610 = vpop.f32.mrf.mxu0
        %2611 = vmatprep.mubr.bf16.mxu0 %v1836
        %2612 = vmatmul.mubr.bf16.gmra.mxu0 %v1835
        %v2613 = vpop.f32.mrf.mxu0
        %v2614 = vadd.f32 %v2389, %v2613
        %v2615 = vpop.f32.mrf.mxu0
        %v2616 = vpop.f32.mrf.mxu0
        %v2617 = vadd.f32 %v2392, %v2616
        %v2618 = vpop.f32.mrf.mxu0
        %2619 = vmatprep.mubr.bf16.mxu0 %v1842
        %2620 = vmatmul.mubr.bf16.gmra.mxu0 %v1841
        %v2621 = vpop.f32.mrf.mxu0
        %v2622 = vadd.f32 %v2397, %v2621
        %v2623 = vpop.f32.mrf.mxu0
        %v2624 = vpop.f32.mrf.mxu0
        %v2625 = vadd.f32 %v2400, %v2624
        %v2626 = vpop.f32.mrf.mxu0
        %2627 = vmatprep.mubr.bf16.mxu0 %v1848
        %2628 = vmatmul.mubr.bf16.gmra.mxu0 %v1847
        %v2629 = vpop.f32.mrf.mxu0
        %v2630 = vadd.f32 %v2405, %v2629
        %v2631 = vpop.f32.mrf.mxu0
        %v2632 = vpop.f32.mrf.mxu0
        %v2633 = vadd.f32 %v2408, %v2632
        %v2634 = vpop.f32.mrf.mxu0
        %2635 = vmatprep.mubr.bf16.mxu0 %v1854
        %2636 = vmatmul.mubr.bf16.gmra.mxu0 %v1853
        %v2637 = vpop.f32.mrf.mxu0
        %v2638 = vadd.f32 %v2413, %v2637
        %v2639 = vpop.f32.mrf.mxu0
        %v2640 = vpop.f32.mrf.mxu0
        %v2641 = vadd.f32 %v2416, %v2640
        %v2642 = vpop.f32.mrf.mxu0
        %2643 = vmatprep.mubr.bf16.mxu0 %v1860
        %2644 = vmatmul.mubr.bf16.gmra.mxu0 %v1859
        %v2645 = vpop.f32.mrf.mxu0
        %v2646 = vadd.f32 %v2421, %v2645
        %v2647 = vpop.f32.mrf.mxu0
        %v2648 = vpop.f32.mrf.mxu0
        %v2649 = vadd.f32 %v2424, %v2648
        %v2650 = vpop.f32.mrf.mxu0
        %2651 = vmatprep.mubr.bf16.mxu0 %v1866
        %2652 = vmatmul.mubr.bf16.gmra.mxu0 %v1865
        %v2653 = vpop.f32.mrf.mxu0
        %v2654 = vadd.f32 %v2429, %v2653
        %v2655 = vpop.f32.mrf.mxu0
        %v2656 = vpop.f32.mrf.mxu0
        %v2657 = vadd.f32 %v2432, %v2656
        %v2658 = vpop.f32.mrf.mxu0
        %2659 = vmatprep.mubr.bf16.mxu0 %v1872
        %2660 = vmatmul.mubr.bf16.gmra.mxu0 %v1871
        %v2661 = vpop.f32.mrf.mxu0
        %v2662 = vadd.f32 %v2437, %v2661
        %v2663 = vpop.f32.mrf.mxu0
        %v2664 = vpop.f32.mrf.mxu0
        %v2665 = vadd.f32 %v2440, %v2664
        %v2666 = vpop.f32.mrf.mxu0
        %2667 = vmatprep.mubr.bf16.mxu0 %v1878
        %2668 = vmatmul.mubr.bf16.gmra.mxu0 %v1877
        %v2669 = vpop.f32.mrf.mxu0
        %v2670 = vadd.f32 %v2445, %v2669
        %v2671 = vpop.f32.mrf.mxu0
        %v2672 = vpop.f32.mrf.mxu0
        %v2673 = vadd.f32 %v2448, %v2672
        %v2674 = vpop.f32.mrf.mxu0
        %2675 = vmatprep.mubr.bf16.mxu0 %v1884
        %2676 = vmatmul.mubr.bf16.gmra.mxu0 %v1883
        %v2677 = vpop.f32.mrf.mxu0
        %v2678 = vadd.f32 %v2453, %v2677
        %v2679 = vpop.f32.mrf.mxu0
        %v2680 = vpop.f32.mrf.mxu0
        %v2681 = vadd.f32 %v2456, %v2680
        %v2682 = vpop.f32.mrf.mxu0
        %2683 = vmatprep.mubr.bf16.mxu0 %v1890
        %2684 = vmatmul.mubr.bf16.gmra.mxu0 %v1889
        %v2685 = vpop.f32.mrf.mxu0
        %v2686 = vadd.f32 %v2461, %v2685
        %v2687 = vpop.f32.mrf.mxu0
        %v2688 = vpop.f32.mrf.mxu0
        %v2689 = vadd.f32 %v2464, %v2688
        %v2690 = vpop.f32.mrf.mxu0
        %2691 = vmatprep.mubr.bf16.mxu0 %v1896
        %2692 = vmatmul.mubr.bf16.gmra.mxu0 %v1895
        %v2693 = vpop.f32.mrf.mxu0
        %v2694 = vadd.f32 %v2469, %v2693
        %v2695 = vpop.f32.mrf.mxu0
        %v2696 = vpop.f32.mrf.mxu0
        %v2697 = vadd.f32 %v2472, %v2696
        %v2698 = vpop.f32.mrf.mxu0
        %2699 = vmatprep.mubr.bf16.mxu0 %v1902
        %2700 = vmatmul.mubr.bf16.gmra.mxu0 %v1901
        %v2701 = vpop.f32.mrf.mxu0
        %v2702 = vadd.f32 %v2477, %v2701
        %v2703 = vpop.f32.mrf.mxu0
        %v2704 = vpop.f32.mrf.mxu0
        %v2705 = vadd.f32 %v2480, %v2704
        %v2706 = vpop.f32.mrf.mxu0
        %2707 = vmatprep.mubr.bf16.mxu0 %v1908
        %2708 = vmatmul.mubr.bf16.gmra.mxu0 %v1907
        %v2709 = vpop.f32.mrf.mxu0
        %v2710 = vadd.f32 %v2485, %v2709
        %v2711 = vpop.f32.mrf.mxu0
        %v2712 = vpop.f32.mrf.mxu0
        %v2713 = vadd.f32 %v2488, %v2712
        %v2714 = vpop.f32.mrf.mxu0
        %2715 = vmatprep.mubr.bf16.mxu0 %v1914
        %2716 = vmatmul.mubr.bf16.gmra.mxu0 %v1913
        %v2717 = vpop.f32.mrf.mxu0
        %v2718 = vadd.f32 %v2493, %v2717
        %v2719 = vpop.f32.mrf.mxu0
        %v2720 = vpop.f32.mrf.mxu0
        %v2721 = vadd.f32 %v2496, %v2720
        %v2722 = vpop.f32.mrf.mxu0
        %2723 = vmatprep.mubr.bf16.mxu0 %v1920
        %2724 = vmatmul.mubr.bf16.gmra.mxu0 %v1919
        %v2725 = vpop.f32.mrf.mxu0
        %v2726 = vadd.f32 %v2501, %v2725
        %v2727 = vpop.f32.mrf.mxu0
        %v2728 = vpop.f32.mrf.mxu0
        %v2729 = vadd.f32 %v2504, %v2728
        %v2730 = vpop.f32.mrf.mxu0
        %2731 = vmatprep.mubr.bf16.mxu0 %v1926
        %2732 = vmatmul.mubr.bf16.gmra.mxu0 %v1925
        %v2733 = vpop.f32.mrf.mxu0
        %v2734 = vadd.f32 %v2509, %v2733
        %v2735 = vpop.f32.mrf.mxu0
        %v2736 = vpop.f32.mrf.mxu0
        %v2737 = vadd.f32 %v2512, %v2736
        %v2738 = vpop.f32.mrf.mxu0
        %2739 = vmatprep.mubr.bf16.mxu0 %v1932
        %2740 = vmatmul.mubr.bf16.gmra.mxu0 %v1931
        %v2741 = vpop.f32.mrf.mxu0
        %v2742 = vadd.f32 %v2517, %v2741
        %v2743 = vpop.f32.mrf.mxu0
        %v2744 = vpop.f32.mrf.mxu0
        %v2745 = vadd.f32 %v2520, %v2744
        %v2746 = vpop.f32.mrf.mxu0
        %2747 = vmatprep.mubr.bf16.mxu0 %v1938
        %2748 = vmatmul.mubr.bf16.gmra.mxu0 %v1937
        %v2749 = vpop.f32.mrf.mxu0
        %v2750 = vadd.f32 %v2525, %v2749
        %v2751 = vpop.f32.mrf.mxu0
        %v2752 = vpop.f32.mrf.mxu0
        %v2753 = vadd.f32 %v2528, %v2752
        %v2754 = vpop.f32.mrf.mxu0
        %2755 = vmatprep.mubr.bf16.mxu0 %v1944
        %2756 = vmatmul.mubr.bf16.gmra.mxu0 %v1943
        %v2757 = vpop.f32.mrf.mxu0
        %v2758 = vadd.f32 %v2533, %v2757
        %v2759 = vpop.f32.mrf.mxu0
        %v2760 = vpop.f32.mrf.mxu0
        %v2761 = vadd.f32 %v2536, %v2760
        %v2762 = vpop.f32.mrf.mxu0
        %2763 = vdwg.mxu0
        %vm2764 = vcmp.gt.f32.partialorder %v2574, 0.0
        %vm2765 = vcmp.gt.f32.partialorder %v2577, 0.0
        %vm2766 = vcmp.gt.f32.partialorder %v2582, 0.0
        %vm2767 = vcmp.gt.f32.partialorder %v2585, 0.0
        %vm2768 = vcmp.gt.f32.partialorder %v2590, 0.0
        %vm2769 = vcmp.gt.f32.partialorder %v2593, 0.0
        %vm2770 = vcmp.gt.f32.partialorder %v2598, 0.0
        %vm2771 = vcmp.gt.f32.partialorder %v2601, 0.0
        %vm2772 = vcmp.gt.f32.partialorder %v2606, 0.0
        %vm2773 = vcmp.gt.f32.partialorder %v2609, 0.0
        %vm2774 = vcmp.gt.f32.partialorder %v2614, 0.0
        %vm2775 = vcmp.gt.f32.partialorder %v2617, 0.0
        %vm2776 = vcmp.gt.f32.partialorder %v2622, 0.0
        %vm2777 = vcmp.gt.f32.partialorder %v2625, 0.0
        %vm2778 = vcmp.gt.f32.partialorder %v2630, 0.0
        %vm2779 = vcmp.gt.f32.partialorder %v2633, 0.0
        %vm2780 = vcmp.gt.f32.partialorder %v2638, 0.0
        %vm2781 = vcmp.gt.f32.partialorder %v2641, 0.0
        %vm2782 = vcmp.gt.f32.partialorder %v2646, 0.0
        %vm2783 = vcmp.gt.f32.partialorder %v2649, 0.0
        %vm2784 = vcmp.gt.f32.partialorder %v2654, 0.0
        %vm2785 = vcmp.gt.f32.partialorder %v2657, 0.0
        %vm2786 = vcmp.gt.f32.partialorder %v2662, 0.0
        %vm2787 = vcmp.gt.f32.partialorder %v2665, 0.0
        %vm2788 = vcmp.gt.f32.partialorder %v2670, 0.0
        %vm2789 = vcmp.gt.f32.partialorder %v2673, 0.0
        %vm2790 = vcmp.gt.f32.partialorder %v2678, 0.0
        %vm2791 = vcmp.gt.f32.partialorder %v2681, 0.0
        %vm2792 = vcmp.gt.f32.partialorder %v2686, 0.0
        %vm2793 = vcmp.gt.f32.partialorder %v2689, 0.0
        %vm2794 = vcmp.gt.f32.partialorder %v2694, 0.0
        %vm2795 = vcmp.gt.f32.partialorder %v2697, 0.0
        %vm2796 = vcmp.gt.f32.partialorder %v2702, 0.0
        %vm2797 = vcmp.gt.f32.partialorder %v2705, 0.0
        %vm2798 = vcmp.gt.f32.partialorder %v2710, 0.0
        %vm2799 = vcmp.gt.f32.partialorder %v2713, 0.0
        %vm2800 = vcmp.gt.f32.partialorder %v2718, 0.0
        %vm2801 = vcmp.gt.f32.partialorder %v2721, 0.0
        %vm2802 = vcmp.gt.f32.partialorder %v2726, 0.0
        %vm2803 = vcmp.gt.f32.partialorder %v2729, 0.0
        %vm2804 = vcmp.gt.f32.partialorder %v2734, 0.0
        %vm2805 = vcmp.gt.f32.partialorder %v2737, 0.0
        %vm2806 = vcmp.gt.f32.partialorder %v2742, 0.0
        %vm2807 = vcmp.gt.f32.partialorder %v2745, 0.0
        %vm2808 = vcmp.gt.f32.partialorder %v2750, 0.0
        %vm2809 = vcmp.gt.f32.partialorder %v2753, 0.0
        %vm2810 = vcmp.gt.f32.partialorder %v2758, 0.0
        %vm2811 = vcmp.gt.f32.partialorder %v2761, 0.0
        %v2812 = vmin.f32 %v2574, 0.0
        %v2813 = vmin.f32 %v2577, 0.0
        %v2814 = vmin.f32 %v2582, 0.0
        %v2815 = vmin.f32 %v2585, 0.0
        %v2816 = vmin.f32 %v2590, 0.0
        %v2817 = vmin.f32 %v2593, 0.0
        %v2818 = vmin.f32 %v2598, 0.0
        %v2819 = vmin.f32 %v2601, 0.0
        %v2820 = vmin.f32 %v2606, 0.0
        %v2821 = vmin.f32 %v2609, 0.0
        %v2822 = vmin.f32 %v2614, 0.0
        %v2823 = vmin.f32 %v2617, 0.0
        %v2824 = vmin.f32 %v2622, 0.0
        %v2825 = vmin.f32 %v2625, 0.0
        %v2826 = vmin.f32 %v2630, 0.0
        %v2827 = vmin.f32 %v2633, 0.0
        %v2828 = vmin.f32 %v2638, 0.0
        %v2829 = vmin.f32 %v2641, 0.0
        %v2830 = vmin.f32 %v2646, 0.0
        %v2831 = vmin.f32 %v2649, 0.0
        %v2832 = vmin.f32 %v2654, 0.0
        %v2833 = vmin.f32 %v2657, 0.0
        %v2834 = vmin.f32 %v2662, 0.0
        %v2835 = vmin.f32 %v2665, 0.0
        %v2836 = vmin.f32 %v2670, 0.0
        %v2837 = vmin.f32 %v2673, 0.0
        %v2838 = vmin.f32 %v2678, 0.0
        %v2839 = vmin.f32 %v2681, 0.0
        %v2840 = vmin.f32 %v2686, 0.0
        %v2841 = vmin.f32 %v2689, 0.0
        %v2842 = vmin.f32 %v2694, 0.0
        %v2843 = vmin.f32 %v2697, 0.0
        %v2844 = vmin.f32 %v2702, 0.0
        %v2845 = vmin.f32 %v2705, 0.0
        %v2846 = vmin.f32 %v2710, 0.0
        %v2847 = vmin.f32 %v2713, 0.0
        %v2848 = vmin.f32 %v2718, 0.0
        %v2849 = vmin.f32 %v2721, 0.0
        %v2850 = vmin.f32 %v2726, 0.0
        %v2851 = vmin.f32 %v2729, 0.0
        %v2852 = vmin.f32 %v2734, 0.0
        %v2853 = vmin.f32 %v2737, 0.0
        %v2854 = vmin.f32 %v2742, 0.0
        %v2855 = vmin.f32 %v2745, 0.0
        %v2856 = vmin.f32 %v2750, 0.0
        %v2857 = vmin.f32 %v2753, 0.0
        %v2858 = vmin.f32 %v2758, 0.0
        %v2859 = vmin.f32 %v2761, 0.0
        %v2860 = vmul.f32 %v2812, 1.442695
        %v2861 = vpow.pop %v2860
        %v2862 = vmul.f32 %v2813, 1.442695
        %v2863 = vpow.pop %v2862
        %v2864 = vmul.f32 %v2814, 1.442695
        %v2865 = vpow.pop %v2864
        %v2866 = vmul.f32 %v2815, 1.442695
        %v2867 = vpow.pop %v2866
        %v2868 = vmul.f32 %v2816, 1.442695
        %v2869 = vpow.pop %v2868
        %v2870 = vmul.f32 %v2817, 1.442695
        %v2871 = vpow.pop %v2870
        %v2872 = vmul.f32 %v2818, 1.442695
        %v2873 = vpow.pop %v2872
        %v2874 = vmul.f32 %v2819, 1.442695
        %v2875 = vpow.pop %v2874
        %v2876 = vmul.f32 %v2820, 1.442695
        %v2877 = vpow.pop %v2876
        %v2878 = vmul.f32 %v2821, 1.442695
        %v2879 = vpow.pop %v2878
        %v2880 = vmul.f32 %v2822, 1.442695
        %v2881 = vpow.pop %v2880
        %v2882 = vmul.f32 %v2823, 1.442695
        %v2883 = vpow.pop %v2882
        %v2884 = vmul.f32 %v2824, 1.442695
        %v2885 = vpow.pop %v2884
        %v2886 = vmul.f32 %v2825, 1.442695
        %v2887 = vpow.pop %v2886
        %v2888 = vmul.f32 %v2826, 1.442695
        %v2889 = vpow.pop %v2888
        %v2890 = vmul.f32 %v2827, 1.442695
        %v2891 = vpow.pop %v2890
        %v2892 = vmul.f32 %v2828, 1.442695
        %v2893 = vpow.pop %v2892
        %v2894 = vmul.f32 %v2829, 1.442695
        %v2895 = vpow.pop %v2894
        %v2896 = vmul.f32 %v2830, 1.442695
        %v2897 = vpow.pop %v2896
        %v2898 = vmul.f32 %v2831, 1.442695
        %v2899 = vpow.pop %v2898
        %v2900 = vmul.f32 %v2832, 1.442695
        %v2901 = vpow.pop %v2900
        %v2902 = vmul.f32 %v2833, 1.442695
        %v2903 = vpow.pop %v2902
        %v2904 = vmul.f32 %v2834, 1.442695
        %v2905 = vpow.pop %v2904
        %v2906 = vmul.f32 %v2835, 1.442695
        %v2907 = vpow.pop %v2906
        %v2908 = vmul.f32 %v2836, 1.442695
        %v2909 = vpow.pop %v2908
        %v2910 = vmul.f32 %v2837, 1.442695
        %v2911 = vpow.pop %v2910
        %v2912 = vmul.f32 %v2838, 1.442695
        %v2913 = vpow.pop %v2912
        %v2914 = vmul.f32 %v2839, 1.442695
        %v2915 = vpow.pop %v2914
        %v2916 = vmul.f32 %v2840, 1.442695
        %v2917 = vpow.pop %v2916
        %v2918 = vmul.f32 %v2841, 1.442695
        %v2919 = vpow.pop %v2918
        %v2920 = vmul.f32 %v2842, 1.442695
        %v2921 = vpow.pop %v2920
        %v2922 = vmul.f32 %v2843, 1.442695
        %v2923 = vpow.pop %v2922
        %v2924 = vmul.f32 %v2844, 1.442695
        %v2925 = vpow.pop %v2924
        %v2926 = vmul.f32 %v2845, 1.442695
        %v2927 = vpow.pop %v2926
        %v2928 = vmul.f32 %v2846, 1.442695
        %v2929 = vpow.pop %v2928
        %v2930 = vmul.f32 %v2847, 1.442695
        %v2931 = vpow.pop %v2930
        %v2932 = vmul.f32 %v2848, 1.442695
        %v2933 = vpow.pop %v2932
        %v2934 = vmul.f32 %v2849, 1.442695
        %v2935 = vpow.pop %v2934
        %v2936 = vmul.f32 %v2850, 1.442695
        %v2937 = vpow.pop %v2936
        %v2938 = vmul.f32 %v2851, 1.442695
        %v2939 = vpow.pop %v2938
        %v2940 = vmul.f32 %v2852, 1.442695
        %v2941 = vpow.pop %v2940
        %v2942 = vmul.f32 %v2853, 1.442695
        %v2943 = vpow.pop %v2942
        %v2944 = vmul.f32 %v2854, 1.442695
        %v2945 = vpow.pop %v2944
        %v2946 = vmul.f32 %v2855, 1.442695
        %v2947 = vpow.pop %v2946
        %v2948 = vmul.f32 %v2856, 1.442695
        %v2949 = vpow.pop %v2948
        %v2950 = vmul.f32 %v2857, 1.442695
        %v2951 = vpow.pop %v2950
        %v2952 = vmul.f32 %v2858, 1.442695
        %v2953 = vpow.pop %v2952
        %v2954 = vmul.f32 %v2859, 1.442695
        %v2955 = vpow.pop %v2954
        %v2956 = vsub.f32 %v2861, 1.0
        %v2957 = vsub.f32 %v2863, 1.0
        %v2958 = vsub.f32 %v2865, 1.0
        %v2959 = vsub.f32 %v2867, 1.0
        %v2960 = vsub.f32 %v2869, 1.0
        %v2961 = vsub.f32 %v2871, 1.0
        %v2962 = vsub.f32 %v2873, 1.0
        %v2963 = vsub.f32 %v2875, 1.0
        %v2964 = vsub.f32 %v2877, 1.0
        %v2965 = vsub.f32 %v2879, 1.0
        %v2966 = vsub.f32 %v2881, 1.0
        %v2967 = vsub.f32 %v2883, 1.0
        %v2968 = vsub.f32 %v2885, 1.0
        %v2969 = vsub.f32 %v2887, 1.0
        %v2970 = vsub.f32 %v2889, 1.0
        %v2971 = vsub.f32 %v2891, 1.0
        %v2972 = vsub.f32 %v2893, 1.0
        %v2973 = vsub.f32 %v2895, 1.0
        %v2974 = vsub.f32 %v2897, 1.0
        %v2975 = vsub.f32 %v2899, 1.0
        %v2976 = vsub.f32 %v2901, 1.0
        %v2977 = vsub.f32 %v2903, 1.0
        %v2978 = vsub.f32 %v2905, 1.0
        %v2979 = vsub.f32 %v2907, 1.0
        %v2980 = vsub.f32 %v2909, 1.0
        %v2981 = vsub.f32 %v2911, 1.0
        %v2982 = vsub.f32 %v2913, 1.0
        %v2983 = vsub.f32 %v2915, 1.0
        %v2984 = vsub.f32 %v2917, 1.0
        %v2985 = vsub.f32 %v2919, 1.0
        %v2986 = vsub.f32 %v2921, 1.0
        %v2987 = vsub.f32 %v2923, 1.0
        %v2988 = vsub.f32 %v2925, 1.0
        %v2989 = vsub.f32 %v2927, 1.0
        %v2990 = vsub.f32 %v2929, 1.0
        %v2991 = vsub.f32 %v2931, 1.0
        %v2992 = vsub.f32 %v2933, 1.0
        %v2993 = vsub.f32 %v2935, 1.0
        %v2994 = vsub.f32 %v2937, 1.0
        %v2995 = vsub.f32 %v2939, 1.0
        %v2996 = vsub.f32 %v2941, 1.0
        %v2997 = vsub.f32 %v2943, 1.0
        %v2998 = vsub.f32 %v2945, 1.0
        %v2999 = vsub.f32 %v2947, 1.0
        %v3000 = vsub.f32 %v2949, 1.0
        %v3001 = vsub.f32 %v2951, 1.0
        %v3002 = vsub.f32 %v2953, 1.0
        %v3003 = vsub.f32 %v2955, 1.0
        %v3004 = vsel %vm2764, %v2574, %v2956
        %v3005 = vsel %vm2765, %v2577, %v2957
        %v3006 = vsel %vm2766, %v2582, %v2958
        %v3007 = vsel %vm2767, %v2585, %v2959
        %v3008 = vsel %vm2768, %v2590, %v2960
        %v3009 = vsel %vm2769, %v2593, %v2961
        %v3010 = vsel %vm2770, %v2598, %v2962
        %v3011 = vsel %vm2771, %v2601, %v2963
        %v3012 = vsel %vm2772, %v2606, %v2964
        %v3013 = vsel %vm2773, %v2609, %v2965
        %v3014 = vsel %vm2774, %v2614, %v2966
        %v3015 = vsel %vm2775, %v2617, %v2967
        %v3016 = vsel %vm2776, %v2622, %v2968
        %v3017 = vsel %vm2777, %v2625, %v2969
        %v3018 = vsel %vm2778, %v2630, %v2970
        %v3019 = vsel %vm2779, %v2633, %v2971
        %v3020 = vsel %vm2780, %v2638, %v2972
        %v3021 = vsel %vm2781, %v2641, %v2973
        %v3022 = vsel %vm2782, %v2646, %v2974
        %v3023 = vsel %vm2783, %v2649, %v2975
        %v3024 = vsel %vm2784, %v2654, %v2976
        %v3025 = vsel %vm2785, %v2657, %v2977
        %v3026 = vsel %vm2786, %v2662, %v2978
        %v3027 = vsel %vm2787, %v2665, %v2979
        %v3028 = vsel %vm2788, %v2670, %v2980
        %v3029 = vsel %vm2789, %v2673, %v2981
        %v3030 = vsel %vm2790, %v2678, %v2982
        %v3031 = vsel %vm2791, %v2681, %v2983
        %v3032 = vsel %vm2792, %v2686, %v2984
        %v3033 = vsel %vm2793, %v2689, %v2985
        %v3034 = vsel %vm2794, %v2694, %v2986
        %v3035 = vsel %vm2795, %v2697, %v2987
        %v3036 = vsel %vm2796, %v2702, %v2988
        %v3037 = vsel %vm2797, %v2705, %v2989
        %v3038 = vsel %vm2798, %v2710, %v2990
        %v3039 = vsel %vm2799, %v2713, %v2991
        %v3040 = vsel %vm2800, %v2718, %v2992
        %v3041 = vsel %vm2801, %v2721, %v2993
        %v3042 = vsel %vm2802, %v2726, %v2994
        %v3043 = vsel %vm2803, %v2729, %v2995
        %v3044 = vsel %vm2804, %v2734, %v2996
        %v3045 = vsel %vm2805, %v2737, %v2997
        %v3046 = vsel %vm2806, %v2742, %v2998
        %v3047 = vsel %vm2807, %v2745, %v2999
        %v3048 = vsel %vm2808, %v2750, %v3000
        %v3049 = vsel %vm2809, %v2753, %v3001
        %v3050 = vsel %vm2810, %v2758, %v3002
        %v3051 = vsel %vm2811, %v2761, %v3003
        %v3052 = vpack.c.bf16 %v3005, %v3004
        %v3053 = vpack.c.bf16 %v3007, %v3006
        %v3054 = vpack.c.bf16 %v3009, %v3008
        %v3055 = vpack.c.bf16 %v3011, %v3010
        %v3056 = vpack.c.bf16 %v3013, %v3012
        %v3057 = vpack.c.bf16 %v3015, %v3014
        %v3058 = vpack.c.bf16 %v3017, %v3016
        %v3059 = vpack.c.bf16 %v3019, %v3018
        %v3060 = vpack.c.bf16 %v3021, %v3020
        %v3061 = vpack.c.bf16 %v3023, %v3022
        %v3062 = vpack.c.bf16 %v3025, %v3024
        %v3063 = vpack.c.bf16 %v3027, %v3026
        %v3064 = vpack.c.bf16 %v3029, %v3028
        %v3065 = vpack.c.bf16 %v3031, %v3030
        %v3066 = vpack.c.bf16 %v3033, %v3032
        %v3067 = vpack.c.bf16 %v3035, %v3034
        %v3068 = vpack.c.bf16 %v3037, %v3036
        %v3069 = vpack.c.bf16 %v3039, %v3038
        %v3070 = vpack.c.bf16 %v3041, %v3040
        %v3071 = vpack.c.bf16 %v3043, %v3042
        %v3072 = vpack.c.bf16 %v3045, %v3044
        %v3073 = vpack.c.bf16 %v3047, %v3046
        %v3074 = vpack.c.bf16 %v3049, %v3048
        %v3075 = vpack.c.bf16 %v3051, %v3050
        %v3076 = vld [vmem:[#allocation9] sm:$0xf]
        %v3077 = vld [vmem:[#allocation9 + $0x4] sm:$0xf]
        %v3078 = vld [vmem:[#allocation9 + $0x8] sm:$0xf]
        %v3079 = vld [vmem:[#allocation9 + $0xc] sm:$0xf]
        %v3080 = vld [vmem:[#allocation9 + $0x10] sm:$0xf]
        %v3081 = vld [vmem:[#allocation9 + $0x14] sm:$0xf]
        %v3082 = vld [vmem:[#allocation9 + $0x18] sm:$0xf]
        %v3083 = vld [vmem:[#allocation9 + $0x1c] sm:$0xf]
        %v3084 = vld [vmem:[#allocation9 + $0x20] sm:$0xf]
        %v3085 = vld [vmem:[#allocation9 + $0x24] sm:$0xf]
        %v3086 = vld [vmem:[#allocation9 + $0x28] sm:$0xf]
        %v3087 = vld [vmem:[#allocation9 + $0x2c] sm:$0xf]
        %v3088 = vld [vmem:[#allocation9 + $0x30] sm:$0xf]
        %v3089 = vld [vmem:[#allocation9 + $0x34] sm:$0xf]
        %v3090 = vld [vmem:[#allocation9 + $0x38] sm:$0xf]
        %v3091 = vld [vmem:[#allocation9 + $0x3c] sm:$0xf]
        %v3108 = vunpack.c.l.b16 %v3076
        %v3109 = vunpack.c.l.b16 %v3077
        %v3110 = vunpack.c.l.b16 %v3078
        %v3111 = vunpack.c.l.b16 %v3079
        %v3112 = vunpack.c.l.b16 %v3080
        %v3113 = vunpack.c.l.b16 %v3081
        %v3114 = vunpack.c.l.b16 %v3082
        %v3115 = vunpack.c.l.b16 %v3083
        %v3116 = vunpack.c.l.b16 %v3084
        %v3117 = vunpack.c.l.b16 %v3085
        %v3118 = vunpack.c.l.b16 %v3086
        %v3119 = vunpack.c.l.b16 %v3087
        %v3120 = vunpack.c.l.b16 %v3088
        %v3121 = vunpack.c.l.b16 %v3089
        %v3122 = vunpack.c.l.b16 %v3090
        %v3123 = vunpack.c.l.b16 %v3091
        %v3124 = vpack.c.b16 %v3109, %v3108
        %v3125 = vpack.c.b16 %v3111, %v3110
        %v3126 = vpack.c.b16 %v3113, %v3112
        %v3127 = vpack.c.b16 %v3115, %v3114
        %v3128 = vpack.c.b16 %v3117, %v3116
        %v3129 = vpack.c.b16 %v3119, %v3118
        %v3130 = vpack.c.b16 %v3121, %v3120
        %v3131 = vpack.c.b16 %v3123, %v3122
        %3140 = vmatprep.subr.bf16.mxu0 0
        %3141 = vmatpush1.bf16.msra.mxu0 %v3131
        %3142 = vmatprep.subr.bf16.mxu0 0
        %3143 = vmatpush1.bf16.msra.mxu0 %v3130
        %3144 = vmatprep.subr.bf16.mxu0 0
        %3145 = vmatpush1.bf16.msra.mxu0 %v3129
        %3146 = vmatprep.subr.bf16.mxu0 0
        %3147 = vmatpush1.bf16.msra.mxu0 %v3128
        %3148 = vmatprep.subr.bf16.mxu0 0
        %3149 = vmatpush1.bf16.msra.mxu0 %v3127
        %3150 = vmatprep.subr.bf16.mxu0 0
        %3151 = vmatpush1.bf16.msra.mxu0 %v3126
        %3152 = vmatprep.subr.bf16.mxu0 0
        %3153 = vmatpush1.bf16.msra.mxu0 %v3125
        %3154 = vmatprep.subr.bf16.mxu0 0
        %3155 = vmatpush1.bf16.msra.mxu0 %v3124
        %3156 = vmatprep.subr.bf16.mxu0 0
        %3157 = vmatpush2.bf16.msra.mxu0 0
        %3158 = vmatprep.subr.bf16.mxu0 0
        %3159 = vmatpush2.bf16.msra.mxu0 0
        %3160 = vmatprep.subr.bf16.mxu0 0
        %3161 = vmatpush2.bf16.msra.mxu0 0
        %3162 = vmatprep.subr.bf16.mxu0 0
        %3163 = vmatpush2.bf16.msra.mxu0 0
        %3164 = vmatprep.subr.bf16.mxu0 0
        %3165 = vmatpush2.bf16.msra.mxu0 0
        %3166 = vmatprep.subr.bf16.mxu0 0
        %3167 = vmatpush2.bf16.msra.mxu0 0
        %3168 = vmatprep.subr.bf16.mxu0 0
        %3169 = vmatpush2.bf16.msra.mxu0 0
        %3170 = vmatprep.subr.bf16.mxu0 0
        %3171 = vmatpush2.bf16.msra.mxu0 0
        %3172 = vmatprep.mubr.bf16.mxu0 0
        %3173 = vmatmul.mubr.bf16.gmra.mxu0 %v3052
        %v3174 = vpop.f32.mrf.mxu0
        %v3175 = vadd.f32 0.0, %v3174
        %v3176 = vpop.f32.mrf.mxu0
        %v3177 = vpop.f32.mrf.mxu0
        %v3178 = vadd.f32 0.0, %v3177
        %v3179 = vpop.f32.mrf.mxu0
        %3180 = vmatprep.mubr.bf16.mxu0 0
        %3181 = vmatmul.mubr.bf16.gmra.mxu0 %v3053
        %v3182 = vpop.f32.mrf.mxu0
        %v3183 = vadd.f32 0.0, %v3182
        %v3184 = vpop.f32.mrf.mxu0
        %v3185 = vpop.f32.mrf.mxu0
        %v3186 = vadd.f32 0.0, %v3185
        %v3187 = vpop.f32.mrf.mxu0
        %3188 = vmatprep.mubr.bf16.mxu0 0
        %3189 = vmatmul.mubr.bf16.gmra.mxu0 %v3054
        %v3190 = vpop.f32.mrf.mxu0
        %v3191 = vadd.f32 0.0, %v3190
        %v3192 = vpop.f32.mrf.mxu0
        %v3193 = vpop.f32.mrf.mxu0
        %v3194 = vadd.f32 0.0, %v3193
        %v3195 = vpop.f32.mrf.mxu0
        %3196 = vmatprep.mubr.bf16.mxu0 0
        %3197 = vmatmul.mubr.bf16.gmra.mxu0 %v3055
        %v3198 = vpop.f32.mrf.mxu0
        %v3199 = vadd.f32 0.0, %v3198
        %v3200 = vpop.f32.mrf.mxu0
        %v3201 = vpop.f32.mrf.mxu0
        %v3202 = vadd.f32 0.0, %v3201
        %v3203 = vpop.f32.mrf.mxu0
        %3204 = vmatprep.mubr.bf16.mxu0 0
        %3205 = vmatmul.mubr.bf16.gmra.mxu0 %v3056
        %v3206 = vpop.f32.mrf.mxu0
        %v3207 = vadd.f32 0.0, %v3206
        %v3208 = vpop.f32.mrf.mxu0
        %v3209 = vpop.f32.mrf.mxu0
        %v3210 = vadd.f32 0.0, %v3209
        %v3211 = vpop.f32.mrf.mxu0
        %3212 = vmatprep.mubr.bf16.mxu0 0
        %3213 = vmatmul.mubr.bf16.gmra.mxu0 %v3057
        %v3214 = vpop.f32.mrf.mxu0
        %v3215 = vadd.f32 0.0, %v3214
        %v3216 = vpop.f32.mrf.mxu0
        %v3217 = vpop.f32.mrf.mxu0
        %v3218 = vadd.f32 0.0, %v3217
        %v3219 = vpop.f32.mrf.mxu0
        %3220 = vmatprep.mubr.bf16.mxu0 0
        %3221 = vmatmul.mubr.bf16.gmra.mxu0 %v3058
        %v3222 = vpop.f32.mrf.mxu0
        %v3223 = vadd.f32 0.0, %v3222
        %v3224 = vpop.f32.mrf.mxu0
        %v3225 = vpop.f32.mrf.mxu0
        %v3226 = vadd.f32 0.0, %v3225
        %v3227 = vpop.f32.mrf.mxu0
        %3228 = vmatprep.mubr.bf16.mxu0 0
        %3229 = vmatmul.mubr.bf16.gmra.mxu0 %v3059
        %v3230 = vpop.f32.mrf.mxu0
        %v3231 = vadd.f32 0.0, %v3230
        %v3232 = vpop.f32.mrf.mxu0
        %v3233 = vpop.f32.mrf.mxu0
        %v3234 = vadd.f32 0.0, %v3233
        %v3235 = vpop.f32.mrf.mxu0
        %3236 = vmatprep.mubr.bf16.mxu0 0
        %3237 = vmatmul.mubr.bf16.gmra.mxu0 %v3060
        %v3238 = vpop.f32.mrf.mxu0
        %v3239 = vadd.f32 0.0, %v3238
        %v3240 = vpop.f32.mrf.mxu0
        %v3241 = vpop.f32.mrf.mxu0
        %v3242 = vadd.f32 0.0, %v3241
        %v3243 = vpop.f32.mrf.mxu0
        %3244 = vmatprep.mubr.bf16.mxu0 0
        %3245 = vmatmul.mubr.bf16.gmra.mxu0 %v3061
        %v3246 = vpop.f32.mrf.mxu0
        %v3247 = vadd.f32 0.0, %v3246
        %v3248 = vpop.f32.mrf.mxu0
        %v3249 = vpop.f32.mrf.mxu0
        %v3250 = vadd.f32 0.0, %v3249
        %v3251 = vpop.f32.mrf.mxu0
        %3252 = vmatprep.mubr.bf16.mxu0 0
        %3253 = vmatmul.mubr.bf16.gmra.mxu0 %v3062
        %v3254 = vpop.f32.mrf.mxu0
        %v3255 = vadd.f32 0.0, %v3254
        %v3256 = vpop.f32.mrf.mxu0
        %v3257 = vpop.f32.mrf.mxu0
        %v3258 = vadd.f32 0.0, %v3257
        %v3259 = vpop.f32.mrf.mxu0
        %3260 = vmatprep.mubr.bf16.mxu0 0
        %3261 = vmatmul.mubr.bf16.gmra.mxu0 %v3063
        %v3262 = vpop.f32.mrf.mxu0
        %v3263 = vadd.f32 0.0, %v3262
        %v3264 = vpop.f32.mrf.mxu0
        %v3265 = vpop.f32.mrf.mxu0
        %v3266 = vadd.f32 0.0, %v3265
        %v3267 = vpop.f32.mrf.mxu0
        %3268 = vmatprep.mubr.bf16.mxu0 0
        %3269 = vmatmul.mubr.bf16.gmra.mxu0 %v3064
        %v3270 = vpop.f32.mrf.mxu0
        %v3271 = vadd.f32 0.0, %v3270
        %v3272 = vpop.f32.mrf.mxu0
        %v3273 = vpop.f32.mrf.mxu0
        %v3274 = vadd.f32 0.0, %v3273
        %v3275 = vpop.f32.mrf.mxu0
        %3276 = vmatprep.mubr.bf16.mxu0 0
        %3277 = vmatmul.mubr.bf16.gmra.mxu0 %v3065
        %v3278 = vpop.f32.mrf.mxu0
        %v3279 = vadd.f32 0.0, %v3278
        %v3280 = vpop.f32.mrf.mxu0
        %v3281 = vpop.f32.mrf.mxu0
        %v3282 = vadd.f32 0.0, %v3281
        %v3283 = vpop.f32.mrf.mxu0
        %3284 = vmatprep.mubr.bf16.mxu0 0
        %3285 = vmatmul.mubr.bf16.gmra.mxu0 %v3066
        %v3286 = vpop.f32.mrf.mxu0
        %v3287 = vadd.f32 0.0, %v3286
        %v3288 = vpop.f32.mrf.mxu0
        %v3289 = vpop.f32.mrf.mxu0
        %v3290 = vadd.f32 0.0, %v3289
        %v3291 = vpop.f32.mrf.mxu0
        %3292 = vmatprep.mubr.bf16.mxu0 0
        %3293 = vmatmul.mubr.bf16.gmra.mxu0 %v3067
        %v3294 = vpop.f32.mrf.mxu0
        %v3295 = vadd.f32 0.0, %v3294
        %v3296 = vpop.f32.mrf.mxu0
        %v3297 = vpop.f32.mrf.mxu0
        %v3298 = vadd.f32 0.0, %v3297
        %v3299 = vpop.f32.mrf.mxu0
        %3300 = vmatprep.mubr.bf16.mxu0 0
        %3301 = vmatmul.mubr.bf16.gmra.mxu0 %v3068
        %v3302 = vpop.f32.mrf.mxu0
        %v3303 = vadd.f32 0.0, %v3302
        %v3304 = vpop.f32.mrf.mxu0
        %v3305 = vpop.f32.mrf.mxu0
        %v3306 = vadd.f32 0.0, %v3305
        %v3307 = vpop.f32.mrf.mxu0
        %3308 = vmatprep.mubr.bf16.mxu0 0
        %3309 = vmatmul.mubr.bf16.gmra.mxu0 %v3069
        %v3310 = vpop.f32.mrf.mxu0
        %v3311 = vadd.f32 0.0, %v3310
        %v3312 = vpop.f32.mrf.mxu0
        %v3313 = vpop.f32.mrf.mxu0
        %v3314 = vadd.f32 0.0, %v3313
        %v3315 = vpop.f32.mrf.mxu0
        %3316 = vmatprep.mubr.bf16.mxu0 0
        %3317 = vmatmul.mubr.bf16.gmra.mxu0 %v3070
        %v3318 = vpop.f32.mrf.mxu0
        %v3319 = vadd.f32 0.0, %v3318
        %v3320 = vpop.f32.mrf.mxu0
        %v3321 = vpop.f32.mrf.mxu0
        %v3322 = vadd.f32 0.0, %v3321
        %v3323 = vpop.f32.mrf.mxu0
        %3324 = vmatprep.mubr.bf16.mxu0 0
        %3325 = vmatmul.mubr.bf16.gmra.mxu0 %v3071
        %v3326 = vpop.f32.mrf.mxu0
        %v3327 = vadd.f32 0.0, %v3326
        %v3328 = vpop.f32.mrf.mxu0
        %v3329 = vpop.f32.mrf.mxu0
        %v3330 = vadd.f32 0.0, %v3329
        %v3331 = vpop.f32.mrf.mxu0
        %3332 = vmatprep.mubr.bf16.mxu0 0
        %3333 = vmatmul.mubr.bf16.gmra.mxu0 %v3072
        %v3334 = vpop.f32.mrf.mxu0
        %v3335 = vadd.f32 0.0, %v3334
        %v3336 = vpop.f32.mrf.mxu0
        %v3337 = vpop.f32.mrf.mxu0
        %v3338 = vadd.f32 0.0, %v3337
        %v3339 = vpop.f32.mrf.mxu0
        %3340 = vmatprep.mubr.bf16.mxu0 0
        %3341 = vmatmul.mubr.bf16.gmra.mxu0 %v3073
        %v3342 = vpop.f32.mrf.mxu0
        %v3343 = vadd.f32 0.0, %v3342
        %v3344 = vpop.f32.mrf.mxu0
        %v3345 = vpop.f32.mrf.mxu0
        %v3346 = vadd.f32 0.0, %v3345
        %v3347 = vpop.f32.mrf.mxu0
        %3348 = vmatprep.mubr.bf16.mxu0 0
        %3349 = vmatmul.mubr.bf16.gmra.mxu0 %v3074
        %v3350 = vpop.f32.mrf.mxu0
        %v3351 = vadd.f32 0.0, %v3350
        %v3352 = vpop.f32.mrf.mxu0
        %v3353 = vpop.f32.mrf.mxu0
        %v3354 = vadd.f32 0.0, %v3353
        %v3355 = vpop.f32.mrf.mxu0
        %3356 = vmatprep.mubr.bf16.mxu0 0
        %3357 = vmatmul.mubr.bf16.gmra.mxu0 %v3075
        %v3358 = vpop.f32.mrf.mxu0
        %v3359 = vadd.f32 0.0, %v3358
        %v3360 = vpop.f32.mrf.mxu0
        %v3361 = vpop.f32.mrf.mxu0
        %v3362 = vadd.f32 0.0, %v3361
        %v3363 = vpop.f32.mrf.mxu0
        %3364 = vdwg.mxu0
        %v3365 = vpack.c.bf16 %v3178, %v3175
        %v3366 = vpack.c.bf16 %v3186, %v3183
        %v3367 = vpack.c.bf16 %v3194, %v3191
        %v3368 = vpack.c.bf16 %v3202, %v3199
        %v3369 = vpack.c.bf16 %v3210, %v3207
        %v3370 = vpack.c.bf16 %v3218, %v3215
        %v3371 = vpack.c.bf16 %v3226, %v3223
        %v3372 = vpack.c.bf16 %v3234, %v3231
        %v3373 = vpack.c.bf16 %v3242, %v3239
        %v3374 = vpack.c.bf16 %v3250, %v3247
        %v3375 = vpack.c.bf16 %v3258, %v3255
        %v3376 = vpack.c.bf16 %v3266, %v3263
        %v3377 = vpack.c.bf16 %v3274, %v3271
        %v3378 = vpack.c.bf16 %v3282, %v3279
        %v3379 = vpack.c.bf16 %v3290, %v3287
        %v3380 = vpack.c.bf16 %v3298, %v3295
        %v3381 = vpack.c.bf16 %v3306, %v3303
        %v3382 = vpack.c.bf16 %v3314, %v3311
        %v3383 = vpack.c.bf16 %v3322, %v3319
        %v3384 = vpack.c.bf16 %v3330, %v3327
        %v3385 = vpack.c.bf16 %v3338, %v3335
        %v3386 = vpack.c.bf16 %v3346, %v3343
        %v3387 = vpack.c.bf16 %v3354, %v3351
        %v3388 = vpack.c.bf16 %v3362, %v3359
        %v3413 = vunpack.c.l.b16 %v3365
        %v3414 = vunpack.c.h.b16 %v3365
        %v3415 = vunpack.c.l.b16 %v3366
        %v3416 = vunpack.c.h.b16 %v3366
        %v3417 = vunpack.c.l.b16 %v3367
        %v3418 = vunpack.c.h.b16 %v3367
        %v3419 = vunpack.c.l.b16 %v3368
        %v3420 = vunpack.c.h.b16 %v3368
        %v3421 = vunpack.c.l.b16 %v3369
        %v3422 = vunpack.c.h.b16 %v3369
        %v3423 = vunpack.c.l.b16 %v3370
        %v3424 = vunpack.c.h.b16 %v3370
        %v3425 = vunpack.c.l.b16 %v3371
        %v3426 = vunpack.c.h.b16 %v3371
        %v3427 = vunpack.c.l.b16 %v3372
        %v3428 = vunpack.c.h.b16 %v3372
        %v3429 = vunpack.c.l.b16 %v3373
        %v3430 = vunpack.c.h.b16 %v3373
        %v3431 = vunpack.c.l.b16 %v3374
        %v3432 = vunpack.c.h.b16 %v3374
        %v3433 = vunpack.c.l.b16 %v3375
        %v3434 = vunpack.c.h.b16 %v3375
        %v3435 = vunpack.c.l.b16 %v3376
        %v3436 = vunpack.c.h.b16 %v3376
        %v3437 = vunpack.c.l.b16 %v3377
        %v3438 = vunpack.c.h.b16 %v3377
        %v3439 = vunpack.c.l.b16 %v3378
        %v3440 = vunpack.c.h.b16 %v3378
        %v3441 = vunpack.c.l.b16 %v3379
        %v3442 = vunpack.c.h.b16 %v3379
        %v3443 = vunpack.c.l.b16 %v3380
        %v3444 = vunpack.c.h.b16 %v3380
        %v3445 = vunpack.c.l.b16 %v3381
        %v3446 = vunpack.c.h.b16 %v3381
        %v3447 = vunpack.c.l.b16 %v3382
        %v3448 = vunpack.c.h.b16 %v3382
        %v3449 = vunpack.c.l.b16 %v3383
        %v3450 = vunpack.c.h.b16 %v3383
        %v3451 = vunpack.c.l.b16 %v3384
        %v3452 = vunpack.c.h.b16 %v3384
        %v3453 = vunpack.c.l.b16 %v3385
        %v3454 = vunpack.c.h.b16 %v3385
        %v3455 = vunpack.c.l.b16 %v3386
        %v3456 = vunpack.c.h.b16 %v3386
        %v3457 = vunpack.c.l.b16 %v3387
        %v3458 = vunpack.c.h.b16 %v3387
        %v3459 = vunpack.c.l.b16 %v3388
        %v3460 = vunpack.c.h.b16 %v3388
        %v3461 = vpack.c.b16 %v3413, %v3413
        %v3462 = vpack.c.b16 %v3414, %v3414
        %v3463 = vpack.c.b16 %v3415, %v3415
        %v3464 = vpack.c.b16 %v3416, %v3416
        %v3465 = vpack.c.b16 %v3417, %v3417
        %v3466 = vpack.c.b16 %v3418, %v3418
        %v3467 = vpack.c.b16 %v3419, %v3419
        %v3468 = vpack.c.b16 %v3420, %v3420
        %v3469 = vpack.c.b16 %v3421, %v3421
        %v3470 = vpack.c.b16 %v3422, %v3422
        %v3471 = vpack.c.b16 %v3423, %v3423
        %v3472 = vpack.c.b16 %v3424, %v3424
        %v3473 = vpack.c.b16 %v3425, %v3425
        %v3474 = vpack.c.b16 %v3426, %v3426
        %v3475 = vpack.c.b16 %v3427, %v3427
        %v3476 = vpack.c.b16 %v3428, %v3428
        %v3477 = vpack.c.b16 %v3429, %v3429
        %v3478 = vpack.c.b16 %v3430, %v3430
        %v3479 = vpack.c.b16 %v3431, %v3431
        %v3480 = vpack.c.b16 %v3432, %v3432
        %v3481 = vpack.c.b16 %v3433, %v3433
        %v3482 = vpack.c.b16 %v3434, %v3434
        %v3483 = vpack.c.b16 %v3435, %v3435
        %v3484 = vpack.c.b16 %v3436, %v3436
        %v3485 = vpack.c.b16 %v3437, %v3437
        %v3486 = vpack.c.b16 %v3438, %v3438
        %v3487 = vpack.c.b16 %v3439, %v3439
        %v3488 = vpack.c.b16 %v3440, %v3440
        %v3489 = vpack.c.b16 %v3441, %v3441
        %v3490 = vpack.c.b16 %v3442, %v3442
        %v3491 = vpack.c.b16 %v3443, %v3443
        %v3492 = vpack.c.b16 %v3444, %v3444
        %v3493 = vpack.c.b16 %v3445, %v3445
        %v3494 = vpack.c.b16 %v3446, %v3446
        %v3495 = vpack.c.b16 %v3447, %v3447
        %v3496 = vpack.c.b16 %v3448, %v3448
        %v3497 = vpack.c.b16 %v3449, %v3449
        %v3498 = vpack.c.b16 %v3450, %v3450
        %v3499 = vpack.c.b16 %v3451, %v3451
        %v3500 = vpack.c.b16 %v3452, %v3452
        %v3501 = vpack.c.b16 %v3453, %v3453
        %v3502 = vpack.c.b16 %v3454, %v3454
        %v3503 = vpack.c.b16 %v3455, %v3455
        %v3504 = vpack.c.b16 %v3456, %v3456
        %v3505 = vpack.c.b16 %v3457, %v3457
        %v3506 = vpack.c.b16 %v3458, %v3458
        %v3507 = vpack.c.b16 %v3459, %v3459
        %v3508 = vpack.c.b16 %v3460, %v3460
        %3557 = vst [vmem:[%s302] sm:$0xf] %v3461
        %3558 = vst [vmem:[%s302 + $0x4] sm:$0xf] %v3462
        %3559 = vst [vmem:[%s302 + $0x8] sm:$0xf] %v3463
        %3560 = vst [vmem:[%s302 + $0xc] sm:$0xf] %v3464
        %3561 = vst [vmem:[%s302 + $0x10] sm:$0xf] %v3465
        %3562 = vst [vmem:[%s302 + $0x14] sm:$0xf] %v3466
        %3563 = vst [vmem:[%s302 + $0x18] sm:$0xf] %v3467
        %3564 = vst [vmem:[%s302 + $0x1c] sm:$0xf] %v3468
        %3565 = vst [vmem:[%s302 + $0x20] sm:$0xf] %v3469
        %3566 = vst [vmem:[%s302 + $0x24] sm:$0xf] %v3470
        %3567 = vst [vmem:[%s302 + $0x28] sm:$0xf] %v3471
        %3568 = vst [vmem:[%s302 + $0x2c] sm:$0xf] %v3472
        %3569 = vst [vmem:[%s302 + $0x30] sm:$0xf] %v3473
        %3570 = vst [vmem:[%s302 + $0x34] sm:$0xf] %v3474
        %3571 = vst [vmem:[%s302 + $0x38] sm:$0xf] %v3475
        %3572 = vst [vmem:[%s302 + $0x3c] sm:$0xf] %v3476
        %3573 = vst [vmem:[%s302 + $0x40] sm:$0xf] %v3477
        %3574 = vst [vmem:[%s302 + $0x44] sm:$0xf] %v3478
        %3575 = vst [vmem:[%s302 + $0x48] sm:$0xf] %v3479
        %3576 = vst [vmem:[%s302 + $0x4c] sm:$0xf] %v3480
        %3577 = vst [vmem:[%s302 + $0x50] sm:$0xf] %v3481
        %3578 = vst [vmem:[%s302 + $0x54] sm:$0xf] %v3482
        %3579 = vst [vmem:[%s302 + $0x58] sm:$0xf] %v3483
        %3580 = vst [vmem:[%s302 + $0x5c] sm:$0xf] %v3484
        %3581 = vst [vmem:[%s302 + $0x60] sm:$0xf] %v3485
        %3582 = vst [vmem:[%s302 + $0x64] sm:$0xf] %v3486
        %3583 = vst [vmem:[%s302 + $0x68] sm:$0xf] %v3487
        %3584 = vst [vmem:[%s302 + $0x6c] sm:$0xf] %v3488
        %3585 = vst [vmem:[%s302 + $0x70] sm:$0xf] %v3489
        %3586 = vst [vmem:[%s302 + $0x74] sm:$0xf] %v3490
        %3587 = vst [vmem:[%s302 + $0x78] sm:$0xf] %v3491
        %3588 = vst [vmem:[%s302 + $0x7c] sm:$0xf] %v3492
        %3589 = vst [vmem:[%s302 + $0x80] sm:$0xf] %v3493
        %3590 = vst [vmem:[%s302 + $0x84] sm:$0xf] %v3494
        %3591 = vst [vmem:[%s302 + $0x88] sm:$0xf] %v3495
        %3592 = vst [vmem:[%s302 + $0x8c] sm:$0xf] %v3496
        %3593 = vst [vmem:[%s302 + $0x90] sm:$0xf] %v3497
        %3594 = vst [vmem:[%s302 + $0x94] sm:$0xf] %v3498
        %3595 = vst [vmem:[%s302 + $0x98] sm:$0xf] %v3499
        %3596 = vst [vmem:[%s302 + $0x9c] sm:$0xf] %v3500
        %3597 = vst [vmem:[%s302 + $0xa0] sm:$0xf] %v3501
        %3598 = vst [vmem:[%s302 + $0xa4] sm:$0xf] %v3502
        %3599 = vst [vmem:[%s302 + $0xa8] sm:$0xf] %v3503
        %3600 = vst [vmem:[%s302 + $0xac] sm:$0xf] %v3504
        %3601 = vst [vmem:[%s302 + $0xb0] sm:$0xf] %v3505
        %3602 = vst [vmem:[%s302 + $0xb4] sm:$0xf] %v3506
        %3603 = vst [vmem:[%s302 + $0xb8] sm:$0xf] %v3507
        %3604 = vst [vmem:[%s302 + $0xbc] sm:$0xf] %v3508
        %s3605 = smul.u32 48, %s21
        %p3606 = scmp.lt.s32.totalorder %s3605, 95
        %s3607 = scalar_select %p3606, %s3605, 95
        %s3608 = smul.addr %s3607, 4
        %s3609 = scalar_lea.vmem %s5, %s3608
        // Predicated region
        $region61: #{gcn_forward_padded.2} parent=39 // pred_check
          %p3610 = pneg %p149
        $region62: #{gcn_forward_padded.2} parent=39 // pred_check_branch
          %3612 = sbr.rel (%p3610) target = $region64
        $region63: #{gcn_forward_padded.2} parent=39 // pred_region
          %s3613 = smul.u32 48, %s21
        $region64: #{gcn_forward_padded.2} parent=39 // pred_fallthru
          _
      $region40: #{gcn_forward_padded.2} parent=5 // pred_fallthru
        _
      %p3614 = scmp.le.s32.totalorder 2, %s16
      // Predicated region
      $region65: #{gcn_forward_padded.2} parent=5 // pred_check
        %p3615 = pneg %p3614
      $region66: #{gcn_forward_padded.2} parent=5 // pred_check_branch
        %3617 = sbr.rel (%p3615) target = $region68
      $region67: #{gcn_forward_padded.2} parent=5 // pred_region
        %s3618 = ssub.s32 %s16, 2
        // Predicated region
        $region69: #{gcn_forward_padded.2} parent=67 // pred_check
          %p3619 = pneg %p155
        $region70: #{gcn_forward_padded.2} parent=67 // pred_check_branch
          %3621 = sbr.rel (%p3619) target = $region72
        $region71: #{gcn_forward_padded.2} parent=67 // pred_region
          %s3622 = smul.u32 48, %s22
          %p3623 = scmp.lt.s32.totalorder %s3622, 95
          %s3624 = scalar_select %p3623, %s3622, 95
          %s3625 = smul.addr %s3624, 4
          %s3626 = scalar_lea.vmem %s5, %s3625
        $region72: #{gcn_forward_padded.2} parent=67 // pred_fallthru
          _
      $region68: #{gcn_forward_padded.2} parent=5 // pred_fallthru
        _
    $region6: #{gcn_forward_padded.2} parent=1 // loop_footer
      %s20 = sadd.s32 1, %s16
    $region7: #{gcn_forward_padded.2} parent=1 // loop_footer_branch
      %15 = sbr.rel target = $region3
    $region8: #{gcn_forward_padded.2} parent=1 // loop_exit
      _
    %3627 = vsyncpa [#allocation3], 1
    %s3628 = scalar_lea.sflag [#allocation3], 1
    %3629 = vsyncpa %s3628, 1
    %3630 = vsyncpa [#allocation5], 1
    %3631 = vsyncpa [#allocation8], 1

</llo_original>
